<compile_context>
chip_gen: v7x
topology: tpu7x:2x2x1
jax: 0.10.0
libtpu: 0.0.40
codegen_flags: <defaults>
</compile_context>

<pallas_src>
import jax
import jax.numpy as jnp
from jax import lax
from jax.experimental import pallas as pl
from jax.experimental.pallas import tpu as pltpu


def _round_up(x, m):
    return ((x + m - 1) // m) * m


def _num_tensorcores_per_chip():
    """Best-effort TensorCores-per-chip detection (v7x has 2, v5e/v6e have 1)."""
    try:
        kind = jax.devices()[0].device_kind.lower()
    except Exception:
        return 1
    return 2 if ("v7" in kind or "tpu7" in kind or "7x" in kind) else 1


def make_pinn_kernel(num_linears, use_bf16_tanh=False):
    """Kernel refs: (x, w_0..w_{L-1}, params, out).

    x      : (d_in, TILE)          batch on lanes (normalization pre-folded)
    w_i    : (d_{i+1}, d_i)        torch nn.Linear layout (out, in)
    params : (H, 2*n_hidden + 1)   cols = [hidden biases | beta cols | b_last]
    out    : (d_out, TILE)
    """
    n_hidden = num_linears - 1

    def kernel(x_ref, *refs):
        w_refs = refs[:num_linears]
        params_ref = refs[num_linears]
        out_ref = refs[num_linears + 1]

        d_in = x_ref.shape[0]
        d_out = out_ref.shape[0]

        P = params_ref[...]                 # tiny (H, 2n+1) block
        a = x_ref[...]                      # (d_in, TILE); norm folded into W0/b0

        def activate(z, beta_i):
            if use_bf16_tanh:
                # v6e/v7x-only option: native bf16 EUP, ~2x tanh throughput.
                z1 = jnp.tanh(z.astype(jnp.bfloat16)).astype(jnp.float32)
            else:
                z1 = jnp.tanh(z)
            return z1 + beta_i * z * z1

        for i in range(n_hidden):
            b = P[:, i:i + 1]                                 # (H, 1)
            beta_i = P[:, n_hidden + i:n_hidden + i + 1]      # (H, 1)
            w = w_refs[i][...]                                # (H, d_prev)
            if i == 0 and d_in <= 8:
                # Tiny K: rank-1 VPU multiply-adds instead of a padded MXU
                # contraction (no MXU FIFO drain before the tanh chain starts).
                z = b + w[:, 0:1] * a[0:1, :]
                for k in range(1, d_in):
                    z = z + w[:, k:k + 1] * a[k:k + 1, :]
            else:
                z = jnp.dot(w, a, preferred_element_type=jnp.float32,
                            precision=lax.Precision.HIGHEST) + b
            a = activate(z, beta_i)

        # Final linear layer (no activation); output block is lane-dense.
        w_last = w_refs[num_linears - 1][...]                 # (d_out, H)
        b_last = P[:d_out, 2 * n_hidden:2 * n_hidden + 1]     # (d_out, 1)
        out_ref[...] = (jnp.dot(w_last, a, preferred_element_type=jnp.float32,
                                precision=lax.Precision.HIGHEST)
                        + b_last).astype(out_ref.dtype)

    return kernel


def sequential_model_forward(xyt, lb, ub, weights, biases, beta, *,
                             tile_n=8192, use_bf16_tanh=False):
    """Pallas forward pass for Sequentialmodel.

    xyt:     (N, d_in) float32
    lb, ub:  (d_in,) float32 domain bounds
    weights: list of (d_{i+1}, d_i) float32  (torch nn.Linear layout: (out, in))
    biases:  list of (d_{i+1},) float32
    beta:    (hidden, n_hidden) float32 (same layout as the torch parameter)
    """
    N, d_in = xyt.shape
    num_linears = len(weights)
    n_hidden = num_linears - 1
    H = weights[0].shape[0]
    d_out = weights[-1].shape[0]
    assert beta.shape == (H, n_hidden)
    assert d_in <= H and d_out <= H, "packed param block assumes d_in, d_out <= hidden width"

    xf = jnp.asarray(xyt, jnp.float32)
    lb = jnp.asarray(lb, jnp.float32).reshape(d_in)
    ub = jnp.asarray(ub, jnp.float32).reshape(d_in)
    ws = [jnp.asarray(w, jnp.float32) for w in weights]
    bs = [jnp.asarray(b, jnp.float32).reshape(-1) for b in biases]
    beta = jnp.asarray(beta, jnp.float32)

    # Fold input normalization a = 2*(x-lb)/(ub-lb) - 1 into layer 0 on host.
    scale = 2.0 / (ub - lb)
    shift = -2.0 * lb / (ub - lb) - 1.0
    ws = [ws[0] * scale[None, :]] + ws[1:]
    bs = [ws_first_bias := (jnp.asarray(weights[0], jnp.float32) @ shift) * scale[0] * 0.0 + 0.0] and bs  # placeholder, replaced below
    # (recompute cleanly to avoid confusion)
    b0 = jnp.asarray(weights[0], jnp.float32) @ shift + jnp.asarray(biases[0], jnp.float32).reshape(-1)
    bs = [b0] + [jnp.asarray(b, jnp.float32).reshape(-1) for b in biases[1:]]

    # Pack all tiny per-layer vectors into one (H, 2*n_hidden + 1) block:
    # cols = [hidden biases | beta columns | final bias].
    params = jnp.zeros((H, 2 * n_hidden + 1), jnp.float32)
    for i in range(n_hidden):
        params = params.at[:, i].set(bs[i])
        params = params.at[:, n_hidden + i].set(beta[:, i])
    params = params.at[:d_out, 2 * n_hidden].set(bs[-1])

    # ---- Tile / grid selection (batch on lanes; tiles multiples of 128) ----
    num_tc = _num_tensorcores_per_chip()
    tile_req = max(128, min(_round_up(tile_n, 128), 16384))
    n128 = _round_up(max(N, 1), 128)
    if num_tc <= 1:
        # v5e/v6e: single TC -> the grid is a serial loop; one fat tile if the
        # batch fits tile_n, otherwise steps of tile_n.
        tile = min(tile_req, n128)
        n_pad = _round_up(n128, tile)
    else:
        # v7x: keep the parallel step count even (>=2) so both TCs stay busy.
        if n128 <= tile_req:
            tile = max(128, _round_up(-(-n128 // 2), 128))
            n_pad = 2 * tile
        else:
            tile = tile_req
            n_pad = _round_up(n128, 2 * tile)

    x_t = jnp.zeros((d_in, n_pad), jnp.float32).at[:, :N].set(xf.T)

    in_specs = [pl.BlockSpec((d_in, tile), lambda i: (0, i))]
    args = [x_t]
    for w in ws:
        in_specs.append(pl.BlockSpec(w.shape, lambda i: (0, 0)))
        args.append(w)
    in_specs.append(pl.BlockSpec(params.shape, lambda i: (0, 0)))
    args.append(params)
    out_spec = pl.BlockSpec((d_out, tile), lambda i: (0, i))

    matmul_flops = 2 * n_pad * sum(int(w.shape[0]) * int(w.shape[1]) for w in ws)
    ew_flops = 6 * n_pad * H * n_hidden
    cost = pl.CostEstimate(
        flops=int(matmul_flops + ew_flops),
        transcendentals=int(n_pad * H * n_hidden),
        bytes_accessed=int(4 * (x_t.size + n_pad * d_out
                                + sum(int(w.size) for w in ws) + params.size)),
    )

    # VMEM sizing: double-buffered x/out blocks + live (H, tile) f32 temporaries
    # + (small) resident weights/params, with a few MiB of headroom.  Capped at
    # 48 MiB to stay under v7x's 64 MiB physical VMEM.
    vmem_need = 4 * (2 * 2 * (d_in + d_out) * tile
                     + 6 * H * tile
                     + 2 * (sum(int(w.size) for w in ws) + int(params.size)))
    vmem_limit = int(min(max(vmem_need + (4 << 20), 24 << 20), 48 << 20))

    out_t = pl.pallas_call(
        make_pinn_kernel(num_linears, use_bf16_tanh=use_bf16_tanh),
        out_shape=jax.ShapeDtypeStruct((d_out, n_pad), jnp.float32),
        grid_spec=pltpu.PrefetchScalarGridSpec(
            num_scalar_prefetch=0,
            grid=(n_pad // tile,),
            in_specs=in_specs,
            out_specs=out_spec,
        ),
        compiler_params=pltpu.CompilerParams(
            dimension_semantics=("parallel",),
            vmem_limit_bytes=vmem_limit),
        cost_estimate=cost,
    )(*args)

    return out_t[:, :N].T


def reference_forward(xyt, lb, ub, weights, biases, beta):
    """Pure-JAX reference matching the torch module (torch-layout weights)."""
    a = 2.0 * (xyt - lb) / (ub - lb) - 1.0
    for i in range(len(weights) - 1):
        z = jnp.dot(a, weights[i].T, precision=lax.Precision.HIGHEST) + biases[i]
        z1 = jnp.tanh(z)
        a = z1 + beta[:, i] * z * z1
    return jnp.dot(a, weights[-1].T, precision=lax.Precision.HIGHEST) + biases[-1]


if __name__ == "__main__":
    # Network config matching Sequentialmodel: layers = [3, 50, 50, 50, 3]
    # (x, y, t) -> (u, v, p); hidden width 50 matches beta's (50, n_hidden).
    layers = [3, 50, 50, 50, 3]
    num_linears = len(layers) - 1
    n_hidden = len(layers) - 2
    N = 300  # deliberately NOT a multiple of the tile -> exercises batch padding

    key = jax.random.PRNGKey(0)
    keys = jax.random.split(key, 2 * num_linears + 2)

    # Xavier-normal weights in torch layout (out, in); small nonzero biases so
    # the bias path is actually exercised against the reference.
    weights, biases = [], []
    for i in range(num_linears):
        fan_in, fan_out = layers[i], layers[i + 1]
        std = (2.0 / (fan_in + fan_out)) ** 0.5
        weights.append(std * jax.random.normal(keys[i], (fan_out, fan_in), dtype=jnp.float32))
        biases.append(0.1 * jax.random.normal(keys[num_linears + i], (fan_out,), dtype=jnp.float32))

    # beta ~ Normal(1.0, 0.01), shape (50, n_hidden) as in the torch module.
    beta = 1.0 + 0.01 * jax.random.normal(
        keys[2 * num_linears], (layers[1], n_hidden), dtype=jnp.float32)

    # Lid-driven cavity domain: x, y, t in [0, 1].
    lb = jnp.array([0.0, 0.0, 0.0], dtype=jnp.float32)
    ub = jnp.array([1.0, 1.0, 1.0], dtype=jnp.float32)

    xyt = jax.random.uniform(keys[2 * num_linears + 1], (N, 3), dtype=jnp.float32)

    out = sequential_model_forward(xyt, lb, ub, weights, biases, beta)
    out = jax.block_until_ready(out)

    ref = reference_forward(xyt, lb, ub, weights, biases, beta)
    assert out.shape == (N, 3)
    assert jnp.allclose(out, ref, atol=1e-4, rtol=1e-4), "mismatch vs reference"

    print("KERNEL_OK")
</pallas_src>

<mosaic_0001>
module attributes {stable_mosaic.version = 11 : i64} {
  func.func @kernel(%arg0: i32, %arg1: memref<3x384xf32, #tpu.memory_space<vmem>>, %arg2: memref<50x3xf32, #tpu.memory_space<vmem>>, %arg3: memref<50x50xf32, #tpu.memory_space<vmem>>, %arg4: memref<50x50xf32, #tpu.memory_space<vmem>>, %arg5: memref<3x50xf32, #tpu.memory_space<vmem>>, %arg6: memref<50x7xf32, #tpu.memory_space<vmem>>, %arg7: memref<3x384xf32, #tpu.memory_space<vmem>>) attributes {dimension_semantics = [#tpu.dimension_semantics<parallel>], iteration_bounds = array<i64: 1>, scalar_prefetch = 0 : i64, scratch_operands = 0 : i64, tpu.core_type = #tpu.core_type<tc>, window_params = [{transform_indices = @transform_0, window_bounds = array<i64: 3, 384>}, {pipeline_mode = #tpu.pipeline_mode<synchronous>, transform_indices = @transform_1, window_bounds = array<i64: 50, 3>}, {pipeline_mode = #tpu.pipeline_mode<synchronous>, transform_indices = @transform_2, window_bounds = array<i64: 50, 50>}, {pipeline_mode = #tpu.pipeline_mode<synchronous>, transform_indices = @transform_3, window_bounds = array<i64: 50, 50>}, {pipeline_mode = #tpu.pipeline_mode<synchronous>, transform_indices = @transform_4, window_bounds = array<i64: 3, 50>}, {pipeline_mode = #tpu.pipeline_mode<synchronous>, transform_indices = @transform_5, window_bounds = array<i64: 50, 7>}, {transform_indices = @transform_6, window_bounds = array<i64: 3, 384>}]} {
    %c0 = arith.constant 0 : index
    %c0_0 = arith.constant 0 : index
    %0 = vector.load %arg6[%c0, %c0_0] : memref<50x7xf32, #tpu.memory_space<vmem>>, vector<50x7xf32>
    %c0_1 = arith.constant 0 : index
    %c0_2 = arith.constant 0 : index
    %1 = vector.load %arg1[%c0_1, %c0_2] : memref<3x384xf32, #tpu.memory_space<vmem>>, vector<3x384xf32>
    %2 = vector.extract_strided_slice %0 {offsets = [0, 0], sizes = [50, 1], strides = [1, 1]} : vector<50x7xf32> to vector<50x1xf32>
    %3 = vector.extract_strided_slice %0 {offsets = [0, 3], sizes = [50, 1], strides = [1, 1]} : vector<50x7xf32> to vector<50x1xf32>
    %c0_3 = arith.constant 0 : index
    %c0_4 = arith.constant 0 : index
    %4 = vector.load %arg2[%c0_3, %c0_4] : memref<50x3xf32, #tpu.memory_space<vmem>>, vector<50x3xf32>
    %5 = vector.extract_strided_slice %4 {offsets = [0, 0], sizes = [50, 1], strides = [1, 1]} : vector<50x3xf32> to vector<50x1xf32>
    %6 = vector.extract_strided_slice %1 {offsets = [0, 0], sizes = [1, 384], strides = [1, 1]} : vector<3x384xf32> to vector<1x384xf32>
    %7 = vector.broadcast %5 : vector<50x1xf32> to vector<50x384xf32>
    %8 = vector.broadcast %6 : vector<1x384xf32> to vector<50x384xf32>
    %9 = arith.mulf %7, %8 : vector<50x384xf32>
    %10 = vector.broadcast %2 : vector<50x1xf32> to vector<50x384xf32>
    %11 = arith.addf %10, %9 : vector<50x384xf32>
    %12 = vector.extract_strided_slice %4 {offsets = [0, 1], sizes = [50, 1], strides = [1, 1]} : vector<50x3xf32> to vector<50x1xf32>
    %13 = vector.extract_strided_slice %1 {offsets = [1, 0], sizes = [1, 384], strides = [1, 1]} : vector<3x384xf32> to vector<1x384xf32>
    %14 = vector.broadcast %12 : vector<50x1xf32> to vector<50x384xf32>
    %15 = vector.broadcast %13 : vector<1x384xf32> to vector<50x384xf32>
    %16 = arith.mulf %14, %15 : vector<50x384xf32>
    %17 = arith.addf %11, %16 : vector<50x384xf32>
    %18 = vector.extract_strided_slice %4 {offsets = [0, 2], sizes = [50, 1], strides = [1, 1]} : vector<50x3xf32> to vector<50x1xf32>
    %19 = vector.extract_strided_slice %1 {offsets = [2, 0], sizes = [1, 384], strides = [1, 1]} : vector<3x384xf32> to vector<1x384xf32>
    %20 = vector.broadcast %18 : vector<50x1xf32> to vector<50x384xf32>
    %21 = vector.broadcast %19 : vector<1x384xf32> to vector<50x384xf32>
    %22 = arith.mulf %20, %21 : vector<50x384xf32>
    %23 = arith.addf %17, %22 : vector<50x384xf32>
    %24 = math.tanh %23 : vector<50x384xf32>
    %25 = vector.broadcast %3 : vector<50x1xf32> to vector<50x384xf32>
    %26 = arith.mulf %25, %23 : vector<50x384xf32>
    %27 = arith.mulf %26, %24 : vector<50x384xf32>
    %28 = arith.addf %24, %27 : vector<50x384xf32>
    %29 = vector.extract_strided_slice %0 {offsets = [0, 1], sizes = [50, 1], strides = [1, 1]} : vector<50x7xf32> to vector<50x1xf32>
    %30 = vector.extract_strided_slice %0 {offsets = [0, 4], sizes = [50, 1], strides = [1, 1]} : vector<50x7xf32> to vector<50x1xf32>
    %c0_5 = arith.constant 0 : index
    %c0_6 = arith.constant 0 : index
    %31 = vector.load %arg3[%c0_5, %c0_6] : memref<50x50xf32, #tpu.memory_space<vmem>>, vector<50x50xf32>
    %cst = arith.constant dense<0.000000e+00> : vector<50x384xf32>
    %32 = tpu.matmul %31, %28, %cst {dimension_numbers = #tpu.dot_dimension_numbers<[1], [0], [0], [1], [0, 0, 1, 1], [], []>, precision = #tpu.contract_precision<fp32>} : vector<50x50xf32>, vector<50x384xf32>, vector<50x384xf32> -> vector<50x384xf32>
    %33 = vector.broadcast %29 : vector<50x1xf32> to vector<50x384xf32>
    %34 = arith.addf %32, %33 : vector<50x384xf32>
    %35 = math.tanh %34 : vector<50x384xf32>
    %36 = vector.broadcast %30 : vector<50x1xf32> to vector<50x384xf32>
    %37 = arith.mulf %36, %34 : vector<50x384xf32>
    %38 = arith.mulf %37, %35 : vector<50x384xf32>
    %39 = arith.addf %35, %38 : vector<50x384xf32>
    %40 = vector.extract_strided_slice %0 {offsets = [0, 2], sizes = [50, 1], strides = [1, 1]} : vector<50x7xf32> to vector<50x1xf32>
    %41 = vector.extract_strided_slice %0 {offsets = [0, 5], sizes = [50, 1], strides = [1, 1]} : vector<50x7xf32> to vector<50x1xf32>
    %c0_7 = arith.constant 0 : index
    %c0_8 = arith.constant 0 : index
    %42 = vector.load %arg4[%c0_7, %c0_8] : memref<50x50xf32, #tpu.memory_space<vmem>>, vector<50x50xf32>
    %cst_9 = arith.constant dense<0.000000e+00> : vector<50x384xf32>
    %43 = tpu.matmul %42, %39, %cst_9 {dimension_numbers = #tpu.dot_dimension_numbers<[1], [0], [0], [1], [0, 0, 1, 1], [], []>, precision = #tpu.contract_precision<fp32>} : vector<50x50xf32>, vector<50x384xf32>, vector<50x384xf32> -> vector<50x384xf32>
    %44 = vector.broadcast %40 : vector<50x1xf32> to vector<50x384xf32>
    %45 = arith.addf %43, %44 : vector<50x384xf32>
    %46 = math.tanh %45 : vector<50x384xf32>
    %47 = vector.broadcast %41 : vector<50x1xf32> to vector<50x384xf32>
    %48 = arith.mulf %47, %45 : vector<50x384xf32>
    %49 = arith.mulf %48, %46 : vector<50x384xf32>
    %50 = arith.addf %46, %49 : vector<50x384xf32>
    %c0_10 = arith.constant 0 : index
    %c0_11 = arith.constant 0 : index
    %51 = vector.load %arg5[%c0_10, %c0_11] : memref<3x50xf32, #tpu.memory_space<vmem>>, vector<3x50xf32>
    %52 = vector.extract_strided_slice %0 {offsets = [0, 6], sizes = [3, 1], strides = [1, 1]} : vector<50x7xf32> to vector<3x1xf32>
    %cst_12 = arith.constant dense<0.000000e+00> : vector<3x384xf32>
    %53 = tpu.matmul %51, %50, %cst_12 {dimension_numbers = #tpu.dot_dimension_numbers<[1], [0], [0], [1], [0, 0, 1, 1], [], []>, precision = #tpu.contract_precision<fp32>} : vector<3x50xf32>, vector<50x384xf32>, vector<3x384xf32> -> vector<3x384xf32>
    %54 = vector.broadcast %52 : vector<3x1xf32> to vector<3x384xf32>
    %55 = arith.addf %53, %54 : vector<3x384xf32>
    %c0_13 = arith.constant 0 : index
    %c0_14 = arith.constant 0 : index
    %56 = vector.load %arg7[%c0_13, %c0_14] : memref<3x384xf32, #tpu.memory_space<vmem>>, vector<3x384xf32>
    tpu.vector_store %arg7[%c0_13, %c0_14], %55 {strides = array<i32>} : memref<3x384xf32, #tpu.memory_space<vmem>>, vector<3x384xf32>,
    return
  }
  func.func @transform_0(%arg0: i32) -> (i32, i32) {
    %c0_i32 = arith.constant 0 : i32
    %c0_i32_0 = arith.constant 0 : i32
    return %c0_i32, %arg0 : i32, i32
  }
  func.func @transform_1(%arg0: i32) -> (i32, i32) {
    %c0_i32 = arith.constant 0 : i32
    %c0_i32_0 = arith.constant 0 : i32
    %c0_i32_1 = arith.constant 0 : i32
    return %c0_i32, %c0_i32_0 : i32, i32
  }
  func.func @transform_2(%arg0: i32) -> (i32, i32) {
    %c0_i32 = arith.constant 0 : i32
    %c0_i32_0 = arith.constant 0 : i32
    %c0_i32_1 = arith.constant 0 : i32
    return %c0_i32, %c0_i32_0 : i32, i32
  }
  func.func @transform_3(%arg0: i32) -> (i32, i32) {
    %c0_i32 = arith.constant 0 : i32
    %c0_i32_0 = arith.constant 0 : i32
    %c0_i32_1 = arith.constant 0 : i32
    return %c0_i32, %c0_i32_0 : i32, i32
  }
  func.func @transform_4(%arg0: i32) -> (i32, i32) {
    %c0_i32 = arith.constant 0 : i32
    %c0_i32_0 = arith.constant 0 : i32
    %c0_i32_1 = arith.constant 0 : i32
    return %c0_i32, %c0_i32_0 : i32, i32
  }
  func.func @transform_5(%arg0: i32) -> (i32, i32) {
    %c0_i32 = arith.constant 0 : i32
    %c0_i32_0 = arith.constant 0 : i32
    %c0_i32_1 = arith.constant 0 : i32
    return %c0_i32, %c0_i32_0 : i32, i32
  }
  func.func @transform_6(%arg0: i32) -> (i32, i32) {
    %c0_i32 = arith.constant 0 : i32
    %c0_i32_0 = arith.constant 0 : i32
    return %c0_i32, %arg0 : i32, i32
  }
}

</mosaic_0001>

<llo_original>
// kernel: tpu_custom_call.1
$region0: #{tpu_custom_call.1}
  #allocation0 [shape = 'u32[]', space=smem, size = 0x4, offset = 0x4, fixed_abs, tag = 'smem constant byte address 0x4 - core index']
  #allocation1 [shape = 'u32[144,128]{1,0:T(1,128)}', space=vmem, size = 0x12000, scoped, tag = 'internal scratch']
  %s0 = inlined_call_operand.vmem [shape: f32[3,384], index: 0, kind: input, shape index: {}]
  %s1 = inlined_call_operand.vmem [shape: f32[50,3], index: 1, kind: input, shape index: {}]
  %s2 = inlined_call_operand.vmem [shape: f32[50,50], index: 2, kind: input, shape index: {}]
  %s3 = inlined_call_operand.vmem [shape: f32[50,50], index: 3, kind: input, shape index: {}]
  %s4 = inlined_call_operand.vmem [shape: f32[3,50], index: 4, kind: input, shape index: {}]
  %s5 = inlined_call_operand.vmem [shape: f32[50,7], index: 5, kind: input, shape index: {}]
  %s6 = inlined_call_operand.hbm [shape: f32[3,384], index: 6, kind: output, shape index: {}]
  %s7 = sld [smem:[#allocation0]]
  $region34: #{tpu_custom_call.1} parent=0
    _
  %s9 = ssub.s32 1, %s7
  %s10 = scalar_select 0, %s9, %s7
  $region1: #{tpu_custom_call.1} parent=0
    #allocation2 [shape = 'u8[6144]{0}', space=vmem, size = 0x1800, scoped, tag = 'output window, operand 0, single buffered']
    #allocation3 [shape = 's32[1]{0}', space=sflag, size = 0x4, scoped, tag = 'scoped memory for tpu_custom_call.1']
    %11 = vsyncpa [#allocation3], 0
    // Predicated region
    $region2: #{tpu_custom_call.1} parent=1 // pred_check
      _
    $region3: #{tpu_custom_call.1} parent=1 // pred_check_branch
      %13 = sbr.rel (0) target = $region5
    $region4: #{tpu_custom_call.1} parent=1 // pred_region
      _
    $region5: #{tpu_custom_call.1} parent=1 // pred_fallthru
      _
    // Predicated region
    $region6: #{tpu_custom_call.1} parent=1 // pred_check
      _
    $region7: #{tpu_custom_call.1} parent=1 // pred_check_branch
      %15 = sbr.rel (0) target = $region9
    $region8: #{tpu_custom_call.1} parent=1 // pred_region
      _
    $region9: #{tpu_custom_call.1} parent=1 // pred_fallthru
      _
    // Predicated region
    $region10: #{tpu_custom_call.1} parent=1 // pred_check
      _
    $region11: #{tpu_custom_call.1} parent=1 // pred_check_branch
      %17 = sbr.rel (0) target = $region13
    $region12: #{tpu_custom_call.1} parent=1 // pred_region
      _
    $region13: #{tpu_custom_call.1} parent=1 // pred_fallthru
      _
    // Predicated region
    $region14: #{tpu_custom_call.1} parent=1 // pred_check
      _
    $region15: #{tpu_custom_call.1} parent=1 // pred_check_branch
      %19 = sbr.rel (0) target = $region17
    $region16: #{tpu_custom_call.1} parent=1 // pred_region
      _
    $region17: #{tpu_custom_call.1} parent=1 // pred_fallthru
      _
    // Predicated region
    $region18: #{tpu_custom_call.1} parent=1 // pred_check
      _
    $region19: #{tpu_custom_call.1} parent=1 // pred_check_branch
      %21 = sbr.rel (0) target = $region21
    $region20: #{tpu_custom_call.1} parent=1 // pred_region
      _
    $region21: #{tpu_custom_call.1} parent=1 // pred_fallthru
      _
    // Predicated region
    $region22: #{tpu_custom_call.1} parent=1 // pred_check
      _
    $region23: #{tpu_custom_call.1} parent=1 // pred_check_branch
      %23 = sbr.rel (0) target = $region25
    $region24: #{tpu_custom_call.1} parent=1 // pred_region
      _
    $region25: #{tpu_custom_call.1} parent=1 // pred_fallthru
      _
    %v24 = vld [vmem:[%s5] sm:$0xff]
    %v25 = vld [vmem:[%s5 + $0x8] sm:$0xff]
    %v26 = vld [vmem:[%s5 + $0x10] sm:$0xff]
    %v27 = vld [vmem:[%s5 + $0x18] sm:$0xff]
    %v28 = vld [vmem:[%s5 + $0x20] sm:$0xff]
    %v29 = vld [vmem:[%s5 + $0x28] sm:$0xff]
    %v30 = vld [vmem:[%s5 + $0x30] sm:$0x3]
    %v31 = vld [vmem:[%s0] sm:$0x77]
    %v32 = vld [vmem:[%s0 + $0x8] sm:$0x7]
    %v33 = vld [vmem:[%s1] sm:$0xff]
    %v34 = vld [vmem:[%s1 + $0x8] sm:$0xff]
    %v35 = vld [vmem:[%s1 + $0x10] sm:$0xff]
    %v36 = vld [vmem:[%s1 + $0x18] sm:$0xff]
    %v37 = vld [vmem:[%s1 + $0x20] sm:$0xff]
    %v38 = vld [vmem:[%s1 + $0x28] sm:$0xff]
    %v39 = vld [vmem:[%s1 + $0x30] sm:$0x3]
    %41 = vset.pattern.permute.xlu0 0
    %42 = vperm.xlu0 %41, %v33
    %v43 = vpop.permute.xlu0 %42
    %46 = vset.pattern.permute.xlu0 0
    %47 = vperm.xlu0 %46, %v34
    %v48 = vpop.permute.xlu0 %47
    %51 = vset.pattern.permute.xlu0 0
    %52 = vperm.xlu0 %51, %v35
    %v53 = vpop.permute.xlu0 %52
    %56 = vset.pattern.permute.xlu0 0
    %57 = vperm.xlu0 %56, %v36
    %v58 = vpop.permute.xlu0 %57
    %61 = vset.pattern.permute.xlu0 0
    %62 = vperm.xlu0 %61, %v37
    %v63 = vpop.permute.xlu0 %62
    %66 = vset.pattern.permute.xlu0 0
    %67 = vperm.xlu0 %66, %v38
    %v68 = vpop.permute.xlu0 %67
    %71 = vset.pattern.permute.xlu0 0
    %72 = vperm.xlu0 %71, %v39
    %v73 = vpop.permute.xlu0 %72
    %v77 = vlaneseq
    %v78 = vshrl.u32 %v77, 7
    %v79 = vsub.s32 0, %v78
    %v80 = vrot.slane %v31, %v79
    %v81 = vlaneseq
    %v82 = vshrl.u32 %v81, 7
    %v83 = vsub.s32 4, %v82
    %v84 = vrot.slane %v31, %v83
    %v85 = vlaneseq
    %v86 = vshrl.u32 %v85, 7
    %v87 = vsub.s32 0, %v86
    %v88 = vrot.slane %v32, %v87
    %v92 = vlaneseq
    %v93 = vshrl.u32 %v92, 7
    %v94 = vsub.s32 0, %v93
    %v95 = vrot.slane %v80, %v94
    %v96 = vlaneseq
    %v97 = vshrl.u32 %v96, 7
    %v98 = vsub.s32 0, %v97
    %v99 = vrot.slane %v84, %v98
    %v100 = vlaneseq
    %v101 = vshrl.u32 %v100, 7
    %v102 = vsub.s32 0, %v101
    %v103 = vrot.slane %v88, %v102
    %v104 = vmul.f32 %v43, %v95
    %v105 = vmul.f32 %v43, %v99
    %v106 = vmul.f32 %v43, %v103
    %v107 = vmul.f32 %v48, %v95
    %v108 = vmul.f32 %v48, %v99
    %v109 = vmul.f32 %v48, %v103
    %v110 = vmul.f32 %v53, %v95
    %v111 = vmul.f32 %v53, %v99
    %v112 = vmul.f32 %v53, %v103
    %v113 = vmul.f32 %v58, %v95
    %v114 = vmul.f32 %v58, %v99
    %v115 = vmul.f32 %v58, %v103
    %v116 = vmul.f32 %v63, %v95
    %v117 = vmul.f32 %v63, %v99
    %v118 = vmul.f32 %v63, %v103
    %v119 = vmul.f32 %v68, %v95
    %v120 = vmul.f32 %v68, %v99
    %v121 = vmul.f32 %v68, %v103
    %v122 = vmul.f32 %v73, %v95
    %v123 = vmul.f32 %v73, %v99
    %v124 = vmul.f32 %v73, %v103
    %126 = vset.pattern.permute.xlu0 0
    %127 = vperm.xlu0 %126, %v24
    %v128 = vpop.permute.xlu0 %127
    %131 = vset.pattern.permute.xlu0 0
    %132 = vperm.xlu0 %131, %v25
    %v133 = vpop.permute.xlu0 %132
    %136 = vset.pattern.permute.xlu0 0
    %137 = vperm.xlu0 %136, %v26
    %v138 = vpop.permute.xlu0 %137
    %141 = vset.pattern.permute.xlu0 0
    %142 = vperm.xlu0 %141, %v27
    %v143 = vpop.permute.xlu0 %142
    %146 = vset.pattern.permute.xlu0 0
    %147 = vperm.xlu0 %146, %v28
    %v148 = vpop.permute.xlu0 %147
    %151 = vset.pattern.permute.xlu0 0
    %152 = vperm.xlu0 %151, %v29
    %v153 = vpop.permute.xlu0 %152
    %156 = vset.pattern.permute.xlu0 0
    %157 = vperm.xlu0 %156, %v30
    %v158 = vpop.permute.xlu0 %157
    %v160 = vadd.f32 %v128, %v104
    %v161 = vadd.f32 %v128, %v105
    %v162 = vadd.f32 %v128, %v106
    %v163 = vadd.f32 %v133, %v107
    %v164 = vadd.f32 %v133, %v108
    %v165 = vadd.f32 %v133, %v109
    %v166 = vadd.f32 %v138, %v110
    %v167 = vadd.f32 %v138, %v111
    %v168 = vadd.f32 %v138, %v112
    %v169 = vadd.f32 %v143, %v113
    %v170 = vadd.f32 %v143, %v114
    %v171 = vadd.f32 %v143, %v115
    %v172 = vadd.f32 %v148, %v116
    %v173 = vadd.f32 %v148, %v117
    %v174 = vadd.f32 %v148, %v118
    %v175 = vadd.f32 %v153, %v119
    %v176 = vadd.f32 %v153, %v120
    %v177 = vadd.f32 %v153, %v121
    %v178 = vadd.f32 %v158, %v122
    %v179 = vadd.f32 %v158, %v123
    %v180 = vadd.f32 %v158, %v124
    %181 = vset.pattern.permute.xlu0 1
    %182 = vperm.xlu0 %181, %v33
    %v183 = vpop.permute.xlu0 %182
    %185 = vset.pattern.permute.xlu0 1
    %186 = vperm.xlu0 %185, %v34
    %v187 = vpop.permute.xlu0 %186
    %189 = vset.pattern.permute.xlu0 1
    %190 = vperm.xlu0 %189, %v35
    %v191 = vpop.permute.xlu0 %190
    %193 = vset.pattern.permute.xlu0 1
    %194 = vperm.xlu0 %193, %v36
    %v195 = vpop.permute.xlu0 %194
    %197 = vset.pattern.permute.xlu0 1
    %198 = vperm.xlu0 %197, %v37
    %v199 = vpop.permute.xlu0 %198
    %201 = vset.pattern.permute.xlu0 1
    %202 = vperm.xlu0 %201, %v38
    %v203 = vpop.permute.xlu0 %202
    %205 = vset.pattern.permute.xlu0 1
    %206 = vperm.xlu0 %205, %v39
    %v207 = vpop.permute.xlu0 %206
    %v209 = vlaneseq
    %v210 = vshrl.u32 %v209, 7
    %v211 = vsub.s32 1, %v210
    %v212 = vrot.slane %v31, %v211
    %v213 = vlaneseq
    %v214 = vshrl.u32 %v213, 7
    %v215 = vsub.s32 5, %v214
    %v216 = vrot.slane %v31, %v215
    %v217 = vlaneseq
    %v218 = vshrl.u32 %v217, 7
    %v219 = vsub.s32 1, %v218
    %v220 = vrot.slane %v32, %v219
    %v224 = vlaneseq
    %v225 = vshrl.u32 %v224, 7
    %v226 = vsub.s32 1, %v225
    %v227 = vrot.slane %v212, %v226
    %v228 = vlaneseq
    %v229 = vshrl.u32 %v228, 7
    %v230 = vsub.s32 1, %v229
    %v231 = vrot.slane %v216, %v230
    %v232 = vlaneseq
    %v233 = vshrl.u32 %v232, 7
    %v234 = vsub.s32 1, %v233
    %v235 = vrot.slane %v220, %v234
    %v236 = vmul.f32 %v183, %v227
    %v237 = vmul.f32 %v183, %v231
    %v238 = vmul.f32 %v183, %v235
    %v239 = vmul.f32 %v187, %v227
    %v240 = vmul.f32 %v187, %v231
    %v241 = vmul.f32 %v187, %v235
    %v242 = vmul.f32 %v191, %v227
    %v243 = vmul.f32 %v191, %v231
    %v244 = vmul.f32 %v191, %v235
    %v245 = vmul.f32 %v195, %v227
    %v246 = vmul.f32 %v195, %v231
    %v247 = vmul.f32 %v195, %v235
    %v248 = vmul.f32 %v199, %v227
    %v249 = vmul.f32 %v199, %v231
    %v250 = vmul.f32 %v199, %v235
    %v251 = vmul.f32 %v203, %v227
    %v252 = vmul.f32 %v203, %v231
    %v253 = vmul.f32 %v203, %v235
    %v254 = vmul.f32 %v207, %v227
    %v255 = vmul.f32 %v207, %v231
    %v256 = vmul.f32 %v207, %v235
    %v257 = vadd.f32 %v160, %v236
    %v258 = vadd.f32 %v161, %v237
    %v259 = vadd.f32 %v162, %v238
    %v260 = vadd.f32 %v163, %v239
    %v261 = vadd.f32 %v164, %v240
    %v262 = vadd.f32 %v165, %v241
    %v263 = vadd.f32 %v166, %v242
    %v264 = vadd.f32 %v167, %v243
    %v265 = vadd.f32 %v168, %v244
    %v266 = vadd.f32 %v169, %v245
    %v267 = vadd.f32 %v170, %v246
    %v268 = vadd.f32 %v171, %v247
    %v269 = vadd.f32 %v172, %v248
    %v270 = vadd.f32 %v173, %v249
    %v271 = vadd.f32 %v174, %v250
    %v272 = vadd.f32 %v175, %v251
    %v273 = vadd.f32 %v176, %v252
    %v274 = vadd.f32 %v177, %v253
    %v275 = vadd.f32 %v178, %v254
    %v276 = vadd.f32 %v179, %v255
    %v277 = vadd.f32 %v180, %v256
    %278 = vset.pattern.permute.xlu0 2
    %279 = vperm.xlu0 %278, %v33
    %v280 = vpop.permute.xlu0 %279
    %282 = vset.pattern.permute.xlu0 2
    %283 = vperm.xlu0 %282, %v34
    %v284 = vpop.permute.xlu0 %283
    %286 = vset.pattern.permute.xlu0 2
    %287 = vperm.xlu0 %286, %v35
    %v288 = vpop.permute.xlu0 %287
    %290 = vset.pattern.permute.xlu0 2
    %291 = vperm.xlu0 %290, %v36
    %v292 = vpop.permute.xlu0 %291
    %294 = vset.pattern.permute.xlu0 2
    %295 = vperm.xlu0 %294, %v37
    %v296 = vpop.permute.xlu0 %295
    %298 = vset.pattern.permute.xlu0 2
    %299 = vperm.xlu0 %298, %v38
    %v300 = vpop.permute.xlu0 %299
    %302 = vset.pattern.permute.xlu0 2
    %303 = vperm.xlu0 %302, %v39
    %v304 = vpop.permute.xlu0 %303
    %v306 = vlaneseq
    %v307 = vshrl.u32 %v306, 7
    %v308 = vsub.s32 2, %v307
    %v309 = vrot.slane %v31, %v308
    %v310 = vlaneseq
    %v311 = vshrl.u32 %v310, 7
    %v312 = vsub.s32 6, %v311
    %v313 = vrot.slane %v31, %v312
    %v314 = vlaneseq
    %v315 = vshrl.u32 %v314, 7
    %v316 = vsub.s32 2, %v315
    %v317 = vrot.slane %v32, %v316
    %v321 = vlaneseq
    %v322 = vshrl.u32 %v321, 7
    %v323 = vsub.s32 2, %v322
    %v324 = vrot.slane %v309, %v323
    %v325 = vlaneseq
    %v326 = vshrl.u32 %v325, 7
    %v327 = vsub.s32 2, %v326
    %v328 = vrot.slane %v313, %v327
    %v329 = vlaneseq
    %v330 = vshrl.u32 %v329, 7
    %v331 = vsub.s32 2, %v330
    %v332 = vrot.slane %v317, %v331
    %v333 = vmul.f32 %v280, %v324
    %v334 = vmul.f32 %v280, %v328
    %v335 = vmul.f32 %v280, %v332
    %v336 = vmul.f32 %v284, %v324
    %v337 = vmul.f32 %v284, %v328
    %v338 = vmul.f32 %v284, %v332
    %v339 = vmul.f32 %v288, %v324
    %v340 = vmul.f32 %v288, %v328
    %v341 = vmul.f32 %v288, %v332
    %v342 = vmul.f32 %v292, %v324
    %v343 = vmul.f32 %v292, %v328
    %v344 = vmul.f32 %v292, %v332
    %v345 = vmul.f32 %v296, %v324
    %v346 = vmul.f32 %v296, %v328
    %v347 = vmul.f32 %v296, %v332
    %v348 = vmul.f32 %v300, %v324
    %v349 = vmul.f32 %v300, %v328
    %v350 = vmul.f32 %v300, %v332
    %v351 = vmul.f32 %v304, %v324
    %v352 = vmul.f32 %v304, %v328
    %v353 = vmul.f32 %v304, %v332
    %v354 = vadd.f32 %v257, %v333
    %v355 = vadd.f32 %v258, %v334
    %v356 = vadd.f32 %v259, %v335
    %v357 = vadd.f32 %v260, %v336
    %v358 = vadd.f32 %v261, %v337
    %v359 = vadd.f32 %v262, %v338
    %v360 = vadd.f32 %v263, %v339
    %v361 = vadd.f32 %v264, %v340
    %v362 = vadd.f32 %v265, %v341
    %v363 = vadd.f32 %v266, %v342
    %v364 = vadd.f32 %v267, %v343
    %v365 = vadd.f32 %v268, %v344
    %v366 = vadd.f32 %v269, %v345
    %v367 = vadd.f32 %v270, %v346
    %v368 = vadd.f32 %v271, %v347
    %v369 = vadd.f32 %v272, %v348
    %v370 = vadd.f32 %v273, %v349
    %v371 = vadd.f32 %v274, %v350
    %v372 = vadd.f32 %v275, %v351
    %v373 = vadd.f32 %v276, %v352
    %v374 = vadd.f32 %v277, %v353
    %v375 = vtanh.pop %v354
    %v376 = vtanh.pop %v355
    %v377 = vtanh.pop %v356
    %v378 = vtanh.pop %v357
    %v379 = vtanh.pop %v358
    %v380 = vtanh.pop %v359
    %v381 = vtanh.pop %v360
    %v382 = vtanh.pop %v361
    %v383 = vtanh.pop %v362
    %v384 = vtanh.pop %v363
    %v385 = vtanh.pop %v364
    %v386 = vtanh.pop %v365
    %v387 = vtanh.pop %v366
    %v388 = vtanh.pop %v367
    %v389 = vtanh.pop %v368
    %v390 = vtanh.pop %v369
    %v391 = vtanh.pop %v370
    %v392 = vtanh.pop %v371
    %v393 = vtanh.pop %v372
    %v394 = vtanh.pop %v373
    %v395 = vtanh.pop %v374
    %396 = vset.pattern.permute.xlu0 3
    %397 = vperm.xlu0 %396, %v24
    %v398 = vpop.permute.xlu0 %397
    %400 = vset.pattern.permute.xlu0 3
    %401 = vperm.xlu0 %400, %v25
    %v402 = vpop.permute.xlu0 %401
    %404 = vset.pattern.permute.xlu0 3
    %405 = vperm.xlu0 %404, %v26
    %v406 = vpop.permute.xlu0 %405
    %408 = vset.pattern.permute.xlu0 3
    %409 = vperm.xlu0 %408, %v27
    %v410 = vpop.permute.xlu0 %409
    %412 = vset.pattern.permute.xlu0 3
    %413 = vperm.xlu0 %412, %v28
    %v414 = vpop.permute.xlu0 %413
    %416 = vset.pattern.permute.xlu0 3
    %417 = vperm.xlu0 %416, %v29
    %v418 = vpop.permute.xlu0 %417
    %420 = vset.pattern.permute.xlu0 3
    %421 = vperm.xlu0 %420, %v30
    %v422 = vpop.permute.xlu0 %421
    %v424 = vmul.f32 %v398, %v354
    %v425 = vmul.f32 %v398, %v355
    %v426 = vmul.f32 %v398, %v356
    %v427 = vmul.f32 %v402, %v357
    %v428 = vmul.f32 %v402, %v358
    %v429 = vmul.f32 %v402, %v359
    %v430 = vmul.f32 %v406, %v360
    %v431 = vmul.f32 %v406, %v361
    %v432 = vmul.f32 %v406, %v362
    %v433 = vmul.f32 %v410, %v363
    %v434 = vmul.f32 %v410, %v364
    %v435 = vmul.f32 %v410, %v365
    %v436 = vmul.f32 %v414, %v366
    %v437 = vmul.f32 %v414, %v367
    %v438 = vmul.f32 %v414, %v368
    %v439 = vmul.f32 %v418, %v369
    %v440 = vmul.f32 %v418, %v370
    %v441 = vmul.f32 %v418, %v371
    %v442 = vmul.f32 %v422, %v372
    %v443 = vmul.f32 %v422, %v373
    %v444 = vmul.f32 %v422, %v374
    %v445 = vmul.f32 %v424, %v375
    %v446 = vmul.f32 %v425, %v376
    %v447 = vmul.f32 %v426, %v377
    %v448 = vmul.f32 %v427, %v378
    %v449 = vmul.f32 %v428, %v379
    %v450 = vmul.f32 %v429, %v380
    %v451 = vmul.f32 %v430, %v381
    %v452 = vmul.f32 %v431, %v382
    %v453 = vmul.f32 %v432, %v383
    %v454 = vmul.f32 %v433, %v384
    %v455 = vmul.f32 %v434, %v385
    %v456 = vmul.f32 %v435, %v386
    %v457 = vmul.f32 %v436, %v387
    %v458 = vmul.f32 %v437, %v388
    %v459 = vmul.f32 %v438, %v389
    %v460 = vmul.f32 %v439, %v390
    %v461 = vmul.f32 %v440, %v391
    %v462 = vmul.f32 %v441, %v392
    %v463 = vmul.f32 %v442, %v393
    %v464 = vmul.f32 %v443, %v394
    %v465 = vmul.f32 %v444, %v395
    %v466 = vadd.f32 %v375, %v445
    %v467 = vadd.f32 %v376, %v446
    %v468 = vadd.f32 %v377, %v447
    %v469 = vadd.f32 %v378, %v448
    %v470 = vadd.f32 %v379, %v449
    %v471 = vadd.f32 %v380, %v450
    %v472 = vadd.f32 %v381, %v451
    %v473 = vadd.f32 %v382, %v452
    %v474 = vadd.f32 %v383, %v453
    %v475 = vadd.f32 %v384, %v454
    %v476 = vadd.f32 %v385, %v455
    %v477 = vadd.f32 %v386, %v456
    %v478 = vadd.f32 %v387, %v457
    %v479 = vadd.f32 %v388, %v458
    %v480 = vadd.f32 %v389, %v459
    %v481 = vadd.f32 %v390, %v460
    %v482 = vadd.f32 %v391, %v461
    %v483 = vadd.f32 %v392, %v462
    %v484 = vadd.f32 %v393, %v463
    %v485 = vadd.f32 %v394, %v464
    %v486 = vadd.f32 %v395, %v465
    %v487 = vld [vmem:[%s2] sm:$0xff]
    %v488 = vld [vmem:[%s2 + $0x8] sm:$0xff]
    %v489 = vld [vmem:[%s2 + $0x10] sm:$0xff]
    %v490 = vld [vmem:[%s2 + $0x18] sm:$0xff]
    %v491 = vld [vmem:[%s2 + $0x20] sm:$0xff]
    %v492 = vld [vmem:[%s2 + $0x28] sm:$0xff]
    %v493 = vld [vmem:[%s2 + $0x30] sm:$0x3]
    %494 = vset.pattern.permute.xlu0 1
    %495 = vperm.xlu0 %494, %v24
    %v496 = vpop.permute.xlu0 %495
    %498 = vset.pattern.permute.xlu0 1
    %499 = vperm.xlu0 %498, %v25
    %v500 = vpop.permute.xlu0 %499
    %502 = vset.pattern.permute.xlu0 1
    %503 = vperm.xlu0 %502, %v26
    %v504 = vpop.permute.xlu0 %503
    %506 = vset.pattern.permute.xlu0 1
    %507 = vperm.xlu0 %506, %v27
    %v508 = vpop.permute.xlu0 %507
    %510 = vset.pattern.permute.xlu0 1
    %511 = vperm.xlu0 %510, %v28
    %v512 = vpop.permute.xlu0 %511
    %514 = vset.pattern.permute.xlu0 1
    %515 = vperm.xlu0 %514, %v29
    %v516 = vpop.permute.xlu0 %515
    %518 = vset.pattern.permute.xlu0 1
    %519 = vperm.xlu0 %518, %v30
    %v520 = vpop.permute.xlu0 %519
    %vm522 = vcmask 408576
    %v524 = vsel %vm522, %v487, 0
    %v527 = vsel %vm522, %v488, 0
    %v530 = vsel %vm522, %v489, 0
    %v533 = vsel %vm522, %v490, 0
    %v536 = vsel %vm522, %v491, 0
    %v539 = vsel %vm522, %v492, 0
    %v542 = vsel %vm522, %v493, 0
    %vm544 = vcmask 1041408
    %v546 = vsel %vm544, %v484, 0
    %v549 = vsel %vm544, %v485, 0
    %v552 = vsel %vm544, %v486, 0
    %v554 = vand.u32 %v467, 4294901760
    %555 = vmatprep.subr.mxu0 %v554
    %v556 = vand.u32 %v466, 4294901760
    %557 = vmatpush1.msra.mxu0 %v556
    %v558 = vand.u32 %v470, 4294901760
    %559 = vmatprep.subr.mxu0 %v558
    %v560 = vand.u32 %v469, 4294901760
    %561 = vmatpush1.msra.mxu0 %v560
    %v562 = vand.u32 %v473, 4294901760
    %563 = vmatprep.subr.mxu0 %v562
    %v564 = vand.u32 %v472, 4294901760
    %565 = vmatpush1.msra.mxu0 %v564
    %v566 = vand.u32 %v476, 4294901760
    %567 = vmatprep.subr.mxu0 %v566
    %v568 = vand.u32 %v475, 4294901760
    %569 = vmatpush1.msra.mxu0 %v568
    %v570 = vand.u32 %v479, 4294901760
    %571 = vmatprep.subr.mxu0 %v570
    %v572 = vand.u32 %v478, 4294901760
    %573 = vmatpush1.msra.mxu0 %v572
    %v574 = vand.u32 %v482, 4294901760
    %575 = vmatprep.subr.mxu0 %v574
    %v576 = vand.u32 %v481, 4294901760
    %577 = vmatpush1.msra.mxu0 %v576
    %v578 = vand.u32 %v549, 4294901760
    %579 = vmatprep.subr.mxu0 %v578
    %v580 = vand.u32 %v546, 4294901760
    %581 = vmatpush1.msra.mxu0 %v580
    %582 = vmatprep.subr.mxu0 0.0
    %583 = vmatpush1.msra.mxu0 0.0
    %584 = vmatprep.subr.mxu0 0.0
    %585 = vmatpush1.msra.mxu0 0.0
    %586 = vmatprep.subr.mxu0 0.0
    %587 = vmatpush1.msra.mxu0 0.0
    %588 = vmatprep.subr.mxu0 0.0
    %589 = vmatpush1.msra.mxu0 0.0
    %590 = vmatprep.subr.mxu0 0.0
    %591 = vmatpush1.msra.mxu0 0.0
    %592 = vmatprep.subr.mxu0 0.0
    %593 = vmatpush1.msra.mxu0 0.0
    %594 = vmatprep.subr.mxu0 0.0
    %595 = vmatpush1.msra.mxu0 0.0
    %596 = vmatprep.subr.mxu0 0.0
    %597 = vmatpush1.msra.mxu0 0.0
    %598 = vmatprep.subr.mxu0 0.0
    %599 = vmatpush1.msra.mxu0 0.0
    %600 = vmatprep.subr.mxu0 0.0
    %601 = vmatpush1.msra.mxu0 0.0
    %602 = vmatprep.subr.mxu0 0.0
    %603 = vmatpush1.msra.mxu0 0.0
    %604 = vmatprep.subr.mxu0 0.0
    %605 = vmatpush1.msra.mxu0 0.0
    %606 = vmatprep.subr.mxu0 0.0
    %607 = vmatpush1.msra.mxu0 0.0
    %608 = vmatprep.subr.mxu0 0.0
    %609 = vmatpush1.msra.mxu0 0.0
    %610 = vmatprep.subr.mxu0 0.0
    %611 = vmatpush1.msra.mxu0 0.0
    %612 = vmatprep.subr.mxu0 0.0
    %613 = vmatpush1.msra.mxu0 0.0
    %614 = vmatprep.subr.mxu0 0.0
    %615 = vmatpush1.msra.mxu0 0.0
    %616 = vmatprep.subr.mxu0 0.0
    %617 = vmatpush1.msra.mxu0 0.0
    %618 = vmatprep.subr.mxu0 0.0
    %619 = vmatpush1.msra.mxu0 0.0
    %620 = vmatprep.subr.mxu0 0.0
    %621 = vmatpush1.msra.mxu0 0.0
    %622 = vmatprep.subr.mxu0 0.0
    %623 = vmatpush1.msra.mxu0 0.0
    %624 = vmatprep.subr.mxu0 0.0
    %625 = vmatpush1.msra.mxu0 0.0
    %626 = vmatprep.subr.mxu0 0.0
    %627 = vmatpush1.msra.mxu0 0.0
    %628 = vmatprep.subr.mxu0 0.0
    %629 = vmatpush1.msra.mxu0 0.0
    %630 = vmatprep.subr.mxu0 0.0
    %631 = vmatpush1.msra.mxu0 0.0
    %632 = vmatprep.mubr.f32.mxu0 0.0
    %v633 = vand.u32 %v524, 4294901760
    %v634 = vsub.f32 %v524, %v633
    %v635 = vand.u32 %v634, 4294901760
    %v636 = vsub.f32 %v634, %v635
    %v637 = vand.u32 %v636, 4294901760
    %638 = vmatmul.mubr.f32.gmra.mrb[0].mxu0 %v637
    %v639 = vpop.f32.mrb[0].mxu0
    %v640 = vadd.f32 %v496, %v639
    %v641 = vpop.f32.mrb[0].mxu0
    %v642 = vadd.f32 %v496, %v641
    %643 = vmatprep.mubr.f32.mxu0 0.0
    %v644 = vand.u32 %v527, 4294901760
    %v645 = vsub.f32 %v527, %v644
    %v646 = vand.u32 %v645, 4294901760
    %v647 = vsub.f32 %v645, %v646
    %v648 = vand.u32 %v647, 4294901760
    %649 = vmatmul.mubr.f32.gmra.mrb[0].mxu0 %v648
    %v650 = vpop.f32.mrb[0].mxu0
    %v651 = vadd.f32 %v500, %v650
    %v652 = vpop.f32.mrb[0].mxu0
    %v653 = vadd.f32 %v500, %v652
    %654 = vmatprep.mubr.f32.mxu0 0.0
    %v655 = vand.u32 %v530, 4294901760
    %v656 = vsub.f32 %v530, %v655
    %v657 = vand.u32 %v656, 4294901760
    %v658 = vsub.f32 %v656, %v657
    %v659 = vand.u32 %v658, 4294901760
    %660 = vmatmul.mubr.f32.gmra.mrb[0].mxu0 %v659
    %v661 = vpop.f32.mrb[0].mxu0
    %v662 = vadd.f32 %v504, %v661
    %v663 = vpop.f32.mrb[0].mxu0
    %v664 = vadd.f32 %v504, %v663
    %665 = vmatprep.mubr.f32.mxu0 0.0
    %v666 = vand.u32 %v533, 4294901760
    %v667 = vsub.f32 %v533, %v666
    %v668 = vand.u32 %v667, 4294901760
    %v669 = vsub.f32 %v667, %v668
    %v670 = vand.u32 %v669, 4294901760
    %671 = vmatmul.mubr.f32.gmra.mrb[0].mxu0 %v670
    %v672 = vpop.f32.mrb[0].mxu0
    %v673 = vadd.f32 %v508, %v672
    %v674 = vpop.f32.mrb[0].mxu0
    %v675 = vadd.f32 %v508, %v674
    %676 = vmatprep.mubr.f32.mxu0 0.0
    %v677 = vand.u32 %v536, 4294901760
    %v678 = vsub.f32 %v536, %v677
    %v679 = vand.u32 %v678, 4294901760
    %v680 = vsub.f32 %v678, %v679
    %v681 = vand.u32 %v680, 4294901760
    %682 = vmatmul.mubr.f32.gmra.mrb[0].mxu0 %v681
    %v683 = vpop.f32.mrb[0].mxu0
    %v684 = vadd.f32 %v512, %v683
    %v685 = vpop.f32.mrb[0].mxu0
    %v686 = vadd.f32 %v512, %v685
    %687 = vmatprep.mubr.f32.mxu0 0.0
    %v688 = vand.u32 %v539, 4294901760
    %v689 = vsub.f32 %v539, %v688
    %v690 = vand.u32 %v689, 4294901760
    %v691 = vsub.f32 %v689, %v690
    %v692 = vand.u32 %v691, 4294901760
    %693 = vmatmul.mubr.f32.gmra.mrb[0].mxu0 %v692
    %v694 = vpop.f32.mrb[0].mxu0
    %v695 = vadd.f32 %v516, %v694
    %v696 = vpop.f32.mrb[0].mxu0
    %v697 = vadd.f32 %v516, %v696
    %698 = vmatprep.mubr.f32.mxu0 0.0
    %v699 = vand.u32 %v542, 4294901760
    %v700 = vsub.f32 %v542, %v699
    %v701 = vand.u32 %v700, 4294901760
    %v702 = vsub.f32 %v700, %v701
    %v703 = vand.u32 %v702, 4294901760
    %704 = vmatmul.mubr.f32.gmra.mrb[0].mxu0 %v703
    %v705 = vpop.f32.mrb[0].mxu0
    %v706 = vadd.f32 %v520, %v705
    %v707 = vpop.f32.mrb[0].mxu0
    %v708 = vadd.f32 %v520, %v707
    %709 = vdwg.mxu0
    %v710 = vand.u32 %v467, 4294901760
    %v711 = vsub.f32 %v467, %v710
    %v712 = vand.u32 %v711, 4294901760
    %v713 = vsub.f32 %v711, %v712
    %v714 = vand.u32 %v713, 4294901760
    %715 = vmatprep.subr.mxu0 %v714
    %v716 = vand.u32 %v466, 4294901760
    %v717 = vsub.f32 %v466, %v716
    %v718 = vand.u32 %v717, 4294901760
    %v719 = vsub.f32 %v717, %v718
    %v720 = vand.u32 %v719, 4294901760
    %721 = vmatpush1.msra.mxu0 %v720
    %v722 = vand.u32 %v470, 4294901760
    %v723 = vsub.f32 %v470, %v722
    %v724 = vand.u32 %v723, 4294901760
    %v725 = vsub.f32 %v723, %v724
    %v726 = vand.u32 %v725, 4294901760
    %727 = vmatprep.subr.mxu0 %v726
    %v728 = vand.u32 %v469, 4294901760
    %v729 = vsub.f32 %v469, %v728
    %v730 = vand.u32 %v729, 4294901760
    %v731 = vsub.f32 %v729, %v730
    %v732 = vand.u32 %v731, 4294901760
    %733 = vmatpush1.msra.mxu0 %v732
    %v734 = vand.u32 %v473, 4294901760
    %v735 = vsub.f32 %v473, %v734
    %v736 = vand.u32 %v735, 4294901760
    %v737 = vsub.f32 %v735, %v736
    %v738 = vand.u32 %v737, 4294901760
    %739 = vmatprep.subr.mxu0 %v738
    %v740 = vand.u32 %v472, 4294901760
    %v741 = vsub.f32 %v472, %v740
    %v742 = vand.u32 %v741, 4294901760
    %v743 = vsub.f32 %v741, %v742
    %v744 = vand.u32 %v743, 4294901760
    %745 = vmatpush1.msra.mxu0 %v744
    %v746 = vand.u32 %v476, 4294901760
    %v747 = vsub.f32 %v476, %v746
    %v748 = vand.u32 %v747, 4294901760
    %v749 = vsub.f32 %v747, %v748
    %v750 = vand.u32 %v749, 4294901760
    %751 = vmatprep.subr.mxu0 %v750
    %v752 = vand.u32 %v475, 4294901760
    %v753 = vsub.f32 %v475, %v752
    %v754 = vand.u32 %v753, 4294901760
    %v755 = vsub.f32 %v753, %v754
    %v756 = vand.u32 %v755, 4294901760
    %757 = vmatpush1.msra.mxu0 %v756
    %v758 = vand.u32 %v479, 4294901760
    %v759 = vsub.f32 %v479, %v758
    %v760 = vand.u32 %v759, 4294901760
    %v761 = vsub.f32 %v759, %v760
    %v762 = vand.u32 %v761, 4294901760
    %763 = vmatprep.subr.mxu0 %v762
    %v764 = vand.u32 %v478, 4294901760
    %v765 = vsub.f32 %v478, %v764
    %v766 = vand.u32 %v765, 4294901760
    %v767 = vsub.f32 %v765, %v766
    %v768 = vand.u32 %v767, 4294901760
    %769 = vmatpush1.msra.mxu0 %v768
    %v770 = vand.u32 %v482, 4294901760
    %v771 = vsub.f32 %v482, %v770
    %v772 = vand.u32 %v771, 4294901760
    %v773 = vsub.f32 %v771, %v772
    %v774 = vand.u32 %v773, 4294901760
    %775 = vmatprep.subr.mxu0 %v774
    %v776 = vand.u32 %v481, 4294901760
    %v777 = vsub.f32 %v481, %v776
    %v778 = vand.u32 %v777, 4294901760
    %v779 = vsub.f32 %v777, %v778
    %v780 = vand.u32 %v779, 4294901760
    %781 = vmatpush1.msra.mxu0 %v780
    %v782 = vand.u32 %v549, 4294901760
    %v783 = vsub.f32 %v549, %v782
    %v784 = vand.u32 %v783, 4294901760
    %v785 = vsub.f32 %v783, %v784
    %v786 = vand.u32 %v785, 4294901760
    %787 = vmatprep.subr.mxu0 %v786
    %v788 = vand.u32 %v546, 4294901760
    %v789 = vsub.f32 %v546, %v788
    %v790 = vand.u32 %v789, 4294901760
    %v791 = vsub.f32 %v789, %v790
    %v792 = vand.u32 %v791, 4294901760
    %793 = vmatpush1.msra.mxu0 %v792
    %794 = vmatprep.subr.mxu0 0.0
    %795 = vmatpush1.msra.mxu0 0.0
    %796 = vmatprep.subr.mxu0 0.0
    %797 = vmatpush1.msra.mxu0 0.0
    %798 = vmatprep.subr.mxu0 0.0
    %799 = vmatpush1.msra.mxu0 0.0
    %800 = vmatprep.subr.mxu0 0.0
    %801 = vmatpush1.msra.mxu0 0.0
    %802 = vmatprep.subr.mxu0 0.0
    %803 = vmatpush1.msra.mxu0 0.0
    %804 = vmatprep.subr.mxu0 0.0
    %805 = vmatpush1.msra.mxu0 0.0
    %806 = vmatprep.subr.mxu0 0.0
    %807 = vmatpush1.msra.mxu0 0.0
    %808 = vmatprep.subr.mxu0 0.0
    %809 = vmatpush1.msra.mxu0 0.0
    %810 = vmatprep.subr.mxu0 0.0
    %811 = vmatpush1.msra.mxu0 0.0
    %812 = vmatprep.subr.mxu0 0.0
    %813 = vmatpush1.msra.mxu0 0.0
    %814 = vmatprep.subr.mxu0 0.0
    %815 = vmatpush1.msra.mxu0 0.0
    %816 = vmatprep.subr.mxu0 0.0
    %817 = vmatpush1.msra.mxu0 0.0
    %818 = vmatprep.subr.mxu0 0.0
    %819 = vmatpush1.msra.mxu0 0.0
    %820 = vmatprep.subr.mxu0 0.0
    %821 = vmatpush1.msra.mxu0 0.0
    %822 = vmatprep.subr.mxu0 0.0
    %823 = vmatpush1.msra.mxu0 0.0
    %824 = vmatprep.subr.mxu0 0.0
    %825 = vmatpush1.msra.mxu0 0.0
    %826 = vmatprep.subr.mxu0 0.0
    %827 = vmatpush1.msra.mxu0 0.0
    %828 = vmatprep.subr.mxu0 0.0
    %829 = vmatpush1.msra.mxu0 0.0
    %830 = vmatprep.subr.mxu0 0.0
    %831 = vmatpush1.msra.mxu0 0.0
    %832 = vmatprep.subr.mxu0 0.0
    %833 = vmatpush1.msra.mxu0 0.0
    %834 = vmatprep.subr.mxu0 0.0
    %835 = vmatpush1.msra.mxu0 0.0
    %836 = vmatprep.subr.mxu0 0.0
    %837 = vmatpush1.msra.mxu0 0.0
    %838 = vmatprep.subr.mxu0 0.0
    %839 = vmatpush1.msra.mxu0 0.0
    %840 = vmatprep.subr.mxu0 0.0
    %841 = vmatpush1.msra.mxu0 0.0
    %842 = vmatprep.subr.mxu0 0.0
    %843 = vmatpush1.msra.mxu0 0.0
    %844 = vmatprep.mubr.f32.mxu0 0.0
    %v845 = vand.u32 %v524, 4294901760
    %846 = vmatmul.mubr.f32.gmra.mrb[0].mxu0 %v845
    %v847 = vpop.f32.mrb[0].mxu0
    %v848 = vadd.f32 %v640, %v847
    %v849 = vpop.f32.mrb[0].mxu0
    %v850 = vadd.f32 %v642, %v849
    %851 = vmatprep.mubr.f32.mxu0 0.0
    %v852 = vand.u32 %v527, 4294901760
    %853 = vmatmul.mubr.f32.gmra.mrb[0].mxu0 %v852
    %v854 = vpop.f32.mrb[0].mxu0
    %v855 = vadd.f32 %v651, %v854
    %v856 = vpop.f32.mrb[0].mxu0
    %v857 = vadd.f32 %v653, %v856
    %858 = vmatprep.mubr.f32.mxu0 0.0
    %v859 = vand.u32 %v530, 4294901760
    %860 = vmatmul.mubr.f32.gmra.mrb[0].mxu0 %v859
    %v861 = vpop.f32.mrb[0].mxu0
    %v862 = vadd.f32 %v662, %v861
    %v863 = vpop.f32.mrb[0].mxu0
    %v864 = vadd.f32 %v664, %v863
    %865 = vmatprep.mubr.f32.mxu0 0.0
    %v866 = vand.u32 %v533, 4294901760
    %867 = vmatmul.mubr.f32.gmra.mrb[0].mxu0 %v866
    %v868 = vpop.f32.mrb[0].mxu0
    %v869 = vadd.f32 %v673, %v868
    %v870 = vpop.f32.mrb[0].mxu0
    %v871 = vadd.f32 %v675, %v870
    %872 = vmatprep.mubr.f32.mxu0 0.0
    %v873 = vand.u32 %v536, 4294901760
    %874 = vmatmul.mubr.f32.gmra.mrb[0].mxu0 %v873
    %v875 = vpop.f32.mrb[0].mxu0
    %v876 = vadd.f32 %v684, %v875
    %v877 = vpop.f32.mrb[0].mxu0
    %v878 = vadd.f32 %v686, %v877
    %879 = vmatprep.mubr.f32.mxu0 0.0
    %v880 = vand.u32 %v539, 4294901760
    %881 = vmatmul.mubr.f32.gmra.mrb[0].mxu0 %v880
    %v882 = vpop.f32.mrb[0].mxu0
    %v883 = vadd.f32 %v695, %v882
    %v884 = vpop.f32.mrb[0].mxu0
    %v885 = vadd.f32 %v697, %v884
    %886 = vmatprep.mubr.f32.mxu0 0.0
    %v887 = vand.u32 %v542, 4294901760
    %888 = vmatmul.mubr.f32.gmra.mrb[0].mxu0 %v887
    %v889 = vpop.f32.mrb[0].mxu0
    %v890 = vadd.f32 %v706, %v889
    %v891 = vpop.f32.mrb[0].mxu0
    %v892 = vadd.f32 %v708, %v891
    %893 = vdwg.mxu0
    %v894 = vand.u32 %v467, 4294901760
    %v895 = vsub.f32 %v467, %v894
    %896 = vmatprep.subr.mxu0 %v895
    %v897 = vand.u32 %v466, 4294901760
    %v898 = vsub.f32 %v466, %v897
    %899 = vmatpush1.msra.mxu0 %v898
    %v900 = vand.u32 %v470, 4294901760
    %v901 = vsub.f32 %v470, %v900
    %902 = vmatprep.subr.mxu0 %v901
    %v903 = vand.u32 %v469, 4294901760
    %v904 = vsub.f32 %v469, %v903
    %905 = vmatpush1.msra.mxu0 %v904
    %v906 = vand.u32 %v473, 4294901760
    %v907 = vsub.f32 %v473, %v906
    %908 = vmatprep.subr.mxu0 %v907
    %v909 = vand.u32 %v472, 4294901760
    %v910 = vsub.f32 %v472, %v909
    %911 = vmatpush1.msra.mxu0 %v910
    %v912 = vand.u32 %v476, 4294901760
    %v913 = vsub.f32 %v476, %v912
    %914 = vmatprep.subr.mxu0 %v913
    %v915 = vand.u32 %v475, 4294901760
    %v916 = vsub.f32 %v475, %v915
    %917 = vmatpush1.msra.mxu0 %v916
    %v918 = vand.u32 %v479, 4294901760
    %v919 = vsub.f32 %v479, %v918
    %920 = vmatprep.subr.mxu0 %v919
    %v921 = vand.u32 %v478, 4294901760
    %v922 = vsub.f32 %v478, %v921
    %923 = vmatpush1.msra.mxu0 %v922
    %v924 = vand.u32 %v482, 4294901760
    %v925 = vsub.f32 %v482, %v924
    %926 = vmatprep.subr.mxu0 %v925
    %v927 = vand.u32 %v481, 4294901760
    %v928 = vsub.f32 %v481, %v927
    %929 = vmatpush1.msra.mxu0 %v928
    %v930 = vand.u32 %v549, 4294901760
    %v931 = vsub.f32 %v549, %v930
    %932 = vmatprep.subr.mxu0 %v931
    %v933 = vand.u32 %v546, 4294901760
    %v934 = vsub.f32 %v546, %v933
    %935 = vmatpush1.msra.mxu0 %v934
    %936 = vmatprep.subr.mxu0 0.0
    %937 = vmatpush1.msra.mxu0 0.0
    %938 = vmatprep.subr.mxu0 0.0
    %939 = vmatpush1.msra.mxu0 0.0
    %940 = vmatprep.subr.mxu0 0.0
    %941 = vmatpush1.msra.mxu0 0.0
    %942 = vmatprep.subr.mxu0 0.0
    %943 = vmatpush1.msra.mxu0 0.0
    %944 = vmatprep.subr.mxu0 0.0
    %945 = vmatpush1.msra.mxu0 0.0
    %946 = vmatprep.subr.mxu0 0.0
    %947 = vmatpush1.msra.mxu0 0.0
    %948 = vmatprep.subr.mxu0 0.0
    %949 = vmatpush1.msra.mxu0 0.0
    %950 = vmatprep.subr.mxu0 0.0
    %951 = vmatpush1.msra.mxu0 0.0
    %952 = vmatprep.subr.mxu0 0.0
    %953 = vmatpush1.msra.mxu0 0.0
    %954 = vmatprep.subr.mxu0 0.0
    %955 = vmatpush1.msra.mxu0 0.0
    %956 = vmatprep.subr.mxu0 0.0
    %957 = vmatpush1.msra.mxu0 0.0
    %958 = vmatprep.subr.mxu0 0.0
    %959 = vmatpush1.msra.mxu0 0.0
    %960 = vmatprep.subr.mxu0 0.0
    %961 = vmatpush1.msra.mxu0 0.0
    %962 = vmatprep.subr.mxu0 0.0
    %963 = vmatpush1.msra.mxu0 0.0
    %964 = vmatprep.subr.mxu0 0.0
    %965 = vmatpush1.msra.mxu0 0.0
    %966 = vmatprep.subr.mxu0 0.0
    %967 = vmatpush1.msra.mxu0 0.0
    %968 = vmatprep.subr.mxu0 0.0
    %969 = vmatpush1.msra.mxu0 0.0
    %970 = vmatprep.subr.mxu0 0.0
    %971 = vmatpush1.msra.mxu0 0.0
    %972 = vmatprep.subr.mxu0 0.0
    %973 = vmatpush1.msra.mxu0 0.0
    %974 = vmatprep.subr.mxu0 0.0
    %975 = vmatpush1.msra.mxu0 0.0
    %976 = vmatprep.subr.mxu0 0.0
    %977 = vmatpush1.msra.mxu0 0.0
    %978 = vmatprep.subr.mxu0 0.0
    %979 = vmatpush1.msra.mxu0 0.0
    %980 = vmatprep.subr.mxu0 0.0
    %981 = vmatpush1.msra.mxu0 0.0
    %982 = vmatprep.subr.mxu0 0.0
    %983 = vmatpush1.msra.mxu0 0.0
    %984 = vmatprep.subr.mxu0 0.0
    %985 = vmatpush1.msra.mxu0 0.0
    %986 = vmatprep.mubr.f32.mxu0 0.0
    %v987 = vand.u32 %v524, 4294901760
    %v988 = vsub.f32 %v524, %v987
    %989 = vmatmul.mubr.f32.gmra.mrb[0].mxu0 %v988
    %v990 = vpop.f32.mrb[0].mxu0
    %v991 = vadd.f32 %v848, %v990
    %v992 = vpop.f32.mrb[0].mxu0
    %v993 = vadd.f32 %v850, %v992
    %994 = vmatprep.mubr.f32.mxu0 0.0
    %v995 = vand.u32 %v527, 4294901760
    %v996 = vsub.f32 %v527, %v995
    %997 = vmatmul.mubr.f32.gmra.mrb[0].mxu0 %v996
    %v998 = vpop.f32.mrb[0].mxu0
    %v999 = vadd.f32 %v855, %v998
    %v1000 = vpop.f32.mrb[0].mxu0
    %v1001 = vadd.f32 %v857, %v1000
    %1002 = vmatprep.mubr.f32.mxu0 0.0
    %v1003 = vand.u32 %v530, 4294901760
    %v1004 = vsub.f32 %v530, %v1003
    %1005 = vmatmul.mubr.f32.gmra.mrb[0].mxu0 %v1004
    %v1006 = vpop.f32.mrb[0].mxu0
    %v1007 = vadd.f32 %v862, %v1006
    %v1008 = vpop.f32.mrb[0].mxu0
    %v1009 = vadd.f32 %v864, %v1008
    %1010 = vmatprep.mubr.f32.mxu0 0.0
    %v1011 = vand.u32 %v533, 4294901760
    %v1012 = vsub.f32 %v533, %v1011
    %1013 = vmatmul.mubr.f32.gmra.mrb[0].mxu0 %v1012
    %v1014 = vpop.f32.mrb[0].mxu0
    %v1015 = vadd.f32 %v869, %v1014
    %v1016 = vpop.f32.mrb[0].mxu0
    %v1017 = vadd.f32 %v871, %v1016
    %1018 = vmatprep.mubr.f32.mxu0 0.0
    %v1019 = vand.u32 %v536, 4294901760
    %v1020 = vsub.f32 %v536, %v1019
    %1021 = vmatmul.mubr.f32.gmra.mrb[0].mxu0 %v1020
    %v1022 = vpop.f32.mrb[0].mxu0
    %v1023 = vadd.f32 %v876, %v1022
    %v1024 = vpop.f32.mrb[0].mxu0
    %v1025 = vadd.f32 %v878, %v1024
    %1026 = vmatprep.mubr.f32.mxu0 0.0
    %v1027 = vand.u32 %v539, 4294901760
    %v1028 = vsub.f32 %v539, %v1027
    %1029 = vmatmul.mubr.f32.gmra.mrb[0].mxu0 %v1028
    %v1030 = vpop.f32.mrb[0].mxu0
    %v1031 = vadd.f32 %v883, %v1030
    %v1032 = vpop.f32.mrb[0].mxu0
    %v1033 = vadd.f32 %v885, %v1032
    %1034 = vmatprep.mubr.f32.mxu0 0.0
    %v1035 = vand.u32 %v542, 4294901760
    %v1036 = vsub.f32 %v542, %v1035
    %1037 = vmatmul.mubr.f32.gmra.mrb[0].mxu0 %v1036
    %v1038 = vpop.f32.mrb[0].mxu0
    %v1039 = vadd.f32 %v890, %v1038
    %v1040 = vpop.f32.mrb[0].mxu0
    %v1041 = vadd.f32 %v892, %v1040
    %1042 = vdwg.mxu0
    %v1043 = vand.u32 %v467, 4294901760
    %1044 = vmatprep.subr.mxu0 %v1043
    %v1045 = vand.u32 %v466, 4294901760
    %1046 = vmatpush1.msra.mxu0 %v1045
    %v1047 = vand.u32 %v470, 4294901760
    %1048 = vmatprep.subr.mxu0 %v1047
    %v1049 = vand.u32 %v469, 4294901760
    %1050 = vmatpush1.msra.mxu0 %v1049
    %v1051 = vand.u32 %v473, 4294901760
    %1052 = vmatprep.subr.mxu0 %v1051
    %v1053 = vand.u32 %v472, 4294901760
    %1054 = vmatpush1.msra.mxu0 %v1053
    %v1055 = vand.u32 %v476, 4294901760
    %1056 = vmatprep.subr.mxu0 %v1055
    %v1057 = vand.u32 %v475, 4294901760
    %1058 = vmatpush1.msra.mxu0 %v1057
    %v1059 = vand.u32 %v479, 4294901760
    %1060 = vmatprep.subr.mxu0 %v1059
    %v1061 = vand.u32 %v478, 4294901760
    %1062 = vmatpush1.msra.mxu0 %v1061
    %v1063 = vand.u32 %v482, 4294901760
    %1064 = vmatprep.subr.mxu0 %v1063
    %v1065 = vand.u32 %v481, 4294901760
    %1066 = vmatpush1.msra.mxu0 %v1065
    %v1067 = vand.u32 %v549, 4294901760
    %1068 = vmatprep.subr.mxu0 %v1067
    %v1069 = vand.u32 %v546, 4294901760
    %1070 = vmatpush1.msra.mxu0 %v1069
    %1071 = vmatprep.subr.mxu0 0.0
    %1072 = vmatpush1.msra.mxu0 0.0
    %1073 = vmatprep.subr.mxu0 0.0
    %1074 = vmatpush1.msra.mxu0 0.0
    %1075 = vmatprep.subr.mxu0 0.0
    %1076 = vmatpush1.msra.mxu0 0.0
    %1077 = vmatprep.subr.mxu0 0.0
    %1078 = vmatpush1.msra.mxu0 0.0
    %1079 = vmatprep.subr.mxu0 0.0
    %1080 = vmatpush1.msra.mxu0 0.0
    %1081 = vmatprep.subr.mxu0 0.0
    %1082 = vmatpush1.msra.mxu0 0.0
    %1083 = vmatprep.subr.mxu0 0.0
    %1084 = vmatpush1.msra.mxu0 0.0
    %1085 = vmatprep.subr.mxu0 0.0
    %1086 = vmatpush1.msra.mxu0 0.0
    %1087 = vmatprep.subr.mxu0 0.0
    %1088 = vmatpush1.msra.mxu0 0.0
    %1089 = vmatprep.subr.mxu0 0.0
    %1090 = vmatpush1.msra.mxu0 0.0
    %1091 = vmatprep.subr.mxu0 0.0
    %1092 = vmatpush1.msra.mxu0 0.0
    %1093 = vmatprep.subr.mxu0 0.0
    %1094 = vmatpush1.msra.mxu0 0.0
    %1095 = vmatprep.subr.mxu0 0.0
    %1096 = vmatpush1.msra.mxu0 0.0
    %1097 = vmatprep.subr.mxu0 0.0
    %1098 = vmatpush1.msra.mxu0 0.0
    %1099 = vmatprep.subr.mxu0 0.0
    %1100 = vmatpush1.msra.mxu0 0.0
    %1101 = vmatprep.subr.mxu0 0.0
    %1102 = vmatpush1.msra.mxu0 0.0
    %1103 = vmatprep.subr.mxu0 0.0
    %1104 = vmatpush1.msra.mxu0 0.0
    %1105 = vmatprep.subr.mxu0 0.0
    %1106 = vmatpush1.msra.mxu0 0.0
    %1107 = vmatprep.subr.mxu0 0.0
    %1108 = vmatpush1.msra.mxu0 0.0
    %1109 = vmatprep.subr.mxu0 0.0
    %1110 = vmatpush1.msra.mxu0 0.0
    %1111 = vmatprep.subr.mxu0 0.0
    %1112 = vmatpush1.msra.mxu0 0.0
    %1113 = vmatprep.subr.mxu0 0.0
    %1114 = vmatpush1.msra.mxu0 0.0
    %1115 = vmatprep.subr.mxu0 0.0
    %1116 = vmatpush1.msra.mxu0 0.0
    %1117 = vmatprep.subr.mxu0 0.0
    %1118 = vmatpush1.msra.mxu0 0.0
    %1119 = vmatprep.subr.mxu0 0.0
    %1120 = vmatpush1.msra.mxu0 0.0
    %1121 = vmatprep.mubr.f32.mxu0 0.0
    %v1122 = vand.u32 %v524, 4294901760
    %v1123 = vsub.f32 %v524, %v1122
    %v1124 = vand.u32 %v1123, 4294901760
    %1125 = vmatmul.mubr.f32.gmra.mrb[0].mxu0 %v1124
    %v1126 = vpop.f32.mrb[0].mxu0
    %v1127 = vadd.f32 %v991, %v1126
    %v1128 = vpop.f32.mrb[0].mxu0
    %v1129 = vadd.f32 %v993, %v1128
    %1130 = vmatprep.mubr.f32.mxu0 0.0
    %v1131 = vand.u32 %v527, 4294901760
    %v1132 = vsub.f32 %v527, %v1131
    %v1133 = vand.u32 %v1132, 4294901760
    %1134 = vmatmul.mubr.f32.gmra.mrb[0].mxu0 %v1133
    %v1135 = vpop.f32.mrb[0].mxu0
    %v1136 = vadd.f32 %v999, %v1135
    %v1137 = vpop.f32.mrb[0].mxu0
    %v1138 = vadd.f32 %v1001, %v1137
    %1139 = vmatprep.mubr.f32.mxu0 0.0
    %v1140 = vand.u32 %v530, 4294901760
    %v1141 = vsub.f32 %v530, %v1140
    %v1142 = vand.u32 %v1141, 4294901760
    %1143 = vmatmul.mubr.f32.gmra.mrb[0].mxu0 %v1142
    %v1144 = vpop.f32.mrb[0].mxu0
    %v1145 = vadd.f32 %v1007, %v1144
    %v1146 = vpop.f32.mrb[0].mxu0
    %v1147 = vadd.f32 %v1009, %v1146
    %1148 = vmatprep.mubr.f32.mxu0 0.0
    %v1149 = vand.u32 %v533, 4294901760
    %v1150 = vsub.f32 %v533, %v1149
    %v1151 = vand.u32 %v1150, 4294901760
    %1152 = vmatmul.mubr.f32.gmra.mrb[0].mxu0 %v1151
    %v1153 = vpop.f32.mrb[0].mxu0
    %v1154 = vadd.f32 %v1015, %v1153
    %v1155 = vpop.f32.mrb[0].mxu0
    %v1156 = vadd.f32 %v1017, %v1155
    %1157 = vmatprep.mubr.f32.mxu0 0.0
    %v1158 = vand.u32 %v536, 4294901760
    %v1159 = vsub.f32 %v536, %v1158
    %v1160 = vand.u32 %v1159, 4294901760
    %1161 = vmatmul.mubr.f32.gmra.mrb[0].mxu0 %v1160
    %v1162 = vpop.f32.mrb[0].mxu0
    %v1163 = vadd.f32 %v1023, %v1162
    %v1164 = vpop.f32.mrb[0].mxu0
    %v1165 = vadd.f32 %v1025, %v1164
    %1166 = vmatprep.mubr.f32.mxu0 0.0
    %v1167 = vand.u32 %v539, 4294901760
    %v1168 = vsub.f32 %v539, %v1167
    %v1169 = vand.u32 %v1168, 4294901760
    %1170 = vmatmul.mubr.f32.gmra.mrb[0].mxu0 %v1169
    %v1171 = vpop.f32.mrb[0].mxu0
    %v1172 = vadd.f32 %v1031, %v1171
    %v1173 = vpop.f32.mrb[0].mxu0
    %v1174 = vadd.f32 %v1033, %v1173
    %1175 = vmatprep.mubr.f32.mxu0 0.0
    %v1176 = vand.u32 %v542, 4294901760
    %v1177 = vsub.f32 %v542, %v1176
    %v1178 = vand.u32 %v1177, 4294901760
    %1179 = vmatmul.mubr.f32.gmra.mrb[0].mxu0 %v1178
    %v1180 = vpop.f32.mrb[0].mxu0
    %v1181 = vadd.f32 %v1039, %v1180
    %v1182 = vpop.f32.mrb[0].mxu0
    %v1183 = vadd.f32 %v1041, %v1182
    %1184 = vdwg.mxu0
    %v1185 = vand.u32 %v467, 4294901760
    %v1186 = vsub.f32 %v467, %v1185
    %v1187 = vand.u32 %v1186, 4294901760
    %1188 = vmatprep.subr.mxu0 %v1187
    %v1189 = vand.u32 %v466, 4294901760
    %v1190 = vsub.f32 %v466, %v1189
    %v1191 = vand.u32 %v1190, 4294901760
    %1192 = vmatpush1.msra.mxu0 %v1191
    %v1193 = vand.u32 %v470, 4294901760
    %v1194 = vsub.f32 %v470, %v1193
    %v1195 = vand.u32 %v1194, 4294901760
    %1196 = vmatprep.subr.mxu0 %v1195
    %v1197 = vand.u32 %v469, 4294901760
    %v1198 = vsub.f32 %v469, %v1197
    %v1199 = vand.u32 %v1198, 4294901760
    %1200 = vmatpush1.msra.mxu0 %v1199
    %v1201 = vand.u32 %v473, 4294901760
    %v1202 = vsub.f32 %v473, %v1201
    %v1203 = vand.u32 %v1202, 4294901760
    %1204 = vmatprep.subr.mxu0 %v1203
    %v1205 = vand.u32 %v472, 4294901760
    %v1206 = vsub.f32 %v472, %v1205
    %v1207 = vand.u32 %v1206, 4294901760
    %1208 = vmatpush1.msra.mxu0 %v1207
    %v1209 = vand.u32 %v476, 4294901760
    %v1210 = vsub.f32 %v476, %v1209
    %v1211 = vand.u32 %v1210, 4294901760
    %1212 = vmatprep.subr.mxu0 %v1211
    %v1213 = vand.u32 %v475, 4294901760
    %v1214 = vsub.f32 %v475, %v1213
    %v1215 = vand.u32 %v1214, 4294901760
    %1216 = vmatpush1.msra.mxu0 %v1215
    %v1217 = vand.u32 %v479, 4294901760
    %v1218 = vsub.f32 %v479, %v1217
    %v1219 = vand.u32 %v1218, 4294901760
    %1220 = vmatprep.subr.mxu0 %v1219
    %v1221 = vand.u32 %v478, 4294901760
    %v1222 = vsub.f32 %v478, %v1221
    %v1223 = vand.u32 %v1222, 4294901760
    %1224 = vmatpush1.msra.mxu0 %v1223
    %v1225 = vand.u32 %v482, 4294901760
    %v1226 = vsub.f32 %v482, %v1225
    %v1227 = vand.u32 %v1226, 4294901760
    %1228 = vmatprep.subr.mxu0 %v1227
    %v1229 = vand.u32 %v481, 4294901760
    %v1230 = vsub.f32 %v481, %v1229
    %v1231 = vand.u32 %v1230, 4294901760
    %1232 = vmatpush1.msra.mxu0 %v1231
    %v1233 = vand.u32 %v549, 4294901760
    %v1234 = vsub.f32 %v549, %v1233
    %v1235 = vand.u32 %v1234, 4294901760
    %1236 = vmatprep.subr.mxu0 %v1235
    %v1237 = vand.u32 %v546, 4294901760
    %v1238 = vsub.f32 %v546, %v1237
    %v1239 = vand.u32 %v1238, 4294901760
    %1240 = vmatpush1.msra.mxu0 %v1239
    %1241 = vmatprep.subr.mxu0 0.0
    %1242 = vmatpush1.msra.mxu0 0.0
    %1243 = vmatprep.subr.mxu0 0.0
    %1244 = vmatpush1.msra.mxu0 0.0
    %1245 = vmatprep.subr.mxu0 0.0
    %1246 = vmatpush1.msra.mxu0 0.0
    %1247 = vmatprep.subr.mxu0 0.0
    %1248 = vmatpush1.msra.mxu0 0.0
    %1249 = vmatprep.subr.mxu0 0.0
    %1250 = vmatpush1.msra.mxu0 0.0
    %1251 = vmatprep.subr.mxu0 0.0
    %1252 = vmatpush1.msra.mxu0 0.0
    %1253 = vmatprep.subr.mxu0 0.0
    %1254 = vmatpush1.msra.mxu0 0.0
    %1255 = vmatprep.subr.mxu0 0.0
    %1256 = vmatpush1.msra.mxu0 0.0
    %1257 = vmatprep.subr.mxu0 0.0
    %1258 = vmatpush1.msra.mxu0 0.0
    %1259 = vmatprep.subr.mxu0 0.0
    %1260 = vmatpush1.msra.mxu0 0.0
    %1261 = vmatprep.subr.mxu0 0.0
    %1262 = vmatpush1.msra.mxu0 0.0
    %1263 = vmatprep.subr.mxu0 0.0
    %1264 = vmatpush1.msra.mxu0 0.0
    %1265 = vmatprep.subr.mxu0 0.0
    %1266 = vmatpush1.msra.mxu0 0.0
    %1267 = vmatprep.subr.mxu0 0.0
    %1268 = vmatpush1.msra.mxu0 0.0
    %1269 = vmatprep.subr.mxu0 0.0
    %1270 = vmatpush1.msra.mxu0 0.0
    %1271 = vmatprep.subr.mxu0 0.0
    %1272 = vmatpush1.msra.mxu0 0.0
    %1273 = vmatprep.subr.mxu0 0.0
    %1274 = vmatpush1.msra.mxu0 0.0
    %1275 = vmatprep.subr.mxu0 0.0
    %1276 = vmatpush1.msra.mxu0 0.0
    %1277 = vmatprep.subr.mxu0 0.0
    %1278 = vmatpush1.msra.mxu0 0.0
    %1279 = vmatprep.subr.mxu0 0.0
    %1280 = vmatpush1.msra.mxu0 0.0
    %1281 = vmatprep.subr.mxu0 0.0
    %1282 = vmatpush1.msra.mxu0 0.0
    %1283 = vmatprep.subr.mxu0 0.0
    %1284 = vmatpush1.msra.mxu0 0.0
    %1285 = vmatprep.subr.mxu0 0.0
    %1286 = vmatpush1.msra.mxu0 0.0
    %1287 = vmatprep.subr.mxu0 0.0
    %1288 = vmatpush1.msra.mxu0 0.0
    %1289 = vmatprep.subr.mxu0 0.0
    %1290 = vmatpush1.msra.mxu0 0.0
    %1291 = vmatprep.mubr.f32.mxu0 0.0
    %v1292 = vand.u32 %v524, 4294901760
    %1293 = vmatmul.mubr.f32.gmra.mrb[0].mxu0 %v1292
    %v1294 = vpop.f32.mrb[0].mxu0
    %v1295 = vadd.f32 %v1127, %v1294
    %v1296 = vpop.f32.mrb[0].mxu0
    %v1297 = vadd.f32 %v1129, %v1296
    %1298 = vmatprep.mubr.f32.mxu0 0.0
    %v1299 = vand.u32 %v527, 4294901760
    %1300 = vmatmul.mubr.f32.gmra.mrb[0].mxu0 %v1299
    %v1301 = vpop.f32.mrb[0].mxu0
    %v1302 = vadd.f32 %v1136, %v1301
    %v1303 = vpop.f32.mrb[0].mxu0
    %v1304 = vadd.f32 %v1138, %v1303
    %1305 = vmatprep.mubr.f32.mxu0 0.0
    %v1306 = vand.u32 %v530, 4294901760
    %1307 = vmatmul.mubr.f32.gmra.mrb[0].mxu0 %v1306
    %v1308 = vpop.f32.mrb[0].mxu0
    %v1309 = vadd.f32 %v1145, %v1308
    %v1310 = vpop.f32.mrb[0].mxu0
    %v1311 = vadd.f32 %v1147, %v1310
    %1312 = vmatprep.mubr.f32.mxu0 0.0
    %v1313 = vand.u32 %v533, 4294901760
    %1314 = vmatmul.mubr.f32.gmra.mrb[0].mxu0 %v1313
    %v1315 = vpop.f32.mrb[0].mxu0
    %v1316 = vadd.f32 %v1154, %v1315
    %v1317 = vpop.f32.mrb[0].mxu0
    %v1318 = vadd.f32 %v1156, %v1317
    %1319 = vmatprep.mubr.f32.mxu0 0.0
    %v1320 = vand.u32 %v536, 4294901760
    %1321 = vmatmul.mubr.f32.gmra.mrb[0].mxu0 %v1320
    %v1322 = vpop.f32.mrb[0].mxu0
    %v1323 = vadd.f32 %v1163, %v1322
    %v1324 = vpop.f32.mrb[0].mxu0
    %v1325 = vadd.f32 %v1165, %v1324
    %1326 = vmatprep.mubr.f32.mxu0 0.0
    %v1327 = vand.u32 %v539, 4294901760
    %1328 = vmatmul.mubr.f32.gmra.mrb[0].mxu0 %v1327
    %v1329 = vpop.f32.mrb[0].mxu0
    %v1330 = vadd.f32 %v1172, %v1329
    %v1331 = vpop.f32.mrb[0].mxu0
    %v1332 = vadd.f32 %v1174, %v1331
    %1333 = vmatprep.mubr.f32.mxu0 0.0
    %v1334 = vand.u32 %v542, 4294901760
    %1335 = vmatmul.mubr.f32.gmra.mrb[0].mxu0 %v1334
    %v1336 = vpop.f32.mrb[0].mxu0
    %v1337 = vadd.f32 %v1181, %v1336
    %v1338 = vpop.f32.mrb[0].mxu0
    %v1339 = vadd.f32 %v1183, %v1338
    %1340 = vdwg.mxu0
    %v1341 = vand.u32 %v467, 4294901760
    %1342 = vmatprep.subr.mxu0 %v1341
    %v1343 = vand.u32 %v466, 4294901760
    %1344 = vmatpush1.msra.mxu0 %v1343
    %v1345 = vand.u32 %v470, 4294901760
    %1346 = vmatprep.subr.mxu0 %v1345
    %v1347 = vand.u32 %v469, 4294901760
    %1348 = vmatpush1.msra.mxu0 %v1347
    %v1349 = vand.u32 %v473, 4294901760
    %1350 = vmatprep.subr.mxu0 %v1349
    %v1351 = vand.u32 %v472, 4294901760
    %1352 = vmatpush1.msra.mxu0 %v1351
    %v1353 = vand.u32 %v476, 4294901760
    %1354 = vmatprep.subr.mxu0 %v1353
    %v1355 = vand.u32 %v475, 4294901760
    %1356 = vmatpush1.msra.mxu0 %v1355
    %v1357 = vand.u32 %v479, 4294901760
    %1358 = vmatprep.subr.mxu0 %v1357
    %v1359 = vand.u32 %v478, 4294901760
    %1360 = vmatpush1.msra.mxu0 %v1359
    %v1361 = vand.u32 %v482, 4294901760
    %1362 = vmatprep.subr.mxu0 %v1361
    %v1363 = vand.u32 %v481, 4294901760
    %1364 = vmatpush1.msra.mxu0 %v1363
    %v1365 = vand.u32 %v549, 4294901760
    %1366 = vmatprep.subr.mxu0 %v1365
    %v1367 = vand.u32 %v546, 4294901760
    %1368 = vmatpush1.msra.mxu0 %v1367
    %1369 = vmatprep.subr.mxu0 0.0
    %1370 = vmatpush1.msra.mxu0 0.0
    %1371 = vmatprep.subr.mxu0 0.0
    %1372 = vmatpush1.msra.mxu0 0.0
    %1373 = vmatprep.subr.mxu0 0.0
    %1374 = vmatpush1.msra.mxu0 0.0
    %1375 = vmatprep.subr.mxu0 0.0
    %1376 = vmatpush1.msra.mxu0 0.0
    %1377 = vmatprep.subr.mxu0 0.0
    %1378 = vmatpush1.msra.mxu0 0.0
    %1379 = vmatprep.subr.mxu0 0.0
    %1380 = vmatpush1.msra.mxu0 0.0
    %1381 = vmatprep.subr.mxu0 0.0
    %1382 = vmatpush1.msra.mxu0 0.0
    %1383 = vmatprep.subr.mxu0 0.0
    %1384 = vmatpush1.msra.mxu0 0.0
    %1385 = vmatprep.subr.mxu0 0.0
    %1386 = vmatpush1.msra.mxu0 0.0
    %1387 = vmatprep.subr.mxu0 0.0
    %1388 = vmatpush1.msra.mxu0 0.0
    %1389 = vmatprep.subr.mxu0 0.0
    %1390 = vmatpush1.msra.mxu0 0.0
    %1391 = vmatprep.subr.mxu0 0.0
    %1392 = vmatpush1.msra.mxu0 0.0
    %1393 = vmatprep.subr.mxu0 0.0
    %1394 = vmatpush1.msra.mxu0 0.0
    %1395 = vmatprep.subr.mxu0 0.0
    %1396 = vmatpush1.msra.mxu0 0.0
    %1397 = vmatprep.subr.mxu0 0.0
    %1398 = vmatpush1.msra.mxu0 0.0
    %1399 = vmatprep.subr.mxu0 0.0
    %1400 = vmatpush1.msra.mxu0 0.0
    %1401 = vmatprep.subr.mxu0 0.0
    %1402 = vmatpush1.msra.mxu0 0.0
    %1403 = vmatprep.subr.mxu0 0.0
    %1404 = vmatpush1.msra.mxu0 0.0
    %1405 = vmatprep.subr.mxu0 0.0
    %1406 = vmatpush1.msra.mxu0 0.0
    %1407 = vmatprep.subr.mxu0 0.0
    %1408 = vmatpush1.msra.mxu0 0.0
    %1409 = vmatprep.subr.mxu0 0.0
    %1410 = vmatpush1.msra.mxu0 0.0
    %1411 = vmatprep.subr.mxu0 0.0
    %1412 = vmatpush1.msra.mxu0 0.0
    %1413 = vmatprep.subr.mxu0 0.0
    %1414 = vmatpush1.msra.mxu0 0.0
    %1415 = vmatprep.subr.mxu0 0.0
    %1416 = vmatpush1.msra.mxu0 0.0
    %1417 = vmatprep.subr.mxu0 0.0
    %1418 = vmatpush1.msra.mxu0 0.0
    %1419 = vmatprep.mubr.f32.mxu0 0.0
    %v1420 = vand.u32 %v524, 4294901760
    %1421 = vmatmul.mubr.f32.gmra.mrb[0].mxu0 %v1420
    %v1422 = vpop.f32.mrb[0].mxu0
    %v1423 = vadd.f32 %v1295, %v1422
    %v1424 = vpop.f32.mrb[0].mxu0
    %v1425 = vadd.f32 %v1297, %v1424
    %1426 = vmatprep.mubr.f32.mxu0 0.0
    %v1427 = vand.u32 %v527, 4294901760
    %1428 = vmatmul.mubr.f32.gmra.mrb[0].mxu0 %v1427
    %v1429 = vpop.f32.mrb[0].mxu0
    %v1430 = vadd.f32 %v1302, %v1429
    %v1431 = vpop.f32.mrb[0].mxu0
    %v1432 = vadd.f32 %v1304, %v1431
    %1433 = vmatprep.mubr.f32.mxu0 0.0
    %v1434 = vand.u32 %v530, 4294901760
    %1435 = vmatmul.mubr.f32.gmra.mrb[0].mxu0 %v1434
    %v1436 = vpop.f32.mrb[0].mxu0
    %v1437 = vadd.f32 %v1309, %v1436
    %v1438 = vpop.f32.mrb[0].mxu0
    %v1439 = vadd.f32 %v1311, %v1438
    %1440 = vmatprep.mubr.f32.mxu0 0.0
    %v1441 = vand.u32 %v533, 4294901760
    %1442 = vmatmul.mubr.f32.gmra.mrb[0].mxu0 %v1441
    %v1443 = vpop.f32.mrb[0].mxu0
    %v1444 = vadd.f32 %v1316, %v1443
    %v1445 = vpop.f32.mrb[0].mxu0
    %v1446 = vadd.f32 %v1318, %v1445
    %1447 = vmatprep.mubr.f32.mxu0 0.0
    %v1448 = vand.u32 %v536, 4294901760
    %1449 = vmatmul.mubr.f32.gmra.mrb[0].mxu0 %v1448
    %v1450 = vpop.f32.mrb[0].mxu0
    %v1451 = vadd.f32 %v1323, %v1450
    %v1452 = vpop.f32.mrb[0].mxu0
    %v1453 = vadd.f32 %v1325, %v1452
    %1454 = vmatprep.mubr.f32.mxu0 0.0
    %v1455 = vand.u32 %v539, 4294901760
    %1456 = vmatmul.mubr.f32.gmra.mrb[0].mxu0 %v1455
    %v1457 = vpop.f32.mrb[0].mxu0
    %v1458 = vadd.f32 %v1330, %v1457
    %v1459 = vpop.f32.mrb[0].mxu0
    %v1460 = vadd.f32 %v1332, %v1459
    %1461 = vmatprep.mubr.f32.mxu0 0.0
    %v1462 = vand.u32 %v542, 4294901760
    %1463 = vmatmul.mubr.f32.gmra.mrb[0].mxu0 %v1462
    %v1464 = vpop.f32.mrb[0].mxu0
    %v1465 = vadd.f32 %v1337, %v1464
    %v1466 = vpop.f32.mrb[0].mxu0
    %v1467 = vadd.f32 %v1339, %v1466
    %1468 = vdwg.mxu0
    %1469 = vmatprep.subr.mxu0 0.0
    %v1470 = vand.u32 %v468, 4294901760
    %1471 = vmatpush1.msra.mxu0 %v1470
    %1472 = vmatprep.subr.mxu0 0.0
    %v1473 = vand.u32 %v471, 4294901760
    %1474 = vmatpush1.msra.mxu0 %v1473
    %1475 = vmatprep.subr.mxu0 0.0
    %v1476 = vand.u32 %v474, 4294901760
    %1477 = vmatpush1.msra.mxu0 %v1476
    %1478 = vmatprep.subr.mxu0 0.0
    %v1479 = vand.u32 %v477, 4294901760
    %1480 = vmatpush1.msra.mxu0 %v1479
    %1481 = vmatprep.subr.mxu0 0.0
    %v1482 = vand.u32 %v480, 4294901760
    %1483 = vmatpush1.msra.mxu0 %v1482
    %1484 = vmatprep.subr.mxu0 0.0
    %v1485 = vand.u32 %v483, 4294901760
    %1486 = vmatpush1.msra.mxu0 %v1485
    %1487 = vmatprep.subr.mxu0 0.0
    %v1488 = vand.u32 %v552, 4294901760
    %1489 = vmatpush1.msra.mxu0 %v1488
    %1490 = vmatprep.subr.mxu0 0.0
    %1491 = vmatpush1.msra.mxu0 0.0
    %1492 = vmatprep.subr.mxu0 0.0
    %1493 = vmatpush1.msra.mxu0 0.0
    %1494 = vmatprep.subr.mxu0 0.0
    %1495 = vmatpush1.msra.mxu0 0.0
    %1496 = vmatprep.subr.mxu0 0.0
    %1497 = vmatpush1.msra.mxu0 0.0
    %1498 = vmatprep.subr.mxu0 0.0
    %1499 = vmatpush1.msra.mxu0 0.0
    %1500 = vmatprep.subr.mxu0 0.0
    %1501 = vmatpush1.msra.mxu0 0.0
    %1502 = vmatprep.subr.mxu0 0.0
    %1503 = vmatpush1.msra.mxu0 0.0
    %1504 = vmatprep.subr.mxu0 0.0
    %1505 = vmatpush1.msra.mxu0 0.0
    %1506 = vmatprep.subr.mxu0 0.0
    %1507 = vmatpush1.msra.mxu0 0.0
    %1508 = vmatprep.subr.mxu0 0.0
    %1509 = vmatpush1.msra.mxu0 0.0
    %1510 = vmatprep.subr.mxu0 0.0
    %1511 = vmatpush1.msra.mxu0 0.0
    %1512 = vmatprep.subr.mxu0 0.0
    %1513 = vmatpush1.msra.mxu0 0.0
    %1514 = vmatprep.subr.mxu0 0.0
    %1515 = vmatpush1.msra.mxu0 0.0
    %1516 = vmatprep.subr.mxu0 0.0
    %1517 = vmatpush1.msra.mxu0 0.0
    %1518 = vmatprep.subr.mxu0 0.0
    %1519 = vmatpush1.msra.mxu0 0.0
    %1520 = vmatprep.subr.mxu0 0.0
    %1521 = vmatpush1.msra.mxu0 0.0
    %1522 = vmatprep.subr.mxu0 0.0
    %1523 = vmatpush1.msra.mxu0 0.0
    %1524 = vmatprep.subr.mxu0 0.0
    %1525 = vmatpush1.msra.mxu0 0.0
    %1526 = vmatprep.subr.mxu0 0.0
    %1527 = vmatpush1.msra.mxu0 0.0
    %1528 = vmatprep.subr.mxu0 0.0
    %1529 = vmatpush1.msra.mxu0 0.0
    %1530 = vmatprep.subr.mxu0 0.0
    %1531 = vmatpush1.msra.mxu0 0.0
    %1532 = vmatprep.subr.mxu0 0.0
    %1533 = vmatpush1.msra.mxu0 0.0
    %1534 = vmatprep.subr.mxu0 0.0
    %1535 = vmatpush1.msra.mxu0 0.0
    %1536 = vmatprep.subr.mxu0 0.0
    %1537 = vmatpush1.msra.mxu0 0.0
    %1538 = vmatprep.subr.mxu0 0.0
    %1539 = vmatpush1.msra.mxu0 0.0
    %1540 = vmatprep.mubr.f32.mxu0 0.0
    %v1541 = vand.u32 %v524, 4294901760
    %v1542 = vsub.f32 %v524, %v1541
    %v1543 = vand.u32 %v1542, 4294901760
    %v1544 = vsub.f32 %v1542, %v1543
    %v1545 = vand.u32 %v1544, 4294901760
    %1546 = vmatmul.mubr.f32.gmra.mrb[0].mxu0 %v1545
    %v1547 = vpop.f32.mrb[0].mxu0
    %v1548 = vadd.f32 %v496, %v1547
    %v1549 = vpop.f32.mrb[0].mxu0
    %1550 = vmatprep.mubr.f32.mxu0 0.0
    %v1551 = vand.u32 %v527, 4294901760
    %v1552 = vsub.f32 %v527, %v1551
    %v1553 = vand.u32 %v1552, 4294901760
    %v1554 = vsub.f32 %v1552, %v1553
    %v1555 = vand.u32 %v1554, 4294901760
    %1556 = vmatmul.mubr.f32.gmra.mrb[0].mxu0 %v1555
    %v1557 = vpop.f32.mrb[0].mxu0
    %v1558 = vadd.f32 %v500, %v1557
    %v1559 = vpop.f32.mrb[0].mxu0
    %1560 = vmatprep.mubr.f32.mxu0 0.0
    %v1561 = vand.u32 %v530, 4294901760
    %v1562 = vsub.f32 %v530, %v1561
    %v1563 = vand.u32 %v1562, 4294901760
    %v1564 = vsub.f32 %v1562, %v1563
    %v1565 = vand.u32 %v1564, 4294901760
    %1566 = vmatmul.mubr.f32.gmra.mrb[0].mxu0 %v1565
    %v1567 = vpop.f32.mrb[0].mxu0
    %v1568 = vadd.f32 %v504, %v1567
    %v1569 = vpop.f32.mrb[0].mxu0
    %1570 = vmatprep.mubr.f32.mxu0 0.0
    %v1571 = vand.u32 %v533, 4294901760
    %v1572 = vsub.f32 %v533, %v1571
    %v1573 = vand.u32 %v1572, 4294901760
    %v1574 = vsub.f32 %v1572, %v1573
    %v1575 = vand.u32 %v1574, 4294901760
    %1576 = vmatmul.mubr.f32.gmra.mrb[0].mxu0 %v1575
    %v1577 = vpop.f32.mrb[0].mxu0
    %v1578 = vadd.f32 %v508, %v1577
    %v1579 = vpop.f32.mrb[0].mxu0
    %1580 = vmatprep.mubr.f32.mxu0 0.0
    %v1581 = vand.u32 %v536, 4294901760
    %v1582 = vsub.f32 %v536, %v1581
    %v1583 = vand.u32 %v1582, 4294901760
    %v1584 = vsub.f32 %v1582, %v1583
    %v1585 = vand.u32 %v1584, 4294901760
    %1586 = vmatmul.mubr.f32.gmra.mrb[0].mxu0 %v1585
    %v1587 = vpop.f32.mrb[0].mxu0
    %v1588 = vadd.f32 %v512, %v1587
    %v1589 = vpop.f32.mrb[0].mxu0
    %1590 = vmatprep.mubr.f32.mxu0 0.0
    %v1591 = vand.u32 %v539, 4294901760
    %v1592 = vsub.f32 %v539, %v1591
    %v1593 = vand.u32 %v1592, 4294901760
    %v1594 = vsub.f32 %v1592, %v1593
    %v1595 = vand.u32 %v1594, 4294901760
    %1596 = vmatmul.mubr.f32.gmra.mrb[0].mxu0 %v1595
    %v1597 = vpop.f32.mrb[0].mxu0
    %v1598 = vadd.f32 %v516, %v1597
    %v1599 = vpop.f32.mrb[0].mxu0
    %1600 = vmatprep.mubr.f32.mxu0 0.0
    %v1601 = vand.u32 %v542, 4294901760
    %v1602 = vsub.f32 %v542, %v1601
    %v1603 = vand.u32 %v1602, 4294901760
    %v1604 = vsub.f32 %v1602, %v1603
    %v1605 = vand.u32 %v1604, 4294901760
    %1606 = vmatmul.mubr.f32.gmra.mrb[0].mxu0 %v1605
    %v1607 = vpop.f32.mrb[0].mxu0
    %v1608 = vadd.f32 %v520, %v1607
    %v1609 = vpop.f32.mrb[0].mxu0
    %1610 = vdwg.mxu0
    %1611 = vmatprep.subr.mxu0 0.0
    %v1612 = vand.u32 %v468, 4294901760
    %v1613 = vsub.f32 %v468, %v1612
    %v1614 = vand.u32 %v1613, 4294901760
    %v1615 = vsub.f32 %v1613, %v1614
    %v1616 = vand.u32 %v1615, 4294901760
    %1617 = vmatpush1.msra.mxu0 %v1616
    %1618 = vmatprep.subr.mxu0 0.0
    %v1619 = vand.u32 %v471, 4294901760
    %v1620 = vsub.f32 %v471, %v1619
    %v1621 = vand.u32 %v1620, 4294901760
    %v1622 = vsub.f32 %v1620, %v1621
    %v1623 = vand.u32 %v1622, 4294901760
    %1624 = vmatpush1.msra.mxu0 %v1623
    %1625 = vmatprep.subr.mxu0 0.0
    %v1626 = vand.u32 %v474, 4294901760
    %v1627 = vsub.f32 %v474, %v1626
    %v1628 = vand.u32 %v1627, 4294901760
    %v1629 = vsub.f32 %v1627, %v1628
    %v1630 = vand.u32 %v1629, 4294901760
    %1631 = vmatpush1.msra.mxu0 %v1630
    %1632 = vmatprep.subr.mxu0 0.0
    %v1633 = vand.u32 %v477, 4294901760
    %v1634 = vsub.f32 %v477, %v1633
    %v1635 = vand.u32 %v1634, 4294901760
    %v1636 = vsub.f32 %v1634, %v1635
    %v1637 = vand.u32 %v1636, 4294901760
    %1638 = vmatpush1.msra.mxu0 %v1637
    %1639 = vmatprep.subr.mxu0 0.0
    %v1640 = vand.u32 %v480, 4294901760
    %v1641 = vsub.f32 %v480, %v1640
    %v1642 = vand.u32 %v1641, 4294901760
    %v1643 = vsub.f32 %v1641, %v1642
    %v1644 = vand.u32 %v1643, 4294901760
    %1645 = vmatpush1.msra.mxu0 %v1644
    %1646 = vmatprep.subr.mxu0 0.0
    %v1647 = vand.u32 %v483, 4294901760
    %v1648 = vsub.f32 %v483, %v1647
    %v1649 = vand.u32 %v1648, 4294901760
    %v1650 = vsub.f32 %v1648, %v1649
    %v1651 = vand.u32 %v1650, 4294901760
    %1652 = vmatpush1.msra.mxu0 %v1651
    %1653 = vmatprep.subr.mxu0 0.0
    %v1654 = vand.u32 %v552, 4294901760
    %v1655 = vsub.f32 %v552, %v1654
    %v1656 = vand.u32 %v1655, 4294901760
    %v1657 = vsub.f32 %v1655, %v1656
    %v1658 = vand.u32 %v1657, 4294901760
    %1659 = vmatpush1.msra.mxu0 %v1658
    %1660 = vmatprep.subr.mxu0 0.0
    %1661 = vmatpush1.msra.mxu0 0.0
    %1662 = vmatprep.subr.mxu0 0.0
    %1663 = vmatpush1.msra.mxu0 0.0
    %1664 = vmatprep.subr.mxu0 0.0
    %1665 = vmatpush1.msra.mxu0 0.0
    %1666 = vmatprep.subr.mxu0 0.0
    %1667 = vmatpush1.msra.mxu0 0.0
    %1668 = vmatprep.subr.mxu0 0.0
    %1669 = vmatpush1.msra.mxu0 0.0
    %1670 = vmatprep.subr.mxu0 0.0
    %1671 = vmatpush1.msra.mxu0 0.0
    %1672 = vmatprep.subr.mxu0 0.0
    %1673 = vmatpush1.msra.mxu0 0.0
    %1674 = vmatprep.subr.mxu0 0.0
    %1675 = vmatpush1.msra.mxu0 0.0
    %1676 = vmatprep.subr.mxu0 0.0
    %1677 = vmatpush1.msra.mxu0 0.0
    %1678 = vmatprep.subr.mxu0 0.0
    %1679 = vmatpush1.msra.mxu0 0.0
    %1680 = vmatprep.subr.mxu0 0.0
    %1681 = vmatpush1.msra.mxu0 0.0
    %1682 = vmatprep.subr.mxu0 0.0
    %1683 = vmatpush1.msra.mxu0 0.0
    %1684 = vmatprep.subr.mxu0 0.0
    %1685 = vmatpush1.msra.mxu0 0.0
    %1686 = vmatprep.subr.mxu0 0.0
    %1687 = vmatpush1.msra.mxu0 0.0
    %1688 = vmatprep.subr.mxu0 0.0
    %1689 = vmatpush1.msra.mxu0 0.0
    %1690 = vmatprep.subr.mxu0 0.0
    %1691 = vmatpush1.msra.mxu0 0.0
    %1692 = vmatprep.subr.mxu0 0.0
    %1693 = vmatpush1.msra.mxu0 0.0
    %1694 = vmatprep.subr.mxu0 0.0
    %1695 = vmatpush1.msra.mxu0 0.0
    %1696 = vmatprep.subr.mxu0 0.0
    %1697 = vmatpush1.msra.mxu0 0.0
    %1698 = vmatprep.subr.mxu0 0.0
    %1699 = vmatpush1.msra.mxu0 0.0
    %1700 = vmatprep.subr.mxu0 0.0
    %1701 = vmatpush1.msra.mxu0 0.0
    %1702 = vmatprep.subr.mxu0 0.0
    %1703 = vmatpush1.msra.mxu0 0.0
    %1704 = vmatprep.subr.mxu0 0.0
    %1705 = vmatpush1.msra.mxu0 0.0
    %1706 = vmatprep.subr.mxu0 0.0
    %1707 = vmatpush1.msra.mxu0 0.0
    %1708 = vmatprep.subr.mxu0 0.0
    %1709 = vmatpush1.msra.mxu0 0.0
    %1710 = vmatprep.mubr.f32.mxu0 0.0
    %v1711 = vand.u32 %v524, 4294901760
    %1712 = vmatmul.mubr.f32.gmra.mrb[0].mxu0 %v1711
    %v1713 = vpop.f32.mrb[0].mxu0
    %v1714 = vadd.f32 %v1548, %v1713
    %v1715 = vpop.f32.mrb[0].mxu0
    %1716 = vmatprep.mubr.f32.mxu0 0.0
    %v1717 = vand.u32 %v527, 4294901760
    %1718 = vmatmul.mubr.f32.gmra.mrb[0].mxu0 %v1717
    %v1719 = vpop.f32.mrb[0].mxu0
    %v1720 = vadd.f32 %v1558, %v1719
    %v1721 = vpop.f32.mrb[0].mxu0
    %1722 = vmatprep.mubr.f32.mxu0 0.0
    %v1723 = vand.u32 %v530, 4294901760
    %1724 = vmatmul.mubr.f32.gmra.mrb[0].mxu0 %v1723
    %v1725 = vpop.f32.mrb[0].mxu0
    %v1726 = vadd.f32 %v1568, %v1725
    %v1727 = vpop.f32.mrb[0].mxu0
    %1728 = vmatprep.mubr.f32.mxu0 0.0
    %v1729 = vand.u32 %v533, 4294901760
    %1730 = vmatmul.mubr.f32.gmra.mrb[0].mxu0 %v1729
    %v1731 = vpop.f32.mrb[0].mxu0
    %v1732 = vadd.f32 %v1578, %v1731
    %v1733 = vpop.f32.mrb[0].mxu0
    %1734 = vmatprep.mubr.f32.mxu0 0.0
    %v1735 = vand.u32 %v536, 4294901760
    %1736 = vmatmul.mubr.f32.gmra.mrb[0].mxu0 %v1735
    %v1737 = vpop.f32.mrb[0].mxu0
    %v1738 = vadd.f32 %v1588, %v1737
    %v1739 = vpop.f32.mrb[0].mxu0
    %1740 = vmatprep.mubr.f32.mxu0 0.0
    %v1741 = vand.u32 %v539, 4294901760
    %1742 = vmatmul.mubr.f32.gmra.mrb[0].mxu0 %v1741
    %v1743 = vpop.f32.mrb[0].mxu0
    %v1744 = vadd.f32 %v1598, %v1743
    %v1745 = vpop.f32.mrb[0].mxu0
    %1746 = vmatprep.mubr.f32.mxu0 0.0
    %v1747 = vand.u32 %v542, 4294901760
    %1748 = vmatmul.mubr.f32.gmra.mrb[0].mxu0 %v1747
    %v1749 = vpop.f32.mrb[0].mxu0
    %v1750 = vadd.f32 %v1608, %v1749
    %v1751 = vpop.f32.mrb[0].mxu0
    %1752 = vdwg.mxu0
    %1753 = vmatprep.subr.mxu0 0.0
    %v1754 = vand.u32 %v468, 4294901760
    %v1755 = vsub.f32 %v468, %v1754
    %1756 = vmatpush1.msra.mxu0 %v1755
    %1757 = vmatprep.subr.mxu0 0.0
    %v1758 = vand.u32 %v471, 4294901760
    %v1759 = vsub.f32 %v471, %v1758
    %1760 = vmatpush1.msra.mxu0 %v1759
    %1761 = vmatprep.subr.mxu0 0.0
    %v1762 = vand.u32 %v474, 4294901760
    %v1763 = vsub.f32 %v474, %v1762
    %1764 = vmatpush1.msra.mxu0 %v1763
    %1765 = vmatprep.subr.mxu0 0.0
    %v1766 = vand.u32 %v477, 4294901760
    %v1767 = vsub.f32 %v477, %v1766
    %1768 = vmatpush1.msra.mxu0 %v1767
    %1769 = vmatprep.subr.mxu0 0.0
    %v1770 = vand.u32 %v480, 4294901760
    %v1771 = vsub.f32 %v480, %v1770
    %1772 = vmatpush1.msra.mxu0 %v1771
    %1773 = vmatprep.subr.mxu0 0.0
    %v1774 = vand.u32 %v483, 4294901760
    %v1775 = vsub.f32 %v483, %v1774
    %1776 = vmatpush1.msra.mxu0 %v1775
    %1777 = vmatprep.subr.mxu0 0.0
    %v1778 = vand.u32 %v552, 4294901760
    %v1779 = vsub.f32 %v552, %v1778
    %1780 = vmatpush1.msra.mxu0 %v1779
    %1781 = vmatprep.subr.mxu0 0.0
    %1782 = vmatpush1.msra.mxu0 0.0
    %1783 = vmatprep.subr.mxu0 0.0
    %1784 = vmatpush1.msra.mxu0 0.0
    %1785 = vmatprep.subr.mxu0 0.0
    %1786 = vmatpush1.msra.mxu0 0.0
    %1787 = vmatprep.subr.mxu0 0.0
    %1788 = vmatpush1.msra.mxu0 0.0
    %1789 = vmatprep.subr.mxu0 0.0
    %1790 = vmatpush1.msra.mxu0 0.0
    %1791 = vmatprep.subr.mxu0 0.0
    %1792 = vmatpush1.msra.mxu0 0.0
    %1793 = vmatprep.subr.mxu0 0.0
    %1794 = vmatpush1.msra.mxu0 0.0
    %1795 = vmatprep.subr.mxu0 0.0
    %1796 = vmatpush1.msra.mxu0 0.0
    %1797 = vmatprep.subr.mxu0 0.0
    %1798 = vmatpush1.msra.mxu0 0.0
    %1799 = vmatprep.subr.mxu0 0.0
    %1800 = vmatpush1.msra.mxu0 0.0
    %1801 = vmatprep.subr.mxu0 0.0
    %1802 = vmatpush1.msra.mxu0 0.0
    %1803 = vmatprep.subr.mxu0 0.0
    %1804 = vmatpush1.msra.mxu0 0.0
    %1805 = vmatprep.subr.mxu0 0.0
    %1806 = vmatpush1.msra.mxu0 0.0
    %1807 = vmatprep.subr.mxu0 0.0
    %1808 = vmatpush1.msra.mxu0 0.0
    %1809 = vmatprep.subr.mxu0 0.0
    %1810 = vmatpush1.msra.mxu0 0.0
    %1811 = vmatprep.subr.mxu0 0.0
    %1812 = vmatpush1.msra.mxu0 0.0
    %1813 = vmatprep.subr.mxu0 0.0
    %1814 = vmatpush1.msra.mxu0 0.0
    %1815 = vmatprep.subr.mxu0 0.0
    %1816 = vmatpush1.msra.mxu0 0.0
    %1817 = vmatprep.subr.mxu0 0.0
    %1818 = vmatpush1.msra.mxu0 0.0
    %1819 = vmatprep.subr.mxu0 0.0
    %1820 = vmatpush1.msra.mxu0 0.0
    %1821 = vmatprep.subr.mxu0 0.0
    %1822 = vmatpush1.msra.mxu0 0.0
    %1823 = vmatprep.subr.mxu0 0.0
    %1824 = vmatpush1.msra.mxu0 0.0
    %1825 = vmatprep.subr.mxu0 0.0
    %1826 = vmatpush1.msra.mxu0 0.0
    %1827 = vmatprep.subr.mxu0 0.0
    %1828 = vmatpush1.msra.mxu0 0.0
    %1829 = vmatprep.subr.mxu0 0.0
    %1830 = vmatpush1.msra.mxu0 0.0
    %1831 = vmatprep.mubr.f32.mxu0 0.0
    %v1832 = vand.u32 %v524, 4294901760
    %v1833 = vsub.f32 %v524, %v1832
    %1834 = vmatmul.mubr.f32.gmra.mrb[0].mxu0 %v1833
    %v1835 = vpop.f32.mrb[0].mxu0
    %v1836 = vadd.f32 %v1714, %v1835
    %v1837 = vpop.f32.mrb[0].mxu0
    %1838 = vmatprep.mubr.f32.mxu0 0.0
    %v1839 = vand.u32 %v527, 4294901760
    %v1840 = vsub.f32 %v527, %v1839
    %1841 = vmatmul.mubr.f32.gmra.mrb[0].mxu0 %v1840
    %v1842 = vpop.f32.mrb[0].mxu0
    %v1843 = vadd.f32 %v1720, %v1842
    %v1844 = vpop.f32.mrb[0].mxu0
    %1845 = vmatprep.mubr.f32.mxu0 0.0
    %v1846 = vand.u32 %v530, 4294901760
    %v1847 = vsub.f32 %v530, %v1846
    %1848 = vmatmul.mubr.f32.gmra.mrb[0].mxu0 %v1847
    %v1849 = vpop.f32.mrb[0].mxu0
    %v1850 = vadd.f32 %v1726, %v1849
    %v1851 = vpop.f32.mrb[0].mxu0
    %1852 = vmatprep.mubr.f32.mxu0 0.0
    %v1853 = vand.u32 %v533, 4294901760
    %v1854 = vsub.f32 %v533, %v1853
    %1855 = vmatmul.mubr.f32.gmra.mrb[0].mxu0 %v1854
    %v1856 = vpop.f32.mrb[0].mxu0
    %v1857 = vadd.f32 %v1732, %v1856
    %v1858 = vpop.f32.mrb[0].mxu0
    %1859 = vmatprep.mubr.f32.mxu0 0.0
    %v1860 = vand.u32 %v536, 4294901760
    %v1861 = vsub.f32 %v536, %v1860
    %1862 = vmatmul.mubr.f32.gmra.mrb[0].mxu0 %v1861
    %v1863 = vpop.f32.mrb[0].mxu0
    %v1864 = vadd.f32 %v1738, %v1863
    %v1865 = vpop.f32.mrb[0].mxu0
    %1866 = vmatprep.mubr.f32.mxu0 0.0
    %v1867 = vand.u32 %v539, 4294901760
    %v1868 = vsub.f32 %v539, %v1867
    %1869 = vmatmul.mubr.f32.gmra.mrb[0].mxu0 %v1868
    %v1870 = vpop.f32.mrb[0].mxu0
    %v1871 = vadd.f32 %v1744, %v1870
    %v1872 = vpop.f32.mrb[0].mxu0
    %1873 = vmatprep.mubr.f32.mxu0 0.0
    %v1874 = vand.u32 %v542, 4294901760
    %v1875 = vsub.f32 %v542, %v1874
    %1876 = vmatmul.mubr.f32.gmra.mrb[0].mxu0 %v1875
    %v1877 = vpop.f32.mrb[0].mxu0
    %v1878 = vadd.f32 %v1750, %v1877
    %v1879 = vpop.f32.mrb[0].mxu0
    %1880 = vdwg.mxu0
    %1881 = vmatprep.subr.mxu0 0.0
    %v1882 = vand.u32 %v468, 4294901760
    %1883 = vmatpush1.msra.mxu0 %v1882
    %1884 = vmatprep.subr.mxu0 0.0
    %v1885 = vand.u32 %v471, 4294901760
    %1886 = vmatpush1.msra.mxu0 %v1885
    %1887 = vmatprep.subr.mxu0 0.0
    %v1888 = vand.u32 %v474, 4294901760
    %1889 = vmatpush1.msra.mxu0 %v1888
    %1890 = vmatprep.subr.mxu0 0.0
    %v1891 = vand.u32 %v477, 4294901760
    %1892 = vmatpush1.msra.mxu0 %v1891
    %1893 = vmatprep.subr.mxu0 0.0
    %v1894 = vand.u32 %v480, 4294901760
    %1895 = vmatpush1.msra.mxu0 %v1894
    %1896 = vmatprep.subr.mxu0 0.0
    %v1897 = vand.u32 %v483, 4294901760
    %1898 = vmatpush1.msra.mxu0 %v1897
    %1899 = vmatprep.subr.mxu0 0.0
    %v1900 = vand.u32 %v552, 4294901760
    %1901 = vmatpush1.msra.mxu0 %v1900
    %1902 = vmatprep.subr.mxu0 0.0
    %1903 = vmatpush1.msra.mxu0 0.0
    %1904 = vmatprep.subr.mxu0 0.0
    %1905 = vmatpush1.msra.mxu0 0.0
    %1906 = vmatprep.subr.mxu0 0.0
    %1907 = vmatpush1.msra.mxu0 0.0
    %1908 = vmatprep.subr.mxu0 0.0
    %1909 = vmatpush1.msra.mxu0 0.0
    %1910 = vmatprep.subr.mxu0 0.0
    %1911 = vmatpush1.msra.mxu0 0.0
    %1912 = vmatprep.subr.mxu0 0.0
    %1913 = vmatpush1.msra.mxu0 0.0
    %1914 = vmatprep.subr.mxu0 0.0
    %1915 = vmatpush1.msra.mxu0 0.0
    %1916 = vmatprep.subr.mxu0 0.0
    %1917 = vmatpush1.msra.mxu0 0.0
    %1918 = vmatprep.subr.mxu0 0.0
    %1919 = vmatpush1.msra.mxu0 0.0
    %1920 = vmatprep.subr.mxu0 0.0
    %1921 = vmatpush1.msra.mxu0 0.0
    %1922 = vmatprep.subr.mxu0 0.0
    %1923 = vmatpush1.msra.mxu0 0.0
    %1924 = vmatprep.subr.mxu0 0.0
    %1925 = vmatpush1.msra.mxu0 0.0
    %1926 = vmatprep.subr.mxu0 0.0
    %1927 = vmatpush1.msra.mxu0 0.0
    %1928 = vmatprep.subr.mxu0 0.0
    %1929 = vmatpush1.msra.mxu0 0.0
    %1930 = vmatprep.subr.mxu0 0.0
    %1931 = vmatpush1.msra.mxu0 0.0
    %1932 = vmatprep.subr.mxu0 0.0
    %1933 = vmatpush1.msra.mxu0 0.0
    %1934 = vmatprep.subr.mxu0 0.0
    %1935 = vmatpush1.msra.mxu0 0.0
    %1936 = vmatprep.subr.mxu0 0.0
    %1937 = vmatpush1.msra.mxu0 0.0
    %1938 = vmatprep.subr.mxu0 0.0
    %1939 = vmatpush1.msra.mxu0 0.0
    %1940 = vmatprep.subr.mxu0 0.0
    %1941 = vmatpush1.msra.mxu0 0.0
    %1942 = vmatprep.subr.mxu0 0.0
    %1943 = vmatpush1.msra.mxu0 0.0
    %1944 = vmatprep.subr.mxu0 0.0
    %1945 = vmatpush1.msra.mxu0 0.0
    %1946 = vmatprep.subr.mxu0 0.0
    %1947 = vmatpush1.msra.mxu0 0.0
    %1948 = vmatprep.subr.mxu0 0.0
    %1949 = vmatpush1.msra.mxu0 0.0
    %1950 = vmatprep.subr.mxu0 0.0
    %1951 = vmatpush1.msra.mxu0 0.0
    %1952 = vmatprep.mubr.f32.mxu0 0.0
    %v1953 = vand.u32 %v524, 4294901760
    %v1954 = vsub.f32 %v524, %v1953
    %v1955 = vand.u32 %v1954, 4294901760
    %1956 = vmatmul.mubr.f32.gmra.mrb[0].mxu0 %v1955
    %v1957 = vpop.f32.mrb[0].mxu0
    %v1958 = vadd.f32 %v1836, %v1957
    %v1959 = vpop.f32.mrb[0].mxu0
    %1960 = vmatprep.mubr.f32.mxu0 0.0
    %v1961 = vand.u32 %v527, 4294901760
    %v1962 = vsub.f32 %v527, %v1961
    %v1963 = vand.u32 %v1962, 4294901760
    %1964 = vmatmul.mubr.f32.gmra.mrb[0].mxu0 %v1963
    %v1965 = vpop.f32.mrb[0].mxu0
    %v1966 = vadd.f32 %v1843, %v1965
    %v1967 = vpop.f32.mrb[0].mxu0
    %1968 = vmatprep.mubr.f32.mxu0 0.0
    %v1969 = vand.u32 %v530, 4294901760
    %v1970 = vsub.f32 %v530, %v1969
    %v1971 = vand.u32 %v1970, 4294901760
    %1972 = vmatmul.mubr.f32.gmra.mrb[0].mxu0 %v1971
    %v1973 = vpop.f32.mrb[0].mxu0
    %v1974 = vadd.f32 %v1850, %v1973
    %v1975 = vpop.f32.mrb[0].mxu0
    %1976 = vmatprep.mubr.f32.mxu0 0.0
    %v1977 = vand.u32 %v533, 4294901760
    %v1978 = vsub.f32 %v533, %v1977
    %v1979 = vand.u32 %v1978, 4294901760
    %1980 = vmatmul.mubr.f32.gmra.mrb[0].mxu0 %v1979
    %v1981 = vpop.f32.mrb[0].mxu0
    %v1982 = vadd.f32 %v1857, %v1981
    %v1983 = vpop.f32.mrb[0].mxu0
    %1984 = vmatprep.mubr.f32.mxu0 0.0
    %v1985 = vand.u32 %v536, 4294901760
    %v1986 = vsub.f32 %v536, %v1985
    %v1987 = vand.u32 %v1986, 4294901760
    %1988 = vmatmul.mubr.f32.gmra.mrb[0].mxu0 %v1987
    %v1989 = vpop.f32.mrb[0].mxu0
    %v1990 = vadd.f32 %v1864, %v1989
    %v1991 = vpop.f32.mrb[0].mxu0
    %1992 = vmatprep.mubr.f32.mxu0 0.0
    %v1993 = vand.u32 %v539, 4294901760
    %v1994 = vsub.f32 %v539, %v1993
    %v1995 = vand.u32 %v1994, 4294901760
    %1996 = vmatmul.mubr.f32.gmra.mrb[0].mxu0 %v1995
    %v1997 = vpop.f32.mrb[0].mxu0
    %v1998 = vadd.f32 %v1871, %v1997
    %v1999 = vpop.f32.mrb[0].mxu0
    %2000 = vmatprep.mubr.f32.mxu0 0.0
    %v2001 = vand.u32 %v542, 4294901760
    %v2002 = vsub.f32 %v542, %v2001
    %v2003 = vand.u32 %v2002, 4294901760
    %2004 = vmatmul.mubr.f32.gmra.mrb[0].mxu0 %v2003
    %v2005 = vpop.f32.mrb[0].mxu0
    %v2006 = vadd.f32 %v1878, %v2005
    %v2007 = vpop.f32.mrb[0].mxu0
    %2008 = vdwg.mxu0
    %2009 = vmatprep.subr.mxu0 0.0
    %v2010 = vand.u32 %v468, 4294901760
    %v2011 = vsub.f32 %v468, %v2010
    %v2012 = vand.u32 %v2011, 4294901760
    %2013 = vmatpush1.msra.mxu0 %v2012
    %2014 = vmatprep.subr.mxu0 0.0
    %v2015 = vand.u32 %v471, 4294901760
    %v2016 = vsub.f32 %v471, %v2015
    %v2017 = vand.u32 %v2016, 4294901760
    %2018 = vmatpush1.msra.mxu0 %v2017
    %2019 = vmatprep.subr.mxu0 0.0
    %v2020 = vand.u32 %v474, 4294901760
    %v2021 = vsub.f32 %v474, %v2020
    %v2022 = vand.u32 %v2021, 4294901760
    %2023 = vmatpush1.msra.mxu0 %v2022
    %2024 = vmatprep.subr.mxu0 0.0
    %v2025 = vand.u32 %v477, 4294901760
    %v2026 = vsub.f32 %v477, %v2025
    %v2027 = vand.u32 %v2026, 4294901760
    %2028 = vmatpush1.msra.mxu0 %v2027
    %2029 = vmatprep.subr.mxu0 0.0
    %v2030 = vand.u32 %v480, 4294901760
    %v2031 = vsub.f32 %v480, %v2030
    %v2032 = vand.u32 %v2031, 4294901760
    %2033 = vmatpush1.msra.mxu0 %v2032
    %2034 = vmatprep.subr.mxu0 0.0
    %v2035 = vand.u32 %v483, 4294901760
    %v2036 = vsub.f32 %v483, %v2035
    %v2037 = vand.u32 %v2036, 4294901760
    %2038 = vmatpush1.msra.mxu0 %v2037
    %2039 = vmatprep.subr.mxu0 0.0
    %v2040 = vand.u32 %v552, 4294901760
    %v2041 = vsub.f32 %v552, %v2040
    %v2042 = vand.u32 %v2041, 4294901760
    %2043 = vmatpush1.msra.mxu0 %v2042
    %2044 = vmatprep.subr.mxu0 0.0
    %2045 = vmatpush1.msra.mxu0 0.0
    %2046 = vmatprep.subr.mxu0 0.0
    %2047 = vmatpush1.msra.mxu0 0.0
    %2048 = vmatprep.subr.mxu0 0.0
    %2049 = vmatpush1.msra.mxu0 0.0
    %2050 = vmatprep.subr.mxu0 0.0
    %2051 = vmatpush1.msra.mxu0 0.0
    %2052 = vmatprep.subr.mxu0 0.0
    %2053 = vmatpush1.msra.mxu0 0.0
    %2054 = vmatprep.subr.mxu0 0.0
    %2055 = vmatpush1.msra.mxu0 0.0
    %2056 = vmatprep.subr.mxu0 0.0
    %2057 = vmatpush1.msra.mxu0 0.0
    %2058 = vmatprep.subr.mxu0 0.0
    %2059 = vmatpush1.msra.mxu0 0.0
    %2060 = vmatprep.subr.mxu0 0.0
    %2061 = vmatpush1.msra.mxu0 0.0
    %2062 = vmatprep.subr.mxu0 0.0
    %2063 = vmatpush1.msra.mxu0 0.0
    %2064 = vmatprep.subr.mxu0 0.0
    %2065 = vmatpush1.msra.mxu0 0.0
    %2066 = vmatprep.subr.mxu0 0.0
    %2067 = vmatpush1.msra.mxu0 0.0
    %2068 = vmatprep.subr.mxu0 0.0
    %2069 = vmatpush1.msra.mxu0 0.0
    %2070 = vmatprep.subr.mxu0 0.0
    %2071 = vmatpush1.msra.mxu0 0.0
    %2072 = vmatprep.subr.mxu0 0.0
    %2073 = vmatpush1.msra.mxu0 0.0
    %2074 = vmatprep.subr.mxu0 0.0
    %2075 = vmatpush1.msra.mxu0 0.0
    %2076 = vmatprep.subr.mxu0 0.0
    %2077 = vmatpush1.msra.mxu0 0.0
    %2078 = vmatprep.subr.mxu0 0.0
    %2079 = vmatpush1.msra.mxu0 0.0
    %2080 = vmatprep.subr.mxu0 0.0
    %2081 = vmatpush1.msra.mxu0 0.0
    %2082 = vmatprep.subr.mxu0 0.0
    %2083 = vmatpush1.msra.mxu0 0.0
    %2084 = vmatprep.subr.mxu0 0.0
    %2085 = vmatpush1.msra.mxu0 0.0
    %2086 = vmatprep.subr.mxu0 0.0
    %2087 = vmatpush1.msra.mxu0 0.0
    %2088 = vmatprep.subr.mxu0 0.0
    %2089 = vmatpush1.msra.mxu0 0.0
    %2090 = vmatprep.subr.mxu0 0.0
    %2091 = vmatpush1.msra.mxu0 0.0
    %2092 = vmatprep.subr.mxu0 0.0
    %2093 = vmatpush1.msra.mxu0 0.0
    %2094 = vmatprep.mubr.f32.mxu0 0.0
    %v2095 = vand.u32 %v524, 4294901760
    %2096 = vmatmul.mubr.f32.gmra.mrb[0].mxu0 %v2095
    %v2097 = vpop.f32.mrb[0].mxu0
    %v2098 = vadd.f32 %v1958, %v2097
    %v2099 = vpop.f32.mrb[0].mxu0
    %2100 = vmatprep.mubr.f32.mxu0 0.0
    %v2101 = vand.u32 %v527, 4294901760
    %2102 = vmatmul.mubr.f32.gmra.mrb[0].mxu0 %v2101
    %v2103 = vpop.f32.mrb[0].mxu0
    %v2104 = vadd.f32 %v1966, %v2103
    %v2105 = vpop.f32.mrb[0].mxu0
    %2106 = vmatprep.mubr.f32.mxu0 0.0
    %v2107 = vand.u32 %v530, 4294901760
    %2108 = vmatmul.mubr.f32.gmra.mrb[0].mxu0 %v2107
    %v2109 = vpop.f32.mrb[0].mxu0
    %v2110 = vadd.f32 %v1974, %v2109
    %v2111 = vpop.f32.mrb[0].mxu0
    %2112 = vmatprep.mubr.f32.mxu0 0.0
    %v2113 = vand.u32 %v533, 4294901760
    %2114 = vmatmul.mubr.f32.gmra.mrb[0].mxu0 %v2113
    %v2115 = vpop.f32.mrb[0].mxu0
    %v2116 = vadd.f32 %v1982, %v2115
    %v2117 = vpop.f32.mrb[0].mxu0
    %2118 = vmatprep.mubr.f32.mxu0 0.0
    %v2119 = vand.u32 %v536, 4294901760
    %2120 = vmatmul.mubr.f32.gmra.mrb[0].mxu0 %v2119
    %v2121 = vpop.f32.mrb[0].mxu0
    %v2122 = vadd.f32 %v1990, %v2121
    %v2123 = vpop.f32.mrb[0].mxu0
    %2124 = vmatprep.mubr.f32.mxu0 0.0
    %v2125 = vand.u32 %v539, 4294901760
    %2126 = vmatmul.mubr.f32.gmra.mrb[0].mxu0 %v2125
    %v2127 = vpop.f32.mrb[0].mxu0
    %v2128 = vadd.f32 %v1998, %v2127
    %v2129 = vpop.f32.mrb[0].mxu0
    %2130 = vmatprep.mubr.f32.mxu0 0.0
    %v2131 = vand.u32 %v542, 4294901760
    %2132 = vmatmul.mubr.f32.gmra.mrb[0].mxu0 %v2131
    %v2133 = vpop.f32.mrb[0].mxu0
    %v2134 = vadd.f32 %v2006, %v2133
    %v2135 = vpop.f32.mrb[0].mxu0
    %2136 = vdwg.mxu0
    %2137 = vmatprep.subr.mxu0 0.0
    %v2138 = vand.u32 %v468, 4294901760
    %2139 = vmatpush1.msra.mxu0 %v2138
    %2140 = vmatprep.subr.mxu0 0.0
    %v2141 = vand.u32 %v471, 4294901760
    %2142 = vmatpush1.msra.mxu0 %v2141
    %2143 = vmatprep.subr.mxu0 0.0
    %v2144 = vand.u32 %v474, 4294901760
    %2145 = vmatpush1.msra.mxu0 %v2144
    %2146 = vmatprep.subr.mxu0 0.0
    %v2147 = vand.u32 %v477, 4294901760
    %2148 = vmatpush1.msra.mxu0 %v2147
    %2149 = vmatprep.subr.mxu0 0.0
    %v2150 = vand.u32 %v480, 4294901760
    %2151 = vmatpush1.msra.mxu0 %v2150
    %2152 = vmatprep.subr.mxu0 0.0
    %v2153 = vand.u32 %v483, 4294901760
    %2154 = vmatpush1.msra.mxu0 %v2153
    %2155 = vmatprep.subr.mxu0 0.0
    %v2156 = vand.u32 %v552, 4294901760
    %2157 = vmatpush1.msra.mxu0 %v2156
    %2158 = vmatprep.subr.mxu0 0.0
    %2159 = vmatpush1.msra.mxu0 0.0
    %2160 = vmatprep.subr.mxu0 0.0
    %2161 = vmatpush1.msra.mxu0 0.0
    %2162 = vmatprep.subr.mxu0 0.0
    %2163 = vmatpush1.msra.mxu0 0.0
    %2164 = vmatprep.subr.mxu0 0.0
    %2165 = vmatpush1.msra.mxu0 0.0
    %2166 = vmatprep.subr.mxu0 0.0
    %2167 = vmatpush1.msra.mxu0 0.0
    %2168 = vmatprep.subr.mxu0 0.0
    %2169 = vmatpush1.msra.mxu0 0.0
    %2170 = vmatprep.subr.mxu0 0.0
    %2171 = vmatpush1.msra.mxu0 0.0
    %2172 = vmatprep.subr.mxu0 0.0
    %2173 = vmatpush1.msra.mxu0 0.0
    %2174 = vmatprep.subr.mxu0 0.0
    %2175 = vmatpush1.msra.mxu0 0.0
    %2176 = vmatprep.subr.mxu0 0.0
    %2177 = vmatpush1.msra.mxu0 0.0
    %2178 = vmatprep.subr.mxu0 0.0
    %2179 = vmatpush1.msra.mxu0 0.0
    %2180 = vmatprep.subr.mxu0 0.0
    %2181 = vmatpush1.msra.mxu0 0.0
    %2182 = vmatprep.subr.mxu0 0.0
    %2183 = vmatpush1.msra.mxu0 0.0
    %2184 = vmatprep.subr.mxu0 0.0
    %2185 = vmatpush1.msra.mxu0 0.0
    %2186 = vmatprep.subr.mxu0 0.0
    %2187 = vmatpush1.msra.mxu0 0.0
    %2188 = vmatprep.subr.mxu0 0.0
    %2189 = vmatpush1.msra.mxu0 0.0
    %2190 = vmatprep.subr.mxu0 0.0
    %2191 = vmatpush1.msra.mxu0 0.0
    %2192 = vmatprep.subr.mxu0 0.0
    %2193 = vmatpush1.msra.mxu0 0.0
    %2194 = vmatprep.subr.mxu0 0.0
    %2195 = vmatpush1.msra.mxu0 0.0
    %2196 = vmatprep.subr.mxu0 0.0
    %2197 = vmatpush1.msra.mxu0 0.0
    %2198 = vmatprep.subr.mxu0 0.0
    %2199 = vmatpush1.msra.mxu0 0.0
    %2200 = vmatprep.subr.mxu0 0.0
    %2201 = vmatpush1.msra.mxu0 0.0
    %2202 = vmatprep.subr.mxu0 0.0
    %2203 = vmatpush1.msra.mxu0 0.0
    %2204 = vmatprep.subr.mxu0 0.0
    %2205 = vmatpush1.msra.mxu0 0.0
    %2206 = vmatprep.subr.mxu0 0.0
    %2207 = vmatpush1.msra.mxu0 0.0
    %2208 = vmatprep.mubr.f32.mxu0 0.0
    %v2209 = vand.u32 %v524, 4294901760
    %2210 = vmatmul.mubr.f32.gmra.mrb[0].mxu0 %v2209
    %v2211 = vpop.f32.mrb[0].mxu0
    %v2212 = vadd.f32 %v2098, %v2211
    %v2213 = vpop.f32.mrb[0].mxu0
    %2214 = vmatprep.mubr.f32.mxu0 0.0
    %v2215 = vand.u32 %v527, 4294901760
    %2216 = vmatmul.mubr.f32.gmra.mrb[0].mxu0 %v2215
    %v2217 = vpop.f32.mrb[0].mxu0
    %v2218 = vadd.f32 %v2104, %v2217
    %v2219 = vpop.f32.mrb[0].mxu0
    %2220 = vmatprep.mubr.f32.mxu0 0.0
    %v2221 = vand.u32 %v530, 4294901760
    %2222 = vmatmul.mubr.f32.gmra.mrb[0].mxu0 %v2221
    %v2223 = vpop.f32.mrb[0].mxu0
    %v2224 = vadd.f32 %v2110, %v2223
    %v2225 = vpop.f32.mrb[0].mxu0
    %2226 = vmatprep.mubr.f32.mxu0 0.0
    %v2227 = vand.u32 %v533, 4294901760
    %2228 = vmatmul.mubr.f32.gmra.mrb[0].mxu0 %v2227
    %v2229 = vpop.f32.mrb[0].mxu0
    %v2230 = vadd.f32 %v2116, %v2229
    %v2231 = vpop.f32.mrb[0].mxu0
    %2232 = vmatprep.mubr.f32.mxu0 0.0
    %v2233 = vand.u32 %v536, 4294901760
    %2234 = vmatmul.mubr.f32.gmra.mrb[0].mxu0 %v2233
    %v2235 = vpop.f32.mrb[0].mxu0
    %v2236 = vadd.f32 %v2122, %v2235
    %v2237 = vpop.f32.mrb[0].mxu0
    %2238 = vmatprep.mubr.f32.mxu0 0.0
    %v2239 = vand.u32 %v539, 4294901760
    %2240 = vmatmul.mubr.f32.gmra.mrb[0].mxu0 %v2239
    %v2241 = vpop.f32.mrb[0].mxu0
    %v2242 = vadd.f32 %v2128, %v2241
    %v2243 = vpop.f32.mrb[0].mxu0
    %2244 = vmatprep.mubr.f32.mxu0 0.0
    %v2245 = vand.u32 %v542, 4294901760
    %2246 = vmatmul.mubr.f32.gmra.mrb[0].mxu0 %v2245
    %v2247 = vpop.f32.mrb[0].mxu0
    %v2248 = vadd.f32 %v2134, %v2247
    %v2249 = vpop.f32.mrb[0].mxu0
    %2250 = vdwg.mxu0
    %v2251 = vtanh.pop %v1423
    %v2252 = vtanh.pop %v1425
    %v2253 = vtanh.pop %v2212
    %v2254 = vtanh.pop %v1430
    %v2255 = vtanh.pop %v1432
    %v2256 = vtanh.pop %v2218
    %v2257 = vtanh.pop %v1437
    %v2258 = vtanh.pop %v1439
    %v2259 = vtanh.pop %v2224
    %v2260 = vtanh.pop %v1444
    %v2261 = vtanh.pop %v1446
    %v2262 = vtanh.pop %v2230
    %v2263 = vtanh.pop %v1451
    %v2264 = vtanh.pop %v1453
    %v2265 = vtanh.pop %v2236
    %v2266 = vtanh.pop %v1458
    %v2267 = vtanh.pop %v1460
    %v2268 = vtanh.pop %v2242
    %v2269 = vtanh.pop %v1465
    %v2270 = vtanh.pop %v1467
    %v2271 = vtanh.pop %v2248
    %2272 = vset.pattern.permute.xlu0 4
    %2273 = vperm.xlu0 %2272, %v24
    %v2274 = vpop.permute.xlu0 %2273
    %2276 = vset.pattern.permute.xlu0 4
    %2277 = vperm.xlu0 %2276, %v25
    %v2278 = vpop.permute.xlu0 %2277
    %2280 = vset.pattern.permute.xlu0 4
    %2281 = vperm.xlu0 %2280, %v26
    %v2282 = vpop.permute.xlu0 %2281
    %2284 = vset.pattern.permute.xlu0 4
    %2285 = vperm.xlu0 %2284, %v27
    %v2286 = vpop.permute.xlu0 %2285
    %2288 = vset.pattern.permute.xlu0 4
    %2289 = vperm.xlu0 %2288, %v28
    %v2290 = vpop.permute.xlu0 %2289
    %2292 = vset.pattern.permute.xlu0 4
    %2293 = vperm.xlu0 %2292, %v29
    %v2294 = vpop.permute.xlu0 %2293
    %2296 = vset.pattern.permute.xlu0 4
    %2297 = vperm.xlu0 %2296, %v30
    %v2298 = vpop.permute.xlu0 %2297
    %v2300 = vmul.f32 %v2274, %v1423
    %v2301 = vmul.f32 %v2274, %v1425
    %v2302 = vmul.f32 %v2274, %v2212
    %v2303 = vmul.f32 %v2278, %v1430
    %v2304 = vmul.f32 %v2278, %v1432
    %v2305 = vmul.f32 %v2278, %v2218
    %v2306 = vmul.f32 %v2282, %v1437
    %v2307 = vmul.f32 %v2282, %v1439
    %v2308 = vmul.f32 %v2282, %v2224
    %v2309 = vmul.f32 %v2286, %v1444
    %v2310 = vmul.f32 %v2286, %v1446
    %v2311 = vmul.f32 %v2286, %v2230
    %v2312 = vmul.f32 %v2290, %v1451
    %v2313 = vmul.f32 %v2290, %v1453
    %v2314 = vmul.f32 %v2290, %v2236
    %v2315 = vmul.f32 %v2294, %v1458
    %v2316 = vmul.f32 %v2294, %v1460
    %v2317 = vmul.f32 %v2294, %v2242
    %v2318 = vmul.f32 %v2298, %v1465
    %v2319 = vmul.f32 %v2298, %v1467
    %v2320 = vmul.f32 %v2298, %v2248
    %v2321 = vmul.f32 %v2300, %v2251
    %v2322 = vmul.f32 %v2301, %v2252
    %v2323 = vmul.f32 %v2302, %v2253
    %v2324 = vmul.f32 %v2303, %v2254
    %v2325 = vmul.f32 %v2304, %v2255
    %v2326 = vmul.f32 %v2305, %v2256
    %v2327 = vmul.f32 %v2306, %v2257
    %v2328 = vmul.f32 %v2307, %v2258
    %v2329 = vmul.f32 %v2308, %v2259
    %v2330 = vmul.f32 %v2309, %v2260
    %v2331 = vmul.f32 %v2310, %v2261
    %v2332 = vmul.f32 %v2311, %v2262
    %v2333 = vmul.f32 %v2312, %v2263
    %v2334 = vmul.f32 %v2313, %v2264
    %v2335 = vmul.f32 %v2314, %v2265
    %v2336 = vmul.f32 %v2315, %v2266
    %v2337 = vmul.f32 %v2316, %v2267
    %v2338 = vmul.f32 %v2317, %v2268
    %v2339 = vmul.f32 %v2318, %v2269
    %v2340 = vmul.f32 %v2319, %v2270
    %v2341 = vmul.f32 %v2320, %v2271
    %v2342 = vadd.f32 %v2251, %v2321
    %v2343 = vadd.f32 %v2252, %v2322
    %v2344 = vadd.f32 %v2253, %v2323
    %v2345 = vadd.f32 %v2254, %v2324
    %v2346 = vadd.f32 %v2255, %v2325
    %v2347 = vadd.f32 %v2256, %v2326
    %v2348 = vadd.f32 %v2257, %v2327
    %v2349 = vadd.f32 %v2258, %v2328
    %v2350 = vadd.f32 %v2259, %v2329
    %v2351 = vadd.f32 %v2260, %v2330
    %v2352 = vadd.f32 %v2261, %v2331
    %v2353 = vadd.f32 %v2262, %v2332
    %v2354 = vadd.f32 %v2263, %v2333
    %v2355 = vadd.f32 %v2264, %v2334
    %v2356 = vadd.f32 %v2265, %v2335
    %v2357 = vadd.f32 %v2266, %v2336
    %v2358 = vadd.f32 %v2267, %v2337
    %v2359 = vadd.f32 %v2268, %v2338
    %v2360 = vadd.f32 %v2269, %v2339
    %v2361 = vadd.f32 %v2270, %v2340
    %v2362 = vadd.f32 %v2271, %v2341
    %v2363 = vld [vmem:[%s3] sm:$0xff]
    %v2364 = vld [vmem:[%s3 + $0x8] sm:$0xff]
    %v2365 = vld [vmem:[%s3 + $0x10] sm:$0xff]
    %v2366 = vld [vmem:[%s3 + $0x18] sm:$0xff]
    %v2367 = vld [vmem:[%s3 + $0x20] sm:$0xff]
    %v2368 = vld [vmem:[%s3 + $0x28] sm:$0xff]
    %v2369 = vld [vmem:[%s3 + $0x30] sm:$0x3]
    %2370 = vset.pattern.permute.xlu0 2
    %2371 = vperm.xlu0 %2370, %v24
    %v2372 = vpop.permute.xlu0 %2371
    %2374 = vset.pattern.permute.xlu0 2
    %2375 = vperm.xlu0 %2374, %v25
    %v2376 = vpop.permute.xlu0 %2375
    %2378 = vset.pattern.permute.xlu0 2
    %2379 = vperm.xlu0 %2378, %v26
    %v2380 = vpop.permute.xlu0 %2379
    %2382 = vset.pattern.permute.xlu0 2
    %2383 = vperm.xlu0 %2382, %v27
    %v2384 = vpop.permute.xlu0 %2383
    %2386 = vset.pattern.permute.xlu0 2
    %2387 = vperm.xlu0 %2386, %v28
    %v2388 = vpop.permute.xlu0 %2387
    %2390 = vset.pattern.permute.xlu0 2
    %2391 = vperm.xlu0 %2390, %v29
    %v2392 = vpop.permute.xlu0 %2391
    %2394 = vset.pattern.permute.xlu0 2
    %2395 = vperm.xlu0 %2394, %v30
    %v2396 = vpop.permute.xlu0 %2395
    %v2399 = vsel %vm522, %v2363, 0
    %v2402 = vsel %vm522, %v2364, 0
    %v2405 = vsel %vm522, %v2365, 0
    %v2408 = vsel %vm522, %v2366, 0
    %v2411 = vsel %vm522, %v2367, 0
    %v2414 = vsel %vm522, %v2368, 0
    %v2417 = vsel %vm522, %v2369, 0
    %v2420 = vsel %vm544, %v2360, 0
    %v2423 = vsel %vm544, %v2361, 0
    %v2426 = vsel %vm544, %v2362, 0
    %v2428 = vand.u32 %v2343, 4294901760
    %2429 = vmatprep.subr.mxu0 %v2428
    %v2430 = vand.u32 %v2342, 4294901760
    %2431 = vmatpush1.msra.mxu0 %v2430
    %v2432 = vand.u32 %v2346, 4294901760
    %2433 = vmatprep.subr.mxu0 %v2432
    %v2434 = vand.u32 %v2345, 4294901760
    %2435 = vmatpush1.msra.mxu0 %v2434
    %v2436 = vand.u32 %v2349, 4294901760
    %2437 = vmatprep.subr.mxu0 %v2436
    %v2438 = vand.u32 %v2348, 4294901760
    %2439 = vmatpush1.msra.mxu0 %v2438
    %v2440 = vand.u32 %v2352, 4294901760
    %2441 = vmatprep.subr.mxu0 %v2440
    %v2442 = vand.u32 %v2351, 4294901760
    %2443 = vmatpush1.msra.mxu0 %v2442
    %v2444 = vand.u32 %v2355, 4294901760
    %2445 = vmatprep.subr.mxu0 %v2444
    %v2446 = vand.u32 %v2354, 4294901760
    %2447 = vmatpush1.msra.mxu0 %v2446
    %v2448 = vand.u32 %v2358, 4294901760
    %2449 = vmatprep.subr.mxu0 %v2448
    %v2450 = vand.u32 %v2357, 4294901760
    %2451 = vmatpush1.msra.mxu0 %v2450
    %v2452 = vand.u32 %v2423, 4294901760
    %2453 = vmatprep.subr.mxu0 %v2452
    %v2454 = vand.u32 %v2420, 4294901760
    %2455 = vmatpush1.msra.mxu0 %v2454
    %2456 = vmatprep.subr.mxu0 0.0
    %2457 = vmatpush1.msra.mxu0 0.0
    %2458 = vmatprep.subr.mxu0 0.0
    %2459 = vmatpush1.msra.mxu0 0.0
    %2460 = vmatprep.subr.mxu0 0.0
    %2461 = vmatpush1.msra.mxu0 0.0
    %2462 = vmatprep.subr.mxu0 0.0
    %2463 = vmatpush1.msra.mxu0 0.0
    %2464 = vmatprep.subr.mxu0 0.0
    %2465 = vmatpush1.msra.mxu0 0.0
    %2466 = vmatprep.subr.mxu0 0.0
    %2467 = vmatpush1.msra.mxu0 0.0
    %2468 = vmatprep.subr.mxu0 0.0
    %2469 = vmatpush1.msra.mxu0 0.0
    %2470 = vmatprep.subr.mxu0 0.0
    %2471 = vmatpush1.msra.mxu0 0.0
    %2472 = vmatprep.subr.mxu0 0.0
    %2473 = vmatpush1.msra.mxu0 0.0
    %2474 = vmatprep.subr.mxu0 0.0
    %2475 = vmatpush1.msra.mxu0 0.0
    %2476 = vmatprep.subr.mxu0 0.0
    %2477 = vmatpush1.msra.mxu0 0.0
    %2478 = vmatprep.subr.mxu0 0.0
    %2479 = vmatpush1.msra.mxu0 0.0
    %2480 = vmatprep.subr.mxu0 0.0
    %2481 = vmatpush1.msra.mxu0 0.0
    %2482 = vmatprep.subr.mxu0 0.0
    %2483 = vmatpush1.msra.mxu0 0.0
    %2484 = vmatprep.subr.mxu0 0.0
    %2485 = vmatpush1.msra.mxu0 0.0
    %2486 = vmatprep.subr.mxu0 0.0
    %2487 = vmatpush1.msra.mxu0 0.0
    %2488 = vmatprep.subr.mxu0 0.0
    %2489 = vmatpush1.msra.mxu0 0.0
    %2490 = vmatprep.subr.mxu0 0.0
    %2491 = vmatpush1.msra.mxu0 0.0
    %2492 = vmatprep.subr.mxu0 0.0
    %2493 = vmatpush1.msra.mxu0 0.0
    %2494 = vmatprep.subr.mxu0 0.0
    %2495 = vmatpush1.msra.mxu0 0.0
    %2496 = vmatprep.subr.mxu0 0.0
    %2497 = vmatpush1.msra.mxu0 0.0
    %2498 = vmatprep.subr.mxu0 0.0
    %2499 = vmatpush1.msra.mxu0 0.0
    %2500 = vmatprep.subr.mxu0 0.0
    %2501 = vmatpush1.msra.mxu0 0.0
    %2502 = vmatprep.subr.mxu0 0.0
    %2503 = vmatpush1.msra.mxu0 0.0
    %2504 = vmatprep.subr.mxu0 0.0
    %2505 = vmatpush1.msra.mxu0 0.0
    %2506 = vmatprep.mubr.f32.mxu0 0.0
    %v2507 = vand.u32 %v2399, 4294901760
    %v2508 = vsub.f32 %v2399, %v2507
    %v2509 = vand.u32 %v2508, 4294901760
    %v2510 = vsub.f32 %v2508, %v2509
    %v2511 = vand.u32 %v2510, 4294901760
    %2512 = vmatmul.mubr.f32.gmra.mrb[0].mxu0 %v2511
    %v2513 = vpop.f32.mrb[0].mxu0
    %v2514 = vadd.f32 %v2372, %v2513
    %v2515 = vpop.f32.mrb[0].mxu0
    %v2516 = vadd.f32 %v2372, %v2515
    %2517 = vmatprep.mubr.f32.mxu0 0.0
    %v2518 = vand.u32 %v2402, 4294901760
    %v2519 = vsub.f32 %v2402, %v2518
    %v2520 = vand.u32 %v2519, 4294901760
    %v2521 = vsub.f32 %v2519, %v2520
    %v2522 = vand.u32 %v2521, 4294901760
    %2523 = vmatmul.mubr.f32.gmra.mrb[0].mxu0 %v2522
    %v2524 = vpop.f32.mrb[0].mxu0
    %v2525 = vadd.f32 %v2376, %v2524
    %v2526 = vpop.f32.mrb[0].mxu0
    %v2527 = vadd.f32 %v2376, %v2526
    %2528 = vmatprep.mubr.f32.mxu0 0.0
    %v2529 = vand.u32 %v2405, 4294901760
    %v2530 = vsub.f32 %v2405, %v2529
    %v2531 = vand.u32 %v2530, 4294901760
    %v2532 = vsub.f32 %v2530, %v2531
    %v2533 = vand.u32 %v2532, 4294901760
    %2534 = vmatmul.mubr.f32.gmra.mrb[0].mxu0 %v2533
    %v2535 = vpop.f32.mrb[0].mxu0
    %v2536 = vadd.f32 %v2380, %v2535
    %v2537 = vpop.f32.mrb[0].mxu0
    %v2538 = vadd.f32 %v2380, %v2537
    %2539 = vmatprep.mubr.f32.mxu0 0.0
    %v2540 = vand.u32 %v2408, 4294901760
    %v2541 = vsub.f32 %v2408, %v2540
    %v2542 = vand.u32 %v2541, 4294901760
    %v2543 = vsub.f32 %v2541, %v2542
    %v2544 = vand.u32 %v2543, 4294901760
    %2545 = vmatmul.mubr.f32.gmra.mrb[0].mxu0 %v2544
    %v2546 = vpop.f32.mrb[0].mxu0
    %v2547 = vadd.f32 %v2384, %v2546
    %v2548 = vpop.f32.mrb[0].mxu0
    %v2549 = vadd.f32 %v2384, %v2548
    %2550 = vmatprep.mubr.f32.mxu0 0.0
    %v2551 = vand.u32 %v2411, 4294901760
    %v2552 = vsub.f32 %v2411, %v2551
    %v2553 = vand.u32 %v2552, 4294901760
    %v2554 = vsub.f32 %v2552, %v2553
    %v2555 = vand.u32 %v2554, 4294901760
    %2556 = vmatmul.mubr.f32.gmra.mrb[0].mxu0 %v2555
    %v2557 = vpop.f32.mrb[0].mxu0
    %v2558 = vadd.f32 %v2388, %v2557
    %v2559 = vpop.f32.mrb[0].mxu0
    %v2560 = vadd.f32 %v2388, %v2559
    %2561 = vmatprep.mubr.f32.mxu0 0.0
    %v2562 = vand.u32 %v2414, 4294901760
    %v2563 = vsub.f32 %v2414, %v2562
    %v2564 = vand.u32 %v2563, 4294901760
    %v2565 = vsub.f32 %v2563, %v2564
    %v2566 = vand.u32 %v2565, 4294901760
    %2567 = vmatmul.mubr.f32.gmra.mrb[0].mxu0 %v2566
    %v2568 = vpop.f32.mrb[0].mxu0
    %v2569 = vadd.f32 %v2392, %v2568
    %v2570 = vpop.f32.mrb[0].mxu0
    %v2571 = vadd.f32 %v2392, %v2570
    %2572 = vmatprep.mubr.f32.mxu0 0.0
    %v2573 = vand.u32 %v2417, 4294901760
    %v2574 = vsub.f32 %v2417, %v2573
    %v2575 = vand.u32 %v2574, 4294901760
    %v2576 = vsub.f32 %v2574, %v2575
    %v2577 = vand.u32 %v2576, 4294901760
    %2578 = vmatmul.mubr.f32.gmra.mrb[0].mxu0 %v2577
    %v2579 = vpop.f32.mrb[0].mxu0
    %v2580 = vadd.f32 %v2396, %v2579
    %v2581 = vpop.f32.mrb[0].mxu0
    %v2582 = vadd.f32 %v2396, %v2581
    %2583 = vdwg.mxu0
    %v2584 = vand.u32 %v2343, 4294901760
    %v2585 = vsub.f32 %v2343, %v2584
    %v2586 = vand.u32 %v2585, 4294901760
    %v2587 = vsub.f32 %v2585, %v2586
    %v2588 = vand.u32 %v2587, 4294901760
    %2589 = vmatprep.subr.mxu0 %v2588
    %v2590 = vand.u32 %v2342, 4294901760
    %v2591 = vsub.f32 %v2342, %v2590
    %v2592 = vand.u32 %v2591, 4294901760
    %v2593 = vsub.f32 %v2591, %v2592
    %v2594 = vand.u32 %v2593, 4294901760
    %2595 = vmatpush1.msra.mxu0 %v2594
    %v2596 = vand.u32 %v2346, 4294901760
    %v2597 = vsub.f32 %v2346, %v2596
    %v2598 = vand.u32 %v2597, 4294901760
    %v2599 = vsub.f32 %v2597, %v2598
    %v2600 = vand.u32 %v2599, 4294901760
    %2601 = vmatprep.subr.mxu0 %v2600
    %v2602 = vand.u32 %v2345, 4294901760
    %v2603 = vsub.f32 %v2345, %v2602
    %v2604 = vand.u32 %v2603, 4294901760
    %v2605 = vsub.f32 %v2603, %v2604
    %v2606 = vand.u32 %v2605, 4294901760
    %2607 = vmatpush1.msra.mxu0 %v2606
    %v2608 = vand.u32 %v2349, 4294901760
    %v2609 = vsub.f32 %v2349, %v2608
    %v2610 = vand.u32 %v2609, 4294901760
    %v2611 = vsub.f32 %v2609, %v2610
    %v2612 = vand.u32 %v2611, 4294901760
    %2613 = vmatprep.subr.mxu0 %v2612
    %v2614 = vand.u32 %v2348, 4294901760
    %v2615 = vsub.f32 %v2348, %v2614
    %v2616 = vand.u32 %v2615, 4294901760
    %v2617 = vsub.f32 %v2615, %v2616
    %v2618 = vand.u32 %v2617, 4294901760
    %2619 = vmatpush1.msra.mxu0 %v2618
    %v2620 = vand.u32 %v2352, 4294901760
    %v2621 = vsub.f32 %v2352, %v2620
    %v2622 = vand.u32 %v2621, 4294901760
    %v2623 = vsub.f32 %v2621, %v2622
    %v2624 = vand.u32 %v2623, 4294901760
    %2625 = vmatprep.subr.mxu0 %v2624
    %v2626 = vand.u32 %v2351, 4294901760
    %v2627 = vsub.f32 %v2351, %v2626
    %v2628 = vand.u32 %v2627, 4294901760
    %v2629 = vsub.f32 %v2627, %v2628
    %v2630 = vand.u32 %v2629, 4294901760
    %2631 = vmatpush1.msra.mxu0 %v2630
    %v2632 = vand.u32 %v2355, 4294901760
    %v2633 = vsub.f32 %v2355, %v2632
    %v2634 = vand.u32 %v2633, 4294901760
    %v2635 = vsub.f32 %v2633, %v2634
    %v2636 = vand.u32 %v2635, 4294901760
    %2637 = vmatprep.subr.mxu0 %v2636
    %v2638 = vand.u32 %v2354, 4294901760
    %v2639 = vsub.f32 %v2354, %v2638
    %v2640 = vand.u32 %v2639, 4294901760
    %v2641 = vsub.f32 %v2639, %v2640
    %v2642 = vand.u32 %v2641, 4294901760
    %2643 = vmatpush1.msra.mxu0 %v2642
    %v2644 = vand.u32 %v2358, 4294901760
    %v2645 = vsub.f32 %v2358, %v2644
    %v2646 = vand.u32 %v2645, 4294901760
    %v2647 = vsub.f32 %v2645, %v2646
    %v2648 = vand.u32 %v2647, 4294901760
    %2649 = vmatprep.subr.mxu0 %v2648
    %v2650 = vand.u32 %v2357, 4294901760
    %v2651 = vsub.f32 %v2357, %v2650
    %v2652 = vand.u32 %v2651, 4294901760
    %v2653 = vsub.f32 %v2651, %v2652
    %v2654 = vand.u32 %v2653, 4294901760
    %2655 = vmatpush1.msra.mxu0 %v2654
    %v2656 = vand.u32 %v2423, 4294901760
    %v2657 = vsub.f32 %v2423, %v2656
    %v2658 = vand.u32 %v2657, 4294901760
    %v2659 = vsub.f32 %v2657, %v2658
    %v2660 = vand.u32 %v2659, 4294901760
    %2661 = vmatprep.subr.mxu0 %v2660
    %v2662 = vand.u32 %v2420, 4294901760
    %v2663 = vsub.f32 %v2420, %v2662
    %v2664 = vand.u32 %v2663, 4294901760
    %v2665 = vsub.f32 %v2663, %v2664
    %v2666 = vand.u32 %v2665, 4294901760
    %2667 = vmatpush1.msra.mxu0 %v2666
    %2668 = vmatprep.subr.mxu0 0.0
    %2669 = vmatpush1.msra.mxu0 0.0
    %2670 = vmatprep.subr.mxu0 0.0
    %2671 = vmatpush1.msra.mxu0 0.0
    %2672 = vmatprep.subr.mxu0 0.0
    %2673 = vmatpush1.msra.mxu0 0.0
    %2674 = vmatprep.subr.mxu0 0.0
    %2675 = vmatpush1.msra.mxu0 0.0
    %2676 = vmatprep.subr.mxu0 0.0
    %2677 = vmatpush1.msra.mxu0 0.0
    %2678 = vmatprep.subr.mxu0 0.0
    %2679 = vmatpush1.msra.mxu0 0.0
    %2680 = vmatprep.subr.mxu0 0.0
    %2681 = vmatpush1.msra.mxu0 0.0
    %2682 = vmatprep.subr.mxu0 0.0
    %2683 = vmatpush1.msra.mxu0 0.0
    %2684 = vmatprep.subr.mxu0 0.0
    %2685 = vmatpush1.msra.mxu0 0.0
    %2686 = vmatprep.subr.mxu0 0.0
    %2687 = vmatpush1.msra.mxu0 0.0
    %2688 = vmatprep.subr.mxu0 0.0
    %2689 = vmatpush1.msra.mxu0 0.0
    %2690 = vmatprep.subr.mxu0 0.0
    %2691 = vmatpush1.msra.mxu0 0.0
    %2692 = vmatprep.subr.mxu0 0.0
    %2693 = vmatpush1.msra.mxu0 0.0
    %2694 = vmatprep.subr.mxu0 0.0
    %2695 = vmatpush1.msra.mxu0 0.0
    %2696 = vmatprep.subr.mxu0 0.0
    %2697 = vmatpush1.msra.mxu0 0.0
    %2698 = vmatprep.subr.mxu0 0.0
    %2699 = vmatpush1.msra.mxu0 0.0
    %2700 = vmatprep.subr.mxu0 0.0
    %2701 = vmatpush1.msra.mxu0 0.0
    %2702 = vmatprep.subr.mxu0 0.0
    %2703 = vmatpush1.msra.mxu0 0.0
    %2704 = vmatprep.subr.mxu0 0.0
    %2705 = vmatpush1.msra.mxu0 0.0
    %2706 = vmatprep.subr.mxu0 0.0
    %2707 = vmatpush1.msra.mxu0 0.0
    %2708 = vmatprep.subr.mxu0 0.0
    %2709 = vmatpush1.msra.mxu0 0.0
    %2710 = vmatprep.subr.mxu0 0.0
    %2711 = vmatpush1.msra.mxu0 0.0
    %2712 = vmatprep.subr.mxu0 0.0
    %2713 = vmatpush1.msra.mxu0 0.0
    %2714 = vmatprep.subr.mxu0 0.0
    %2715 = vmatpush1.msra.mxu0 0.0
    %2716 = vmatprep.subr.mxu0 0.0
    %2717 = vmatpush1.msra.mxu0 0.0
    %2718 = vmatprep.mubr.f32.mxu0 0.0
    %v2719 = vand.u32 %v2399, 4294901760
    %2720 = vmatmul.mubr.f32.gmra.mrb[0].mxu0 %v2719
    %v2721 = vpop.f32.mrb[0].mxu0
    %v2722 = vadd.f32 %v2514, %v2721
    %v2723 = vpop.f32.mrb[0].mxu0
    %v2724 = vadd.f32 %v2516, %v2723
    %2725 = vmatprep.mubr.f32.mxu0 0.0
    %v2726 = vand.u32 %v2402, 4294901760
    %2727 = vmatmul.mubr.f32.gmra.mrb[0].mxu0 %v2726
    %v2728 = vpop.f32.mrb[0].mxu0
    %v2729 = vadd.f32 %v2525, %v2728
    %v2730 = vpop.f32.mrb[0].mxu0
    %v2731 = vadd.f32 %v2527, %v2730
    %2732 = vmatprep.mubr.f32.mxu0 0.0
    %v2733 = vand.u32 %v2405, 4294901760
    %2734 = vmatmul.mubr.f32.gmra.mrb[0].mxu0 %v2733
    %v2735 = vpop.f32.mrb[0].mxu0
    %v2736 = vadd.f32 %v2536, %v2735
    %v2737 = vpop.f32.mrb[0].mxu0
    %v2738 = vadd.f32 %v2538, %v2737
    %2739 = vmatprep.mubr.f32.mxu0 0.0
    %v2740 = vand.u32 %v2408, 4294901760
    %2741 = vmatmul.mubr.f32.gmra.mrb[0].mxu0 %v2740
    %v2742 = vpop.f32.mrb[0].mxu0
    %v2743 = vadd.f32 %v2547, %v2742
    %v2744 = vpop.f32.mrb[0].mxu0
    %v2745 = vadd.f32 %v2549, %v2744
    %2746 = vmatprep.mubr.f32.mxu0 0.0
    %v2747 = vand.u32 %v2411, 4294901760
    %2748 = vmatmul.mubr.f32.gmra.mrb[0].mxu0 %v2747
    %v2749 = vpop.f32.mrb[0].mxu0
    %v2750 = vadd.f32 %v2558, %v2749
    %v2751 = vpop.f32.mrb[0].mxu0
    %v2752 = vadd.f32 %v2560, %v2751
    %2753 = vmatprep.mubr.f32.mxu0 0.0
    %v2754 = vand.u32 %v2414, 4294901760
    %2755 = vmatmul.mubr.f32.gmra.mrb[0].mxu0 %v2754
    %v2756 = vpop.f32.mrb[0].mxu0
    %v2757 = vadd.f32 %v2569, %v2756
    %v2758 = vpop.f32.mrb[0].mxu0
    %v2759 = vadd.f32 %v2571, %v2758
    %2760 = vmatprep.mubr.f32.mxu0 0.0
    %v2761 = vand.u32 %v2417, 4294901760
    %2762 = vmatmul.mubr.f32.gmra.mrb[0].mxu0 %v2761
    %v2763 = vpop.f32.mrb[0].mxu0
    %v2764 = vadd.f32 %v2580, %v2763
    %v2765 = vpop.f32.mrb[0].mxu0
    %v2766 = vadd.f32 %v2582, %v2765
    %2767 = vdwg.mxu0
    %v2768 = vand.u32 %v2343, 4294901760
    %v2769 = vsub.f32 %v2343, %v2768
    %2770 = vmatprep.subr.mxu0 %v2769
    %v2771 = vand.u32 %v2342, 4294901760
    %v2772 = vsub.f32 %v2342, %v2771
    %2773 = vmatpush1.msra.mxu0 %v2772
    %v2774 = vand.u32 %v2346, 4294901760
    %v2775 = vsub.f32 %v2346, %v2774
    %2776 = vmatprep.subr.mxu0 %v2775
    %v2777 = vand.u32 %v2345, 4294901760
    %v2778 = vsub.f32 %v2345, %v2777
    %2779 = vmatpush1.msra.mxu0 %v2778
    %v2780 = vand.u32 %v2349, 4294901760
    %v2781 = vsub.f32 %v2349, %v2780
    %2782 = vmatprep.subr.mxu0 %v2781
    %v2783 = vand.u32 %v2348, 4294901760
    %v2784 = vsub.f32 %v2348, %v2783
    %2785 = vmatpush1.msra.mxu0 %v2784
    %v2786 = vand.u32 %v2352, 4294901760
    %v2787 = vsub.f32 %v2352, %v2786
    %2788 = vmatprep.subr.mxu0 %v2787
    %v2789 = vand.u32 %v2351, 4294901760
    %v2790 = vsub.f32 %v2351, %v2789
    %2791 = vmatpush1.msra.mxu0 %v2790
    %v2792 = vand.u32 %v2355, 4294901760
    %v2793 = vsub.f32 %v2355, %v2792
    %2794 = vmatprep.subr.mxu0 %v2793
    %v2795 = vand.u32 %v2354, 4294901760
    %v2796 = vsub.f32 %v2354, %v2795
    %2797 = vmatpush1.msra.mxu0 %v2796
    %v2798 = vand.u32 %v2358, 4294901760
    %v2799 = vsub.f32 %v2358, %v2798
    %2800 = vmatprep.subr.mxu0 %v2799
    %v2801 = vand.u32 %v2357, 4294901760
    %v2802 = vsub.f32 %v2357, %v2801
    %2803 = vmatpush1.msra.mxu0 %v2802
    %v2804 = vand.u32 %v2423, 4294901760
    %v2805 = vsub.f32 %v2423, %v2804
    %2806 = vmatprep.subr.mxu0 %v2805
    %v2807 = vand.u32 %v2420, 4294901760
    %v2808 = vsub.f32 %v2420, %v2807
    %2809 = vmatpush1.msra.mxu0 %v2808
    %2810 = vmatprep.subr.mxu0 0.0
    %2811 = vmatpush1.msra.mxu0 0.0
    %2812 = vmatprep.subr.mxu0 0.0
    %2813 = vmatpush1.msra.mxu0 0.0
    %2814 = vmatprep.subr.mxu0 0.0
    %2815 = vmatpush1.msra.mxu0 0.0
    %2816 = vmatprep.subr.mxu0 0.0
    %2817 = vmatpush1.msra.mxu0 0.0
    %2818 = vmatprep.subr.mxu0 0.0
    %2819 = vmatpush1.msra.mxu0 0.0
    %2820 = vmatprep.subr.mxu0 0.0
    %2821 = vmatpush1.msra.mxu0 0.0
    %2822 = vmatprep.subr.mxu0 0.0
    %2823 = vmatpush1.msra.mxu0 0.0
    %2824 = vmatprep.subr.mxu0 0.0
    %2825 = vmatpush1.msra.mxu0 0.0
    %2826 = vmatprep.subr.mxu0 0.0
    %2827 = vmatpush1.msra.mxu0 0.0
    %2828 = vmatprep.subr.mxu0 0.0
    %2829 = vmatpush1.msra.mxu0 0.0
    %2830 = vmatprep.subr.mxu0 0.0
    %2831 = vmatpush1.msra.mxu0 0.0
    %2832 = vmatprep.subr.mxu0 0.0
    %2833 = vmatpush1.msra.mxu0 0.0
    %2834 = vmatprep.subr.mxu0 0.0
    %2835 = vmatpush1.msra.mxu0 0.0
    %2836 = vmatprep.subr.mxu0 0.0
    %2837 = vmatpush1.msra.mxu0 0.0
    %2838 = vmatprep.subr.mxu0 0.0
    %2839 = vmatpush1.msra.mxu0 0.0
    %2840 = vmatprep.subr.mxu0 0.0
    %2841 = vmatpush1.msra.mxu0 0.0
    %2842 = vmatprep.subr.mxu0 0.0
    %2843 = vmatpush1.msra.mxu0 0.0
    %2844 = vmatprep.subr.mxu0 0.0
    %2845 = vmatpush1.msra.mxu0 0.0
    %2846 = vmatprep.subr.mxu0 0.0
    %2847 = vmatpush1.msra.mxu0 0.0
    %2848 = vmatprep.subr.mxu0 0.0
    %2849 = vmatpush1.msra.mxu0 0.0
    %2850 = vmatprep.subr.mxu0 0.0
    %2851 = vmatpush1.msra.mxu0 0.0
    %2852 = vmatprep.subr.mxu0 0.0
    %2853 = vmatpush1.msra.mxu0 0.0
    %2854 = vmatprep.subr.mxu0 0.0
    %2855 = vmatpush1.msra.mxu0 0.0
    %2856 = vmatprep.subr.mxu0 0.0
    %2857 = vmatpush1.msra.mxu0 0.0
    %2858 = vmatprep.subr.mxu0 0.0
    %2859 = vmatpush1.msra.mxu0 0.0
    %2860 = vmatprep.mubr.f32.mxu0 0.0
    %v2861 = vand.u32 %v2399, 4294901760
    %v2862 = vsub.f32 %v2399, %v2861
    %2863 = vmatmul.mubr.f32.gmra.mrb[0].mxu0 %v2862
    %v2864 = vpop.f32.mrb[0].mxu0
    %v2865 = vadd.f32 %v2722, %v2864
    %v2866 = vpop.f32.mrb[0].mxu0
    %v2867 = vadd.f32 %v2724, %v2866
    %2868 = vmatprep.mubr.f32.mxu0 0.0
    %v2869 = vand.u32 %v2402, 4294901760
    %v2870 = vsub.f32 %v2402, %v2869
    %2871 = vmatmul.mubr.f32.gmra.mrb[0].mxu0 %v2870
    %v2872 = vpop.f32.mrb[0].mxu0
    %v2873 = vadd.f32 %v2729, %v2872
    %v2874 = vpop.f32.mrb[0].mxu0
    %v2875 = vadd.f32 %v2731, %v2874
    %2876 = vmatprep.mubr.f32.mxu0 0.0
    %v2877 = vand.u32 %v2405, 4294901760
    %v2878 = vsub.f32 %v2405, %v2877
    %2879 = vmatmul.mubr.f32.gmra.mrb[0].mxu0 %v2878
    %v2880 = vpop.f32.mrb[0].mxu0
    %v2881 = vadd.f32 %v2736, %v2880
    %v2882 = vpop.f32.mrb[0].mxu0
    %v2883 = vadd.f32 %v2738, %v2882
    %2884 = vmatprep.mubr.f32.mxu0 0.0
    %v2885 = vand.u32 %v2408, 4294901760
    %v2886 = vsub.f32 %v2408, %v2885
    %2887 = vmatmul.mubr.f32.gmra.mrb[0].mxu0 %v2886
    %v2888 = vpop.f32.mrb[0].mxu0
    %v2889 = vadd.f32 %v2743, %v2888
    %v2890 = vpop.f32.mrb[0].mxu0
    %v2891 = vadd.f32 %v2745, %v2890
    %2892 = vmatprep.mubr.f32.mxu0 0.0
    %v2893 = vand.u32 %v2411, 4294901760
    %v2894 = vsub.f32 %v2411, %v2893
    %2895 = vmatmul.mubr.f32.gmra.mrb[0].mxu0 %v2894
    %v2896 = vpop.f32.mrb[0].mxu0
    %v2897 = vadd.f32 %v2750, %v2896
    %v2898 = vpop.f32.mrb[0].mxu0
    %v2899 = vadd.f32 %v2752, %v2898
    %2900 = vmatprep.mubr.f32.mxu0 0.0
    %v2901 = vand.u32 %v2414, 4294901760
    %v2902 = vsub.f32 %v2414, %v2901
    %2903 = vmatmul.mubr.f32.gmra.mrb[0].mxu0 %v2902
    %v2904 = vpop.f32.mrb[0].mxu0
    %v2905 = vadd.f32 %v2757, %v2904
    %v2906 = vpop.f32.mrb[0].mxu0
    %v2907 = vadd.f32 %v2759, %v2906
    %2908 = vmatprep.mubr.f32.mxu0 0.0
    %v2909 = vand.u32 %v2417, 4294901760
    %v2910 = vsub.f32 %v2417, %v2909
    %2911 = vmatmul.mubr.f32.gmra.mrb[0].mxu0 %v2910
    %v2912 = vpop.f32.mrb[0].mxu0
    %v2913 = vadd.f32 %v2764, %v2912
    %v2914 = vpop.f32.mrb[0].mxu0
    %v2915 = vadd.f32 %v2766, %v2914
    %2916 = vdwg.mxu0
    %v2917 = vand.u32 %v2343, 4294901760
    %2918 = vmatprep.subr.mxu0 %v2917
    %v2919 = vand.u32 %v2342, 4294901760
    %2920 = vmatpush1.msra.mxu0 %v2919
    %v2921 = vand.u32 %v2346, 4294901760
    %2922 = vmatprep.subr.mxu0 %v2921
    %v2923 = vand.u32 %v2345, 4294901760
    %2924 = vmatpush1.msra.mxu0 %v2923
    %v2925 = vand.u32 %v2349, 4294901760
    %2926 = vmatprep.subr.mxu0 %v2925
    %v2927 = vand.u32 %v2348, 4294901760
    %2928 = vmatpush1.msra.mxu0 %v2927
    %v2929 = vand.u32 %v2352, 4294901760
    %2930 = vmatprep.subr.mxu0 %v2929
    %v2931 = vand.u32 %v2351, 4294901760
    %2932 = vmatpush1.msra.mxu0 %v2931
    %v2933 = vand.u32 %v2355, 4294901760
    %2934 = vmatprep.subr.mxu0 %v2933
    %v2935 = vand.u32 %v2354, 4294901760
    %2936 = vmatpush1.msra.mxu0 %v2935
    %v2937 = vand.u32 %v2358, 4294901760
    %2938 = vmatprep.subr.mxu0 %v2937
    %v2939 = vand.u32 %v2357, 4294901760
    %2940 = vmatpush1.msra.mxu0 %v2939
    %v2941 = vand.u32 %v2423, 4294901760
    %2942 = vmatprep.subr.mxu0 %v2941
    %v2943 = vand.u32 %v2420, 4294901760
    %2944 = vmatpush1.msra.mxu0 %v2943
    %2945 = vmatprep.subr.mxu0 0.0
    %2946 = vmatpush1.msra.mxu0 0.0
    %2947 = vmatprep.subr.mxu0 0.0
    %2948 = vmatpush1.msra.mxu0 0.0
    %2949 = vmatprep.subr.mxu0 0.0
    %2950 = vmatpush1.msra.mxu0 0.0
    %2951 = vmatprep.subr.mxu0 0.0
    %2952 = vmatpush1.msra.mxu0 0.0
    %2953 = vmatprep.subr.mxu0 0.0
    %2954 = vmatpush1.msra.mxu0 0.0
    %2955 = vmatprep.subr.mxu0 0.0
    %2956 = vmatpush1.msra.mxu0 0.0
    %2957 = vmatprep.subr.mxu0 0.0
    %2958 = vmatpush1.msra.mxu0 0.0
    %2959 = vmatprep.subr.mxu0 0.0
    %2960 = vmatpush1.msra.mxu0 0.0
    %2961 = vmatprep.subr.mxu0 0.0
    %2962 = vmatpush1.msra.mxu0 0.0
    %2963 = vmatprep.subr.mxu0 0.0
    %2964 = vmatpush1.msra.mxu0 0.0
    %2965 = vmatprep.subr.mxu0 0.0
    %2966 = vmatpush1.msra.mxu0 0.0
    %2967 = vmatprep.subr.mxu0 0.0
    %2968 = vmatpush1.msra.mxu0 0.0
    %2969 = vmatprep.subr.mxu0 0.0
    %2970 = vmatpush1.msra.mxu0 0.0
    %2971 = vmatprep.subr.mxu0 0.0
    %2972 = vmatpush1.msra.mxu0 0.0
    %2973 = vmatprep.subr.mxu0 0.0
    %2974 = vmatpush1.msra.mxu0 0.0
    %2975 = vmatprep.subr.mxu0 0.0
    %2976 = vmatpush1.msra.mxu0 0.0
    %2977 = vmatprep.subr.mxu0 0.0
    %2978 = vmatpush1.msra.mxu0 0.0
    %2979 = vmatprep.subr.mxu0 0.0
    %2980 = vmatpush1.msra.mxu0 0.0
    %2981 = vmatprep.subr.mxu0 0.0
    %2982 = vmatpush1.msra.mxu0 0.0
    %2983 = vmatprep.subr.mxu0 0.0
    %2984 = vmatpush1.msra.mxu0 0.0
    %2985 = vmatprep.subr.mxu0 0.0
    %2986 = vmatpush1.msra.mxu0 0.0
    %2987 = vmatprep.subr.mxu0 0.0
    %2988 = vmatpush1.msra.mxu0 0.0
    %2989 = vmatprep.subr.mxu0 0.0
    %2990 = vmatpush1.msra.mxu0 0.0
    %2991 = vmatprep.subr.mxu0 0.0
    %2992 = vmatpush1.msra.mxu0 0.0
    %2993 = vmatprep.subr.mxu0 0.0
    %2994 = vmatpush1.msra.mxu0 0.0
    %2995 = vmatprep.mubr.f32.mxu0 0.0
    %v2996 = vand.u32 %v2399, 4294901760
    %v2997 = vsub.f32 %v2399, %v2996
    %v2998 = vand.u32 %v2997, 4294901760
    %2999 = vmatmul.mubr.f32.gmra.mrb[0].mxu0 %v2998
    %v3000 = vpop.f32.mrb[0].mxu0
    %v3001 = vadd.f32 %v2865, %v3000
    %v3002 = vpop.f32.mrb[0].mxu0
    %v3003 = vadd.f32 %v2867, %v3002
    %3004 = vmatprep.mubr.f32.mxu0 0.0
    %v3005 = vand.u32 %v2402, 4294901760
    %v3006 = vsub.f32 %v2402, %v3005
    %v3007 = vand.u32 %v3006, 4294901760
    %3008 = vmatmul.mubr.f32.gmra.mrb[0].mxu0 %v3007
    %v3009 = vpop.f32.mrb[0].mxu0
    %v3010 = vadd.f32 %v2873, %v3009
    %v3011 = vpop.f32.mrb[0].mxu0
    %v3012 = vadd.f32 %v2875, %v3011
    %3013 = vmatprep.mubr.f32.mxu0 0.0
    %v3014 = vand.u32 %v2405, 4294901760
    %v3015 = vsub.f32 %v2405, %v3014
    %v3016 = vand.u32 %v3015, 4294901760
    %3017 = vmatmul.mubr.f32.gmra.mrb[0].mxu0 %v3016
    %v3018 = vpop.f32.mrb[0].mxu0
    %v3019 = vadd.f32 %v2881, %v3018
    %v3020 = vpop.f32.mrb[0].mxu0
    %v3021 = vadd.f32 %v2883, %v3020
    %3022 = vmatprep.mubr.f32.mxu0 0.0
    %v3023 = vand.u32 %v2408, 4294901760
    %v3024 = vsub.f32 %v2408, %v3023
    %v3025 = vand.u32 %v3024, 4294901760
    %3026 = vmatmul.mubr.f32.gmra.mrb[0].mxu0 %v3025
    %v3027 = vpop.f32.mrb[0].mxu0
    %v3028 = vadd.f32 %v2889, %v3027
    %v3029 = vpop.f32.mrb[0].mxu0
    %v3030 = vadd.f32 %v2891, %v3029
    %3031 = vmatprep.mubr.f32.mxu0 0.0
    %v3032 = vand.u32 %v2411, 4294901760
    %v3033 = vsub.f32 %v2411, %v3032
    %v3034 = vand.u32 %v3033, 4294901760
    %3035 = vmatmul.mubr.f32.gmra.mrb[0].mxu0 %v3034
    %v3036 = vpop.f32.mrb[0].mxu0
    %v3037 = vadd.f32 %v2897, %v3036
    %v3038 = vpop.f32.mrb[0].mxu0
    %v3039 = vadd.f32 %v2899, %v3038
    %3040 = vmatprep.mubr.f32.mxu0 0.0
    %v3041 = vand.u32 %v2414, 4294901760
    %v3042 = vsub.f32 %v2414, %v3041
    %v3043 = vand.u32 %v3042, 4294901760
    %3044 = vmatmul.mubr.f32.gmra.mrb[0].mxu0 %v3043
    %v3045 = vpop.f32.mrb[0].mxu0
    %v3046 = vadd.f32 %v2905, %v3045
    %v3047 = vpop.f32.mrb[0].mxu0
    %v3048 = vadd.f32 %v2907, %v3047
    %3049 = vmatprep.mubr.f32.mxu0 0.0
    %v3050 = vand.u32 %v2417, 4294901760
    %v3051 = vsub.f32 %v2417, %v3050
    %v3052 = vand.u32 %v3051, 4294901760
    %3053 = vmatmul.mubr.f32.gmra.mrb[0].mxu0 %v3052
    %v3054 = vpop.f32.mrb[0].mxu0
    %v3055 = vadd.f32 %v2913, %v3054
    %v3056 = vpop.f32.mrb[0].mxu0
    %v3057 = vadd.f32 %v2915, %v3056
    %3058 = vdwg.mxu0
    %v3059 = vand.u32 %v2343, 4294901760
    %v3060 = vsub.f32 %v2343, %v3059
    %v3061 = vand.u32 %v3060, 4294901760
    %3062 = vmatprep.subr.mxu0 %v3061
    %v3063 = vand.u32 %v2342, 4294901760
    %v3064 = vsub.f32 %v2342, %v3063
    %v3065 = vand.u32 %v3064, 4294901760
    %3066 = vmatpush1.msra.mxu0 %v3065
    %v3067 = vand.u32 %v2346, 4294901760
    %v3068 = vsub.f32 %v2346, %v3067
    %v3069 = vand.u32 %v3068, 4294901760
    %3070 = vmatprep.subr.mxu0 %v3069
    %v3071 = vand.u32 %v2345, 4294901760
    %v3072 = vsub.f32 %v2345, %v3071
    %v3073 = vand.u32 %v3072, 4294901760
    %3074 = vmatpush1.msra.mxu0 %v3073
    %v3075 = vand.u32 %v2349, 4294901760
    %v3076 = vsub.f32 %v2349, %v3075
    %v3077 = vand.u32 %v3076, 4294901760
    %3078 = vmatprep.subr.mxu0 %v3077
    %v3079 = vand.u32 %v2348, 4294901760
    %v3080 = vsub.f32 %v2348, %v3079
    %v3081 = vand.u32 %v3080, 4294901760
    %3082 = vmatpush1.msra.mxu0 %v3081
    %v3083 = vand.u32 %v2352, 4294901760
    %v3084 = vsub.f32 %v2352, %v3083
    %v3085 = vand.u32 %v3084, 4294901760
    %3086 = vmatprep.subr.mxu0 %v3085
    %v3087 = vand.u32 %v2351, 4294901760
    %v3088 = vsub.f32 %v2351, %v3087
    %v3089 = vand.u32 %v3088, 4294901760
    %3090 = vmatpush1.msra.mxu0 %v3089
    %v3091 = vand.u32 %v2355, 4294901760
    %v3092 = vsub.f32 %v2355, %v3091
    %v3093 = vand.u32 %v3092, 4294901760
    %3094 = vmatprep.subr.mxu0 %v3093
    %v3095 = vand.u32 %v2354, 4294901760
    %v3096 = vsub.f32 %v2354, %v3095
    %v3097 = vand.u32 %v3096, 4294901760
    %3098 = vmatpush1.msra.mxu0 %v3097
    %v3099 = vand.u32 %v2358, 4294901760
    %v3100 = vsub.f32 %v2358, %v3099
    %v3101 = vand.u32 %v3100, 4294901760
    %3102 = vmatprep.subr.mxu0 %v3101
    %v3103 = vand.u32 %v2357, 4294901760
    %v3104 = vsub.f32 %v2357, %v3103
    %v3105 = vand.u32 %v3104, 4294901760
    %3106 = vmatpush1.msra.mxu0 %v3105
    %v3107 = vand.u32 %v2423, 4294901760
    %v3108 = vsub.f32 %v2423, %v3107
    %v3109 = vand.u32 %v3108, 4294901760
    %3110 = vmatprep.subr.mxu0 %v3109
    %v3111 = vand.u32 %v2420, 4294901760
    %v3112 = vsub.f32 %v2420, %v3111
    %v3113 = vand.u32 %v3112, 4294901760
    %3114 = vmatpush1.msra.mxu0 %v3113
    %3115 = vmatprep.subr.mxu0 0.0
    %3116 = vmatpush1.msra.mxu0 0.0
    %3117 = vmatprep.subr.mxu0 0.0
    %3118 = vmatpush1.msra.mxu0 0.0
    %3119 = vmatprep.subr.mxu0 0.0
    %3120 = vmatpush1.msra.mxu0 0.0
    %3121 = vmatprep.subr.mxu0 0.0
    %3122 = vmatpush1.msra.mxu0 0.0
    %3123 = vmatprep.subr.mxu0 0.0
    %3124 = vmatpush1.msra.mxu0 0.0
    %3125 = vmatprep.subr.mxu0 0.0
    %3126 = vmatpush1.msra.mxu0 0.0
    %3127 = vmatprep.subr.mxu0 0.0
    %3128 = vmatpush1.msra.mxu0 0.0
    %3129 = vmatprep.subr.mxu0 0.0
    %3130 = vmatpush1.msra.mxu0 0.0
    %3131 = vmatprep.subr.mxu0 0.0
    %3132 = vmatpush1.msra.mxu0 0.0
    %3133 = vmatprep.subr.mxu0 0.0
    %3134 = vmatpush1.msra.mxu0 0.0
    %3135 = vmatprep.subr.mxu0 0.0
    %3136 = vmatpush1.msra.mxu0 0.0
    %3137 = vmatprep.subr.mxu0 0.0
    %3138 = vmatpush1.msra.mxu0 0.0
    %3139 = vmatprep.subr.mxu0 0.0
    %3140 = vmatpush1.msra.mxu0 0.0
    %3141 = vmatprep.subr.mxu0 0.0
    %3142 = vmatpush1.msra.mxu0 0.0
    %3143 = vmatprep.subr.mxu0 0.0
    %3144 = vmatpush1.msra.mxu0 0.0
    %3145 = vmatprep.subr.mxu0 0.0
    %3146 = vmatpush1.msra.mxu0 0.0
    %3147 = vmatprep.subr.mxu0 0.0
    %3148 = vmatpush1.msra.mxu0 0.0
    %3149 = vmatprep.subr.mxu0 0.0
    %3150 = vmatpush1.msra.mxu0 0.0
    %3151 = vmatprep.subr.mxu0 0.0
    %3152 = vmatpush1.msra.mxu0 0.0
    %3153 = vmatprep.subr.mxu0 0.0
    %3154 = vmatpush1.msra.mxu0 0.0
    %3155 = vmatprep.subr.mxu0 0.0
    %3156 = vmatpush1.msra.mxu0 0.0
    %3157 = vmatprep.subr.mxu0 0.0
    %3158 = vmatpush1.msra.mxu0 0.0
    %3159 = vmatprep.subr.mxu0 0.0
    %3160 = vmatpush1.msra.mxu0 0.0
    %3161 = vmatprep.subr.mxu0 0.0
    %3162 = vmatpush1.msra.mxu0 0.0
    %3163 = vmatprep.subr.mxu0 0.0
    %3164 = vmatpush1.msra.mxu0 0.0
    %3165 = vmatprep.mubr.f32.mxu0 0.0
    %v3166 = vand.u32 %v2399, 4294901760
    %3167 = vmatmul.mubr.f32.gmra.mrb[0].mxu0 %v3166
    %v3168 = vpop.f32.mrb[0].mxu0
    %v3169 = vadd.f32 %v3001, %v3168
    %v3170 = vpop.f32.mrb[0].mxu0
    %v3171 = vadd.f32 %v3003, %v3170
    %3172 = vmatprep.mubr.f32.mxu0 0.0
    %v3173 = vand.u32 %v2402, 4294901760
    %3174 = vmatmul.mubr.f32.gmra.mrb[0].mxu0 %v3173
    %v3175 = vpop.f32.mrb[0].mxu0
    %v3176 = vadd.f32 %v3010, %v3175
    %v3177 = vpop.f32.mrb[0].mxu0
    %v3178 = vadd.f32 %v3012, %v3177
    %3179 = vmatprep.mubr.f32.mxu0 0.0
    %v3180 = vand.u32 %v2405, 4294901760
    %3181 = vmatmul.mubr.f32.gmra.mrb[0].mxu0 %v3180
    %v3182 = vpop.f32.mrb[0].mxu0
    %v3183 = vadd.f32 %v3019, %v3182
    %v3184 = vpop.f32.mrb[0].mxu0
    %v3185 = vadd.f32 %v3021, %v3184
    %3186 = vmatprep.mubr.f32.mxu0 0.0
    %v3187 = vand.u32 %v2408, 4294901760
    %3188 = vmatmul.mubr.f32.gmra.mrb[0].mxu0 %v3187
    %v3189 = vpop.f32.mrb[0].mxu0
    %v3190 = vadd.f32 %v3028, %v3189
    %v3191 = vpop.f32.mrb[0].mxu0
    %v3192 = vadd.f32 %v3030, %v3191
    %3193 = vmatprep.mubr.f32.mxu0 0.0
    %v3194 = vand.u32 %v2411, 4294901760
    %3195 = vmatmul.mubr.f32.gmra.mrb[0].mxu0 %v3194
    %v3196 = vpop.f32.mrb[0].mxu0
    %v3197 = vadd.f32 %v3037, %v3196
    %v3198 = vpop.f32.mrb[0].mxu0
    %v3199 = vadd.f32 %v3039, %v3198
    %3200 = vmatprep.mubr.f32.mxu0 0.0
    %v3201 = vand.u32 %v2414, 4294901760
    %3202 = vmatmul.mubr.f32.gmra.mrb[0].mxu0 %v3201
    %v3203 = vpop.f32.mrb[0].mxu0
    %v3204 = vadd.f32 %v3046, %v3203
    %v3205 = vpop.f32.mrb[0].mxu0
    %v3206 = vadd.f32 %v3048, %v3205
    %3207 = vmatprep.mubr.f32.mxu0 0.0
    %v3208 = vand.u32 %v2417, 4294901760
    %3209 = vmatmul.mubr.f32.gmra.mrb[0].mxu0 %v3208
    %v3210 = vpop.f32.mrb[0].mxu0
    %v3211 = vadd.f32 %v3055, %v3210
    %v3212 = vpop.f32.mrb[0].mxu0
    %v3213 = vadd.f32 %v3057, %v3212
    %3214 = vdwg.mxu0
    %v3215 = vand.u32 %v2343, 4294901760
    %3216 = vmatprep.subr.mxu0 %v3215
    %v3217 = vand.u32 %v2342, 4294901760
    %3218 = vmatpush1.msra.mxu0 %v3217
    %v3219 = vand.u32 %v2346, 4294901760
    %3220 = vmatprep.subr.mxu0 %v3219
    %v3221 = vand.u32 %v2345, 4294901760
    %3222 = vmatpush1.msra.mxu0 %v3221
    %v3223 = vand.u32 %v2349, 4294901760
    %3224 = vmatprep.subr.mxu0 %v3223
    %v3225 = vand.u32 %v2348, 4294901760
    %3226 = vmatpush1.msra.mxu0 %v3225
    %v3227 = vand.u32 %v2352, 4294901760
    %3228 = vmatprep.subr.mxu0 %v3227
    %v3229 = vand.u32 %v2351, 4294901760
    %3230 = vmatpush1.msra.mxu0 %v3229
    %v3231 = vand.u32 %v2355, 4294901760
    %3232 = vmatprep.subr.mxu0 %v3231
    %v3233 = vand.u32 %v2354, 4294901760
    %3234 = vmatpush1.msra.mxu0 %v3233
    %v3235 = vand.u32 %v2358, 4294901760
    %3236 = vmatprep.subr.mxu0 %v3235
    %v3237 = vand.u32 %v2357, 4294901760
    %3238 = vmatpush1.msra.mxu0 %v3237
    %v3239 = vand.u32 %v2423, 4294901760
    %3240 = vmatprep.subr.mxu0 %v3239
    %v3241 = vand.u32 %v2420, 4294901760
    %3242 = vmatpush1.msra.mxu0 %v3241
    %3243 = vmatprep.subr.mxu0 0.0
    %3244 = vmatpush1.msra.mxu0 0.0
    %3245 = vmatprep.subr.mxu0 0.0
    %3246 = vmatpush1.msra.mxu0 0.0
    %3247 = vmatprep.subr.mxu0 0.0
    %3248 = vmatpush1.msra.mxu0 0.0
    %3249 = vmatprep.subr.mxu0 0.0
    %3250 = vmatpush1.msra.mxu0 0.0
    %3251 = vmatprep.subr.mxu0 0.0
    %3252 = vmatpush1.msra.mxu0 0.0
    %3253 = vmatprep.subr.mxu0 0.0
    %3254 = vmatpush1.msra.mxu0 0.0
    %3255 = vmatprep.subr.mxu0 0.0
    %3256 = vmatpush1.msra.mxu0 0.0
    %3257 = vmatprep.subr.mxu0 0.0
    %3258 = vmatpush1.msra.mxu0 0.0
    %3259 = vmatprep.subr.mxu0 0.0
    %3260 = vmatpush1.msra.mxu0 0.0
    %3261 = vmatprep.subr.mxu0 0.0
    %3262 = vmatpush1.msra.mxu0 0.0
    %3263 = vmatprep.subr.mxu0 0.0
    %3264 = vmatpush1.msra.mxu0 0.0
    %3265 = vmatprep.subr.mxu0 0.0
    %3266 = vmatpush1.msra.mxu0 0.0
    %3267 = vmatprep.subr.mxu0 0.0
    %3268 = vmatpush1.msra.mxu0 0.0
    %3269 = vmatprep.subr.mxu0 0.0
    %3270 = vmatpush1.msra.mxu0 0.0
    %3271 = vmatprep.subr.mxu0 0.0
    %3272 = vmatpush1.msra.mxu0 0.0
    %3273 = vmatprep.subr.mxu0 0.0
    %3274 = vmatpush1.msra.mxu0 0.0
    %3275 = vmatprep.subr.mxu0 0.0
    %3276 = vmatpush1.msra.mxu0 0.0
    %3277 = vmatprep.subr.mxu0 0.0
    %3278 = vmatpush1.msra.mxu0 0.0
    %3279 = vmatprep.subr.mxu0 0.0
    %3280 = vmatpush1.msra.mxu0 0.0
    %3281 = vmatprep.subr.mxu0 0.0
    %3282 = vmatpush1.msra.mxu0 0.0
    %3283 = vmatprep.subr.mxu0 0.0
    %3284 = vmatpush1.msra.mxu0 0.0
    %3285 = vmatprep.subr.mxu0 0.0
    %3286 = vmatpush1.msra.mxu0 0.0
    %3287 = vmatprep.subr.mxu0 0.0
    %3288 = vmatpush1.msra.mxu0 0.0
    %3289 = vmatprep.subr.mxu0 0.0
    %3290 = vmatpush1.msra.mxu0 0.0
    %3291 = vmatprep.subr.mxu0 0.0
    %3292 = vmatpush1.msra.mxu0 0.0
    %3293 = vmatprep.mubr.f32.mxu0 0.0
    %v3294 = vand.u32 %v2399, 4294901760
    %3295 = vmatmul.mubr.f32.gmra.mrb[0].mxu0 %v3294
    %v3296 = vpop.f32.mrb[0].mxu0
    %v3297 = vadd.f32 %v3169, %v3296
    %v3298 = vpop.f32.mrb[0].mxu0
    %v3299 = vadd.f32 %v3171, %v3298
    %3300 = vmatprep.mubr.f32.mxu0 0.0
    %v3301 = vand.u32 %v2402, 4294901760
    %3302 = vmatmul.mubr.f32.gmra.mrb[0].mxu0 %v3301
    %v3303 = vpop.f32.mrb[0].mxu0
    %v3304 = vadd.f32 %v3176, %v3303
    %v3305 = vpop.f32.mrb[0].mxu0
    %v3306 = vadd.f32 %v3178, %v3305
    %3307 = vmatprep.mubr.f32.mxu0 0.0
    %v3308 = vand.u32 %v2405, 4294901760
    %3309 = vmatmul.mubr.f32.gmra.mrb[0].mxu0 %v3308
    %v3310 = vpop.f32.mrb[0].mxu0
    %v3311 = vadd.f32 %v3183, %v3310
    %v3312 = vpop.f32.mrb[0].mxu0
    %v3313 = vadd.f32 %v3185, %v3312
    %3314 = vmatprep.mubr.f32.mxu0 0.0
    %v3315 = vand.u32 %v2408, 4294901760
    %3316 = vmatmul.mubr.f32.gmra.mrb[0].mxu0 %v3315
    %v3317 = vpop.f32.mrb[0].mxu0
    %v3318 = vadd.f32 %v3190, %v3317
    %v3319 = vpop.f32.mrb[0].mxu0
    %v3320 = vadd.f32 %v3192, %v3319
    %3321 = vmatprep.mubr.f32.mxu0 0.0
    %v3322 = vand.u32 %v2411, 4294901760
    %3323 = vmatmul.mubr.f32.gmra.mrb[0].mxu0 %v3322
    %v3324 = vpop.f32.mrb[0].mxu0
    %v3325 = vadd.f32 %v3197, %v3324
    %v3326 = vpop.f32.mrb[0].mxu0
    %v3327 = vadd.f32 %v3199, %v3326
    %3328 = vmatprep.mubr.f32.mxu0 0.0
    %v3329 = vand.u32 %v2414, 4294901760
    %3330 = vmatmul.mubr.f32.gmra.mrb[0].mxu0 %v3329
    %v3331 = vpop.f32.mrb[0].mxu0
    %v3332 = vadd.f32 %v3204, %v3331
    %v3333 = vpop.f32.mrb[0].mxu0
    %v3334 = vadd.f32 %v3206, %v3333
    %3335 = vmatprep.mubr.f32.mxu0 0.0
    %v3336 = vand.u32 %v2417, 4294901760
    %3337 = vmatmul.mubr.f32.gmra.mrb[0].mxu0 %v3336
    %v3338 = vpop.f32.mrb[0].mxu0
    %v3339 = vadd.f32 %v3211, %v3338
    %v3340 = vpop.f32.mrb[0].mxu0
    %v3341 = vadd.f32 %v3213, %v3340
    %3342 = vdwg.mxu0
    %3343 = vmatprep.subr.mxu0 0.0
    %v3344 = vand.u32 %v2344, 4294901760
    %3345 = vmatpush1.msra.mxu0 %v3344
    %3346 = vmatprep.subr.mxu0 0.0
    %v3347 = vand.u32 %v2347, 4294901760
    %3348 = vmatpush1.msra.mxu0 %v3347
    %3349 = vmatprep.subr.mxu0 0.0
    %v3350 = vand.u32 %v2350, 4294901760
    %3351 = vmatpush1.msra.mxu0 %v3350
    %3352 = vmatprep.subr.mxu0 0.0
    %v3353 = vand.u32 %v2353, 4294901760
    %3354 = vmatpush1.msra.mxu0 %v3353
    %3355 = vmatprep.subr.mxu0 0.0
    %v3356 = vand.u32 %v2356, 4294901760
    %3357 = vmatpush1.msra.mxu0 %v3356
    %3358 = vmatprep.subr.mxu0 0.0
    %v3359 = vand.u32 %v2359, 4294901760
    %3360 = vmatpush1.msra.mxu0 %v3359
    %3361 = vmatprep.subr.mxu0 0.0
    %v3362 = vand.u32 %v2426, 4294901760
    %3363 = vmatpush1.msra.mxu0 %v3362
    %3364 = vmatprep.subr.mxu0 0.0
    %3365 = vmatpush1.msra.mxu0 0.0
    %3366 = vmatprep.subr.mxu0 0.0
    %3367 = vmatpush1.msra.mxu0 0.0
    %3368 = vmatprep.subr.mxu0 0.0
    %3369 = vmatpush1.msra.mxu0 0.0
    %3370 = vmatprep.subr.mxu0 0.0
    %3371 = vmatpush1.msra.mxu0 0.0
    %3372 = vmatprep.subr.mxu0 0.0
    %3373 = vmatpush1.msra.mxu0 0.0
    %3374 = vmatprep.subr.mxu0 0.0
    %3375 = vmatpush1.msra.mxu0 0.0
    %3376 = vmatprep.subr.mxu0 0.0
    %3377 = vmatpush1.msra.mxu0 0.0
    %3378 = vmatprep.subr.mxu0 0.0
    %3379 = vmatpush1.msra.mxu0 0.0
    %3380 = vmatprep.subr.mxu0 0.0
    %3381 = vmatpush1.msra.mxu0 0.0
    %3382 = vmatprep.subr.mxu0 0.0
    %3383 = vmatpush1.msra.mxu0 0.0
    %3384 = vmatprep.subr.mxu0 0.0
    %3385 = vmatpush1.msra.mxu0 0.0
    %3386 = vmatprep.subr.mxu0 0.0
    %3387 = vmatpush1.msra.mxu0 0.0
    %3388 = vmatprep.subr.mxu0 0.0
    %3389 = vmatpush1.msra.mxu0 0.0
    %3390 = vmatprep.subr.mxu0 0.0
    %3391 = vmatpush1.msra.mxu0 0.0
    %3392 = vmatprep.subr.mxu0 0.0
    %3393 = vmatpush1.msra.mxu0 0.0
    %3394 = vmatprep.subr.mxu0 0.0
    %3395 = vmatpush1.msra.mxu0 0.0
    %3396 = vmatprep.subr.mxu0 0.0
    %3397 = vmatpush1.msra.mxu0 0.0
    %3398 = vmatprep.subr.mxu0 0.0
    %3399 = vmatpush1.msra.mxu0 0.0
    %3400 = vmatprep.subr.mxu0 0.0
    %3401 = vmatpush1.msra.mxu0 0.0
    %3402 = vmatprep.subr.mxu0 0.0
    %3403 = vmatpush1.msra.mxu0 0.0
    %3404 = vmatprep.subr.mxu0 0.0
    %3405 = vmatpush1.msra.mxu0 0.0
    %3406 = vmatprep.subr.mxu0 0.0
    %3407 = vmatpush1.msra.mxu0 0.0
    %3408 = vmatprep.subr.mxu0 0.0
    %3409 = vmatpush1.msra.mxu0 0.0
    %3410 = vmatprep.subr.mxu0 0.0
    %3411 = vmatpush1.msra.mxu0 0.0
    %3412 = vmatprep.subr.mxu0 0.0
    %3413 = vmatpush1.msra.mxu0 0.0
    %3414 = vmatprep.mubr.f32.mxu0 0.0
    %v3415 = vand.u32 %v2399, 4294901760
    %v3416 = vsub.f32 %v2399, %v3415
    %v3417 = vand.u32 %v3416, 4294901760
    %v3418 = vsub.f32 %v3416, %v3417
    %v3419 = vand.u32 %v3418, 4294901760
    %3420 = vmatmul.mubr.f32.gmra.mrb[0].mxu0 %v3419
    %v3421 = vpop.f32.mrb[0].mxu0
    %v3422 = vadd.f32 %v2372, %v3421
    %v3423 = vpop.f32.mrb[0].mxu0
    %3424 = vmatprep.mubr.f32.mxu0 0.0
    %v3425 = vand.u32 %v2402, 4294901760
    %v3426 = vsub.f32 %v2402, %v3425
    %v3427 = vand.u32 %v3426, 4294901760
    %v3428 = vsub.f32 %v3426, %v3427
    %v3429 = vand.u32 %v3428, 4294901760
    %3430 = vmatmul.mubr.f32.gmra.mrb[0].mxu0 %v3429
    %v3431 = vpop.f32.mrb[0].mxu0
    %v3432 = vadd.f32 %v2376, %v3431
    %v3433 = vpop.f32.mrb[0].mxu0
    %3434 = vmatprep.mubr.f32.mxu0 0.0
    %v3435 = vand.u32 %v2405, 4294901760
    %v3436 = vsub.f32 %v2405, %v3435
    %v3437 = vand.u32 %v3436, 4294901760
    %v3438 = vsub.f32 %v3436, %v3437
    %v3439 = vand.u32 %v3438, 4294901760
    %3440 = vmatmul.mubr.f32.gmra.mrb[0].mxu0 %v3439
    %v3441 = vpop.f32.mrb[0].mxu0
    %v3442 = vadd.f32 %v2380, %v3441
    %v3443 = vpop.f32.mrb[0].mxu0
    %3444 = vmatprep.mubr.f32.mxu0 0.0
    %v3445 = vand.u32 %v2408, 4294901760
    %v3446 = vsub.f32 %v2408, %v3445
    %v3447 = vand.u32 %v3446, 4294901760
    %v3448 = vsub.f32 %v3446, %v3447
    %v3449 = vand.u32 %v3448, 4294901760
    %3450 = vmatmul.mubr.f32.gmra.mrb[0].mxu0 %v3449
    %v3451 = vpop.f32.mrb[0].mxu0
    %v3452 = vadd.f32 %v2384, %v3451
    %v3453 = vpop.f32.mrb[0].mxu0
    %3454 = vmatprep.mubr.f32.mxu0 0.0
    %v3455 = vand.u32 %v2411, 4294901760
    %v3456 = vsub.f32 %v2411, %v3455
    %v3457 = vand.u32 %v3456, 4294901760
    %v3458 = vsub.f32 %v3456, %v3457
    %v3459 = vand.u32 %v3458, 4294901760
    %3460 = vmatmul.mubr.f32.gmra.mrb[0].mxu0 %v3459
    %v3461 = vpop.f32.mrb[0].mxu0
    %v3462 = vadd.f32 %v2388, %v3461
    %v3463 = vpop.f32.mrb[0].mxu0
    %3464 = vmatprep.mubr.f32.mxu0 0.0
    %v3465 = vand.u32 %v2414, 4294901760
    %v3466 = vsub.f32 %v2414, %v3465
    %v3467 = vand.u32 %v3466, 4294901760
    %v3468 = vsub.f32 %v3466, %v3467
    %v3469 = vand.u32 %v3468, 4294901760
    %3470 = vmatmul.mubr.f32.gmra.mrb[0].mxu0 %v3469
    %v3471 = vpop.f32.mrb[0].mxu0
    %v3472 = vadd.f32 %v2392, %v3471
    %v3473 = vpop.f32.mrb[0].mxu0
    %3474 = vmatprep.mubr.f32.mxu0 0.0
    %v3475 = vand.u32 %v2417, 4294901760
    %v3476 = vsub.f32 %v2417, %v3475
    %v3477 = vand.u32 %v3476, 4294901760
    %v3478 = vsub.f32 %v3476, %v3477
    %v3479 = vand.u32 %v3478, 4294901760
    %3480 = vmatmul.mubr.f32.gmra.mrb[0].mxu0 %v3479
    %v3481 = vpop.f32.mrb[0].mxu0
    %v3482 = vadd.f32 %v2396, %v3481
    %v3483 = vpop.f32.mrb[0].mxu0
    %3484 = vdwg.mxu0
    %3485 = vmatprep.subr.mxu0 0.0
    %v3486 = vand.u32 %v2344, 4294901760
    %v3487 = vsub.f32 %v2344, %v3486
    %v3488 = vand.u32 %v3487, 4294901760
    %v3489 = vsub.f32 %v3487, %v3488
    %v3490 = vand.u32 %v3489, 4294901760
    %3491 = vmatpush1.msra.mxu0 %v3490
    %3492 = vmatprep.subr.mxu0 0.0
    %v3493 = vand.u32 %v2347, 4294901760
    %v3494 = vsub.f32 %v2347, %v3493
    %v3495 = vand.u32 %v3494, 4294901760
    %v3496 = vsub.f32 %v3494, %v3495
    %v3497 = vand.u32 %v3496, 4294901760
    %3498 = vmatpush1.msra.mxu0 %v3497
    %3499 = vmatprep.subr.mxu0 0.0
    %v3500 = vand.u32 %v2350, 4294901760
    %v3501 = vsub.f32 %v2350, %v3500
    %v3502 = vand.u32 %v3501, 4294901760
    %v3503 = vsub.f32 %v3501, %v3502
    %v3504 = vand.u32 %v3503, 4294901760
    %3505 = vmatpush1.msra.mxu0 %v3504
    %3506 = vmatprep.subr.mxu0 0.0
    %v3507 = vand.u32 %v2353, 4294901760
    %v3508 = vsub.f32 %v2353, %v3507
    %v3509 = vand.u32 %v3508, 4294901760
    %v3510 = vsub.f32 %v3508, %v3509
    %v3511 = vand.u32 %v3510, 4294901760
    %3512 = vmatpush1.msra.mxu0 %v3511
    %3513 = vmatprep.subr.mxu0 0.0
    %v3514 = vand.u32 %v2356, 4294901760
    %v3515 = vsub.f32 %v2356, %v3514
    %v3516 = vand.u32 %v3515, 4294901760
    %v3517 = vsub.f32 %v3515, %v3516
    %v3518 = vand.u32 %v3517, 4294901760
    %3519 = vmatpush1.msra.mxu0 %v3518
    %3520 = vmatprep.subr.mxu0 0.0
    %v3521 = vand.u32 %v2359, 4294901760
    %v3522 = vsub.f32 %v2359, %v3521
    %v3523 = vand.u32 %v3522, 4294901760
    %v3524 = vsub.f32 %v3522, %v3523
    %v3525 = vand.u32 %v3524, 4294901760
    %3526 = vmatpush1.msra.mxu0 %v3525
    %3527 = vmatprep.subr.mxu0 0.0
    %v3528 = vand.u32 %v2426, 4294901760
    %v3529 = vsub.f32 %v2426, %v3528
    %v3530 = vand.u32 %v3529, 4294901760
    %v3531 = vsub.f32 %v3529, %v3530
    %v3532 = vand.u32 %v3531, 4294901760
    %3533 = vmatpush1.msra.mxu0 %v3532
    %3534 = vmatprep.subr.mxu0 0.0
    %3535 = vmatpush1.msra.mxu0 0.0
    %3536 = vmatprep.subr.mxu0 0.0
    %3537 = vmatpush1.msra.mxu0 0.0
    %3538 = vmatprep.subr.mxu0 0.0
    %3539 = vmatpush1.msra.mxu0 0.0
    %3540 = vmatprep.subr.mxu0 0.0
    %3541 = vmatpush1.msra.mxu0 0.0
    %3542 = vmatprep.subr.mxu0 0.0
    %3543 = vmatpush1.msra.mxu0 0.0
    %3544 = vmatprep.subr.mxu0 0.0
    %3545 = vmatpush1.msra.mxu0 0.0
    %3546 = vmatprep.subr.mxu0 0.0
    %3547 = vmatpush1.msra.mxu0 0.0
    %3548 = vmatprep.subr.mxu0 0.0
    %3549 = vmatpush1.msra.mxu0 0.0
    %3550 = vmatprep.subr.mxu0 0.0
    %3551 = vmatpush1.msra.mxu0 0.0
    %3552 = vmatprep.subr.mxu0 0.0
    %3553 = vmatpush1.msra.mxu0 0.0
    %3554 = vmatprep.subr.mxu0 0.0
    %3555 = vmatpush1.msra.mxu0 0.0
    %3556 = vmatprep.subr.mxu0 0.0
    %3557 = vmatpush1.msra.mxu0 0.0
    %3558 = vmatprep.subr.mxu0 0.0
    %3559 = vmatpush1.msra.mxu0 0.0
    %3560 = vmatprep.subr.mxu0 0.0
    %3561 = vmatpush1.msra.mxu0 0.0
    %3562 = vmatprep.subr.mxu0 0.0
    %3563 = vmatpush1.msra.mxu0 0.0
    %3564 = vmatprep.subr.mxu0 0.0
    %3565 = vmatpush1.msra.mxu0 0.0
    %3566 = vmatprep.subr.mxu0 0.0
    %3567 = vmatpush1.msra.mxu0 0.0
    %3568 = vmatprep.subr.mxu0 0.0
    %3569 = vmatpush1.msra.mxu0 0.0
    %3570 = vmatprep.subr.mxu0 0.0
    %3571 = vmatpush1.msra.mxu0 0.0
    %3572 = vmatprep.subr.mxu0 0.0
    %3573 = vmatpush1.msra.mxu0 0.0
    %3574 = vmatprep.subr.mxu0 0.0
    %3575 = vmatpush1.msra.mxu0 0.0
    %3576 = vmatprep.subr.mxu0 0.0
    %3577 = vmatpush1.msra.mxu0 0.0
    %3578 = vmatprep.subr.mxu0 0.0
    %3579 = vmatpush1.msra.mxu0 0.0
    %3580 = vmatprep.subr.mxu0 0.0
    %3581 = vmatpush1.msra.mxu0 0.0
    %3582 = vmatprep.subr.mxu0 0.0
    %3583 = vmatpush1.msra.mxu0 0.0
    %3584 = vmatprep.mubr.f32.mxu0 0.0
    %v3585 = vand.u32 %v2399, 4294901760
    %3586 = vmatmul.mubr.f32.gmra.mrb[0].mxu0 %v3585
    %v3587 = vpop.f32.mrb[0].mxu0
    %v3588 = vadd.f32 %v3422, %v3587
    %v3589 = vpop.f32.mrb[0].mxu0
    %3590 = vmatprep.mubr.f32.mxu0 0.0
    %v3591 = vand.u32 %v2402, 4294901760
    %3592 = vmatmul.mubr.f32.gmra.mrb[0].mxu0 %v3591
    %v3593 = vpop.f32.mrb[0].mxu0
    %v3594 = vadd.f32 %v3432, %v3593
    %v3595 = vpop.f32.mrb[0].mxu0
    %3596 = vmatprep.mubr.f32.mxu0 0.0
    %v3597 = vand.u32 %v2405, 4294901760
    %3598 = vmatmul.mubr.f32.gmra.mrb[0].mxu0 %v3597
    %v3599 = vpop.f32.mrb[0].mxu0
    %v3600 = vadd.f32 %v3442, %v3599
    %v3601 = vpop.f32.mrb[0].mxu0
    %3602 = vmatprep.mubr.f32.mxu0 0.0
    %v3603 = vand.u32 %v2408, 4294901760
    %3604 = vmatmul.mubr.f32.gmra.mrb[0].mxu0 %v3603
    %v3605 = vpop.f32.mrb[0].mxu0
    %v3606 = vadd.f32 %v3452, %v3605
    %v3607 = vpop.f32.mrb[0].mxu0
    %3608 = vmatprep.mubr.f32.mxu0 0.0
    %v3609 = vand.u32 %v2411, 4294901760
    %3610 = vmatmul.mubr.f32.gmra.mrb[0].mxu0 %v3609
    %v3611 = vpop.f32.mrb[0].mxu0
    %v3612 = vadd.f32 %v3462, %v3611
    %v3613 = vpop.f32.mrb[0].mxu0
    %3614 = vmatprep.mubr.f32.mxu0 0.0
    %v3615 = vand.u32 %v2414, 4294901760
    %3616 = vmatmul.mubr.f32.gmra.mrb[0].mxu0 %v3615
    %v3617 = vpop.f32.mrb[0].mxu0
    %v3618 = vadd.f32 %v3472, %v3617
    %v3619 = vpop.f32.mrb[0].mxu0
    %3620 = vmatprep.mubr.f32.mxu0 0.0
    %v3621 = vand.u32 %v2417, 4294901760
    %3622 = vmatmul.mubr.f32.gmra.mrb[0].mxu0 %v3621
    %v3623 = vpop.f32.mrb[0].mxu0
    %v3624 = vadd.f32 %v3482, %v3623
    %v3625 = vpop.f32.mrb[0].mxu0
    %3626 = vdwg.mxu0
    %3627 = vmatprep.subr.mxu0 0.0
    %v3628 = vand.u32 %v2344, 4294901760
    %v3629 = vsub.f32 %v2344, %v3628
    %3630 = vmatpush1.msra.mxu0 %v3629
    %3631 = vmatprep.subr.mxu0 0.0
    %v3632 = vand.u32 %v2347, 4294901760
    %v3633 = vsub.f32 %v2347, %v3632
    %3634 = vmatpush1.msra.mxu0 %v3633
    %3635 = vmatprep.subr.mxu0 0.0
    %v3636 = vand.u32 %v2350, 4294901760
    %v3637 = vsub.f32 %v2350, %v3636
    %3638 = vmatpush1.msra.mxu0 %v3637
    %3639 = vmatprep.subr.mxu0 0.0
    %v3640 = vand.u32 %v2353, 4294901760
    %v3641 = vsub.f32 %v2353, %v3640
    %3642 = vmatpush1.msra.mxu0 %v3641
    %3643 = vmatprep.subr.mxu0 0.0
    %v3644 = vand.u32 %v2356, 4294901760
    %v3645 = vsub.f32 %v2356, %v3644
    %3646 = vmatpush1.msra.mxu0 %v3645
    %3647 = vmatprep.subr.mxu0 0.0
    %v3648 = vand.u32 %v2359, 4294901760
    %v3649 = vsub.f32 %v2359, %v3648
    %3650 = vmatpush1.msra.mxu0 %v3649
    %3651 = vmatprep.subr.mxu0 0.0
    %v3652 = vand.u32 %v2426, 4294901760
    %v3653 = vsub.f32 %v2426, %v3652
    %3654 = vmatpush1.msra.mxu0 %v3653
    %3655 = vmatprep.subr.mxu0 0.0
    %3656 = vmatpush1.msra.mxu0 0.0
    %3657 = vmatprep.subr.mxu0 0.0
    %3658 = vmatpush1.msra.mxu0 0.0
    %3659 = vmatprep.subr.mxu0 0.0
    %3660 = vmatpush1.msra.mxu0 0.0
    %3661 = vmatprep.subr.mxu0 0.0
    %3662 = vmatpush1.msra.mxu0 0.0
    %3663 = vmatprep.subr.mxu0 0.0
    %3664 = vmatpush1.msra.mxu0 0.0
    %3665 = vmatprep.subr.mxu0 0.0
    %3666 = vmatpush1.msra.mxu0 0.0
    %3667 = vmatprep.subr.mxu0 0.0
    %3668 = vmatpush1.msra.mxu0 0.0
    %3669 = vmatprep.subr.mxu0 0.0
    %3670 = vmatpush1.msra.mxu0 0.0
    %3671 = vmatprep.subr.mxu0 0.0
    %3672 = vmatpush1.msra.mxu0 0.0
    %3673 = vmatprep.subr.mxu0 0.0
    %3674 = vmatpush1.msra.mxu0 0.0
    %3675 = vmatprep.subr.mxu0 0.0
    %3676 = vmatpush1.msra.mxu0 0.0
    %3677 = vmatprep.subr.mxu0 0.0
    %3678 = vmatpush1.msra.mxu0 0.0
    %3679 = vmatprep.subr.mxu0 0.0
    %3680 = vmatpush1.msra.mxu0 0.0
    %3681 = vmatprep.subr.mxu0 0.0
    %3682 = vmatpush1.msra.mxu0 0.0
    %3683 = vmatprep.subr.mxu0 0.0
    %3684 = vmatpush1.msra.mxu0 0.0
    %3685 = vmatprep.subr.mxu0 0.0
    %3686 = vmatpush1.msra.mxu0 0.0
    %3687 = vmatprep.subr.mxu0 0.0
    %3688 = vmatpush1.msra.mxu0 0.0
    %3689 = vmatprep.subr.mxu0 0.0
    %3690 = vmatpush1.msra.mxu0 0.0
    %3691 = vmatprep.subr.mxu0 0.0
    %3692 = vmatpush1.msra.mxu0 0.0
    %3693 = vmatprep.subr.mxu0 0.0
    %3694 = vmatpush1.msra.mxu0 0.0
    %3695 = vmatprep.subr.mxu0 0.0
    %3696 = vmatpush1.msra.mxu0 0.0
    %3697 = vmatprep.subr.mxu0 0.0
    %3698 = vmatpush1.msra.mxu0 0.0
    %3699 = vmatprep.subr.mxu0 0.0
    %3700 = vmatpush1.msra.mxu0 0.0
    %3701 = vmatprep.subr.mxu0 0.0
    %3702 = vmatpush1.msra.mxu0 0.0
    %3703 = vmatprep.subr.mxu0 0.0
    %3704 = vmatpush1.msra.mxu0 0.0
    %3705 = vmatprep.mubr.f32.mxu0 0.0
    %v3706 = vand.u32 %v2399, 4294901760
    %v3707 = vsub.f32 %v2399, %v3706
    %3708 = vmatmul.mubr.f32.gmra.mrb[0].mxu0 %v3707
    %v3709 = vpop.f32.mrb[0].mxu0
    %v3710 = vadd.f32 %v3588, %v3709
    %v3711 = vpop.f32.mrb[0].mxu0
    %3712 = vmatprep.mubr.f32.mxu0 0.0
    %v3713 = vand.u32 %v2402, 4294901760
    %v3714 = vsub.f32 %v2402, %v3713
    %3715 = vmatmul.mubr.f32.gmra.mrb[0].mxu0 %v3714
    %v3716 = vpop.f32.mrb[0].mxu0
    %v3717 = vadd.f32 %v3594, %v3716
    %v3718 = vpop.f32.mrb[0].mxu0
    %3719 = vmatprep.mubr.f32.mxu0 0.0
    %v3720 = vand.u32 %v2405, 4294901760
    %v3721 = vsub.f32 %v2405, %v3720
    %3722 = vmatmul.mubr.f32.gmra.mrb[0].mxu0 %v3721
    %v3723 = vpop.f32.mrb[0].mxu0
    %v3724 = vadd.f32 %v3600, %v3723
    %v3725 = vpop.f32.mrb[0].mxu0
    %3726 = vmatprep.mubr.f32.mxu0 0.0
    %v3727 = vand.u32 %v2408, 4294901760
    %v3728 = vsub.f32 %v2408, %v3727
    %3729 = vmatmul.mubr.f32.gmra.mrb[0].mxu0 %v3728
    %v3730 = vpop.f32.mrb[0].mxu0
    %v3731 = vadd.f32 %v3606, %v3730
    %v3732 = vpop.f32.mrb[0].mxu0
    %3733 = vmatprep.mubr.f32.mxu0 0.0
    %v3734 = vand.u32 %v2411, 4294901760
    %v3735 = vsub.f32 %v2411, %v3734
    %3736 = vmatmul.mubr.f32.gmra.mrb[0].mxu0 %v3735
    %v3737 = vpop.f32.mrb[0].mxu0
    %v3738 = vadd.f32 %v3612, %v3737
    %v3739 = vpop.f32.mrb[0].mxu0
    %3740 = vmatprep.mubr.f32.mxu0 0.0
    %v3741 = vand.u32 %v2414, 4294901760
    %v3742 = vsub.f32 %v2414, %v3741
    %3743 = vmatmul.mubr.f32.gmra.mrb[0].mxu0 %v3742
    %v3744 = vpop.f32.mrb[0].mxu0
    %v3745 = vadd.f32 %v3618, %v3744
    %v3746 = vpop.f32.mrb[0].mxu0
    %3747 = vmatprep.mubr.f32.mxu0 0.0
    %v3748 = vand.u32 %v2417, 4294901760
    %v3749 = vsub.f32 %v2417, %v3748
    %3750 = vmatmul.mubr.f32.gmra.mrb[0].mxu0 %v3749
    %v3751 = vpop.f32.mrb[0].mxu0
    %v3752 = vadd.f32 %v3624, %v3751
    %v3753 = vpop.f32.mrb[0].mxu0
    %3754 = vdwg.mxu0
    %3755 = vmatprep.subr.mxu0 0.0
    %v3756 = vand.u32 %v2344, 4294901760
    %3757 = vmatpush1.msra.mxu0 %v3756
    %3758 = vmatprep.subr.mxu0 0.0
    %v3759 = vand.u32 %v2347, 4294901760
    %3760 = vmatpush1.msra.mxu0 %v3759
    %3761 = vmatprep.subr.mxu0 0.0
    %v3762 = vand.u32 %v2350, 4294901760
    %3763 = vmatpush1.msra.mxu0 %v3762
    %3764 = vmatprep.subr.mxu0 0.0
    %v3765 = vand.u32 %v2353, 4294901760
    %3766 = vmatpush1.msra.mxu0 %v3765
    %3767 = vmatprep.subr.mxu0 0.0
    %v3768 = vand.u32 %v2356, 4294901760
    %3769 = vmatpush1.msra.mxu0 %v3768
    %3770 = vmatprep.subr.mxu0 0.0
    %v3771 = vand.u32 %v2359, 4294901760
    %3772 = vmatpush1.msra.mxu0 %v3771
    %3773 = vmatprep.subr.mxu0 0.0
    %v3774 = vand.u32 %v2426, 4294901760
    %3775 = vmatpush1.msra.mxu0 %v3774
    %3776 = vmatprep.subr.mxu0 0.0
    %3777 = vmatpush1.msra.mxu0 0.0
    %3778 = vmatprep.subr.mxu0 0.0
    %3779 = vmatpush1.msra.mxu0 0.0
    %3780 = vmatprep.subr.mxu0 0.0
    %3781 = vmatpush1.msra.mxu0 0.0
    %3782 = vmatprep.subr.mxu0 0.0
    %3783 = vmatpush1.msra.mxu0 0.0
    %3784 = vmatprep.subr.mxu0 0.0
    %3785 = vmatpush1.msra.mxu0 0.0
    %3786 = vmatprep.subr.mxu0 0.0
    %3787 = vmatpush1.msra.mxu0 0.0
    %3788 = vmatprep.subr.mxu0 0.0
    %3789 = vmatpush1.msra.mxu0 0.0
    %3790 = vmatprep.subr.mxu0 0.0
    %3791 = vmatpush1.msra.mxu0 0.0
    %3792 = vmatprep.subr.mxu0 0.0
    %3793 = vmatpush1.msra.mxu0 0.0
    %3794 = vmatprep.subr.mxu0 0.0
    %3795 = vmatpush1.msra.mxu0 0.0
    %3796 = vmatprep.subr.mxu0 0.0
    %3797 = vmatpush1.msra.mxu0 0.0
    %3798 = vmatprep.subr.mxu0 0.0
    %3799 = vmatpush1.msra.mxu0 0.0
    %3800 = vmatprep.subr.mxu0 0.0
    %3801 = vmatpush1.msra.mxu0 0.0
    %3802 = vmatprep.subr.mxu0 0.0
    %3803 = vmatpush1.msra.mxu0 0.0
    %3804 = vmatprep.subr.mxu0 0.0
    %3805 = vmatpush1.msra.mxu0 0.0
    %3806 = vmatprep.subr.mxu0 0.0
    %3807 = vmatpush1.msra.mxu0 0.0
    %3808 = vmatprep.subr.mxu0 0.0
    %3809 = vmatpush1.msra.mxu0 0.0
    %3810 = vmatprep.subr.mxu0 0.0
    %3811 = vmatpush1.msra.mxu0 0.0
    %3812 = vmatprep.subr.mxu0 0.0
    %3813 = vmatpush1.msra.mxu0 0.0
    %3814 = vmatprep.subr.mxu0 0.0
    %3815 = vmatpush1.msra.mxu0 0.0
    %3816 = vmatprep.subr.mxu0 0.0
    %3817 = vmatpush1.msra.mxu0 0.0
    %3818 = vmatprep.subr.mxu0 0.0
    %3819 = vmatpush1.msra.mxu0 0.0
    %3820 = vmatprep.subr.mxu0 0.0
    %3821 = vmatpush1.msra.mxu0 0.0
    %3822 = vmatprep.subr.mxu0 0.0
    %3823 = vmatpush1.msra.mxu0 0.0
    %3824 = vmatprep.subr.mxu0 0.0
    %3825 = vmatpush1.msra.mxu0 0.0
    %3826 = vmatprep.mubr.f32.mxu0 0.0
    %v3827 = vand.u32 %v2399, 4294901760
    %v3828 = vsub.f32 %v2399, %v3827
    %v3829 = vand.u32 %v3828, 4294901760
    %3830 = vmatmul.mubr.f32.gmra.mrb[0].mxu0 %v3829
    %v3831 = vpop.f32.mrb[0].mxu0
    %v3832 = vadd.f32 %v3710, %v3831
    %v3833 = vpop.f32.mrb[0].mxu0
    %3834 = vmatprep.mubr.f32.mxu0 0.0
    %v3835 = vand.u32 %v2402, 4294901760
    %v3836 = vsub.f32 %v2402, %v3835
    %v3837 = vand.u32 %v3836, 4294901760
    %3838 = vmatmul.mubr.f32.gmra.mrb[0].mxu0 %v3837
    %v3839 = vpop.f32.mrb[0].mxu0
    %v3840 = vadd.f32 %v3717, %v3839
    %v3841 = vpop.f32.mrb[0].mxu0
    %3842 = vmatprep.mubr.f32.mxu0 0.0
    %v3843 = vand.u32 %v2405, 4294901760
    %v3844 = vsub.f32 %v2405, %v3843
    %v3845 = vand.u32 %v3844, 4294901760
    %3846 = vmatmul.mubr.f32.gmra.mrb[0].mxu0 %v3845
    %v3847 = vpop.f32.mrb[0].mxu0
    %v3848 = vadd.f32 %v3724, %v3847
    %v3849 = vpop.f32.mrb[0].mxu0
    %3850 = vmatprep.mubr.f32.mxu0 0.0
    %v3851 = vand.u32 %v2408, 4294901760
    %v3852 = vsub.f32 %v2408, %v3851
    %v3853 = vand.u32 %v3852, 4294901760
    %3854 = vmatmul.mubr.f32.gmra.mrb[0].mxu0 %v3853
    %v3855 = vpop.f32.mrb[0].mxu0
    %v3856 = vadd.f32 %v3731, %v3855
    %v3857 = vpop.f32.mrb[0].mxu0
    %3858 = vmatprep.mubr.f32.mxu0 0.0
    %v3859 = vand.u32 %v2411, 4294901760
    %v3860 = vsub.f32 %v2411, %v3859
    %v3861 = vand.u32 %v3860, 4294901760
    %3862 = vmatmul.mubr.f32.gmra.mrb[0].mxu0 %v3861
    %v3863 = vpop.f32.mrb[0].mxu0
    %v3864 = vadd.f32 %v3738, %v3863
    %v3865 = vpop.f32.mrb[0].mxu0
    %3866 = vmatprep.mubr.f32.mxu0 0.0
    %v3867 = vand.u32 %v2414, 4294901760
    %v3868 = vsub.f32 %v2414, %v3867
    %v3869 = vand.u32 %v3868, 4294901760
    %3870 = vmatmul.mubr.f32.gmra.mrb[0].mxu0 %v3869
    %v3871 = vpop.f32.mrb[0].mxu0
    %v3872 = vadd.f32 %v3745, %v3871
    %v3873 = vpop.f32.mrb[0].mxu0
    %3874 = vmatprep.mubr.f32.mxu0 0.0
    %v3875 = vand.u32 %v2417, 4294901760
    %v3876 = vsub.f32 %v2417, %v3875
    %v3877 = vand.u32 %v3876, 4294901760
    %3878 = vmatmul.mubr.f32.gmra.mrb[0].mxu0 %v3877
    %v3879 = vpop.f32.mrb[0].mxu0
    %v3880 = vadd.f32 %v3752, %v3879
    %v3881 = vpop.f32.mrb[0].mxu0
    %3882 = vdwg.mxu0
    %3883 = vmatprep.subr.mxu0 0.0
    %v3884 = vand.u32 %v2344, 4294901760
    %v3885 = vsub.f32 %v2344, %v3884
    %v3886 = vand.u32 %v3885, 4294901760
    %3887 = vmatpush1.msra.mxu0 %v3886
    %3888 = vmatprep.subr.mxu0 0.0
    %v3889 = vand.u32 %v2347, 4294901760
    %v3890 = vsub.f32 %v2347, %v3889
    %v3891 = vand.u32 %v3890, 4294901760
    %3892 = vmatpush1.msra.mxu0 %v3891
    %3893 = vmatprep.subr.mxu0 0.0
    %v3894 = vand.u32 %v2350, 4294901760
    %v3895 = vsub.f32 %v2350, %v3894
    %v3896 = vand.u32 %v3895, 4294901760
    %3897 = vmatpush1.msra.mxu0 %v3896
    %3898 = vmatprep.subr.mxu0 0.0
    %v3899 = vand.u32 %v2353, 4294901760
    %v3900 = vsub.f32 %v2353, %v3899
    %v3901 = vand.u32 %v3900, 4294901760
    %3902 = vmatpush1.msra.mxu0 %v3901
    %3903 = vmatprep.subr.mxu0 0.0
    %v3904 = vand.u32 %v2356, 4294901760
    %v3905 = vsub.f32 %v2356, %v3904
    %v3906 = vand.u32 %v3905, 4294901760
    %3907 = vmatpush1.msra.mxu0 %v3906
    %3908 = vmatprep.subr.mxu0 0.0
    %v3909 = vand.u32 %v2359, 4294901760
    %v3910 = vsub.f32 %v2359, %v3909
    %v3911 = vand.u32 %v3910, 4294901760
    %3912 = vmatpush1.msra.mxu0 %v3911
    %3913 = vmatprep.subr.mxu0 0.0
    %v3914 = vand.u32 %v2426, 4294901760
    %v3915 = vsub.f32 %v2426, %v3914
    %v3916 = vand.u32 %v3915, 4294901760
    %3917 = vmatpush1.msra.mxu0 %v3916
    %3918 = vmatprep.subr.mxu0 0.0
    %3919 = vmatpush1.msra.mxu0 0.0
    %3920 = vmatprep.subr.mxu0 0.0
    %3921 = vmatpush1.msra.mxu0 0.0
    %3922 = vmatprep.subr.mxu0 0.0
    %3923 = vmatpush1.msra.mxu0 0.0
    %3924 = vmatprep.subr.mxu0 0.0
    %3925 = vmatpush1.msra.mxu0 0.0
    %3926 = vmatprep.subr.mxu0 0.0
    %3927 = vmatpush1.msra.mxu0 0.0
    %3928 = vmatprep.subr.mxu0 0.0
    %3929 = vmatpush1.msra.mxu0 0.0
    %3930 = vmatprep.subr.mxu0 0.0
    %3931 = vmatpush1.msra.mxu0 0.0
    %3932 = vmatprep.subr.mxu0 0.0
    %3933 = vmatpush1.msra.mxu0 0.0
    %3934 = vmatprep.subr.mxu0 0.0
    %3935 = vmatpush1.msra.mxu0 0.0
    %3936 = vmatprep.subr.mxu0 0.0
    %3937 = vmatpush1.msra.mxu0 0.0
    %3938 = vmatprep.subr.mxu0 0.0
    %3939 = vmatpush1.msra.mxu0 0.0
    %3940 = vmatprep.subr.mxu0 0.0
    %3941 = vmatpush1.msra.mxu0 0.0
    %3942 = vmatprep.subr.mxu0 0.0
    %3943 = vmatpush1.msra.mxu0 0.0
    %3944 = vmatprep.subr.mxu0 0.0
    %3945 = vmatpush1.msra.mxu0 0.0
    %3946 = vmatprep.subr.mxu0 0.0
    %3947 = vmatpush1.msra.mxu0 0.0
    %3948 = vmatprep.subr.mxu0 0.0
    %3949 = vmatpush1.msra.mxu0 0.0
    %3950 = vmatprep.subr.mxu0 0.0
    %3951 = vmatpush1.msra.mxu0 0.0
    %3952 = vmatprep.subr.mxu0 0.0
    %3953 = vmatpush1.msra.mxu0 0.0
    %3954 = vmatprep.subr.mxu0 0.0
    %3955 = vmatpush1.msra.mxu0 0.0
    %3956 = vmatprep.subr.mxu0 0.0
    %3957 = vmatpush1.msra.mxu0 0.0
    %3958 = vmatprep.subr.mxu0 0.0
    %3959 = vmatpush1.msra.mxu0 0.0
    %3960 = vmatprep.subr.mxu0 0.0
    %3961 = vmatpush1.msra.mxu0 0.0
    %3962 = vmatprep.subr.mxu0 0.0
    %3963 = vmatpush1.msra.mxu0 0.0
    %3964 = vmatprep.subr.mxu0 0.0
    %3965 = vmatpush1.msra.mxu0 0.0
    %3966 = vmatprep.subr.mxu0 0.0
    %3967 = vmatpush1.msra.mxu0 0.0
    %3968 = vmatprep.mubr.f32.mxu0 0.0
    %v3969 = vand.u32 %v2399, 4294901760
    %3970 = vmatmul.mubr.f32.gmra.mrb[0].mxu0 %v3969
    %v3971 = vpop.f32.mrb[0].mxu0
    %v3972 = vadd.f32 %v3832, %v3971
    %v3973 = vpop.f32.mrb[0].mxu0
    %3974 = vmatprep.mubr.f32.mxu0 0.0
    %v3975 = vand.u32 %v2402, 4294901760
    %3976 = vmatmul.mubr.f32.gmra.mrb[0].mxu0 %v3975
    %v3977 = vpop.f32.mrb[0].mxu0
    %v3978 = vadd.f32 %v3840, %v3977
    %v3979 = vpop.f32.mrb[0].mxu0
    %3980 = vmatprep.mubr.f32.mxu0 0.0
    %v3981 = vand.u32 %v2405, 4294901760
    %3982 = vmatmul.mubr.f32.gmra.mrb[0].mxu0 %v3981
    %v3983 = vpop.f32.mrb[0].mxu0
    %v3984 = vadd.f32 %v3848, %v3983
    %v3985 = vpop.f32.mrb[0].mxu0
    %3986 = vmatprep.mubr.f32.mxu0 0.0
    %v3987 = vand.u32 %v2408, 4294901760
    %3988 = vmatmul.mubr.f32.gmra.mrb[0].mxu0 %v3987
    %v3989 = vpop.f32.mrb[0].mxu0
    %v3990 = vadd.f32 %v3856, %v3989
    %v3991 = vpop.f32.mrb[0].mxu0
    %3992 = vmatprep.mubr.f32.mxu0 0.0
    %v3993 = vand.u32 %v2411, 4294901760
    %3994 = vmatmul.mubr.f32.gmra.mrb[0].mxu0 %v3993
    %v3995 = vpop.f32.mrb[0].mxu0
    %v3996 = vadd.f32 %v3864, %v3995
    %v3997 = vpop.f32.mrb[0].mxu0
    %3998 = vmatprep.mubr.f32.mxu0 0.0
    %v3999 = vand.u32 %v2414, 4294901760
    %4000 = vmatmul.mubr.f32.gmra.mrb[0].mxu0 %v3999
    %v4001 = vpop.f32.mrb[0].mxu0
    %v4002 = vadd.f32 %v3872, %v4001
    %v4003 = vpop.f32.mrb[0].mxu0
    %4004 = vmatprep.mubr.f32.mxu0 0.0
    %v4005 = vand.u32 %v2417, 4294901760
    %4006 = vmatmul.mubr.f32.gmra.mrb[0].mxu0 %v4005
    %v4007 = vpop.f32.mrb[0].mxu0
    %v4008 = vadd.f32 %v3880, %v4007
    %v4009 = vpop.f32.mrb[0].mxu0
    %4010 = vdwg.mxu0
    %4011 = vmatprep.subr.mxu0 0.0
    %v4012 = vand.u32 %v2344, 4294901760
    %4013 = vmatpush1.msra.mxu0 %v4012
    %4014 = vmatprep.subr.mxu0 0.0
    %v4015 = vand.u32 %v2347, 4294901760
    %4016 = vmatpush1.msra.mxu0 %v4015
    %4017 = vmatprep.subr.mxu0 0.0
    %v4018 = vand.u32 %v2350, 4294901760
    %4019 = vmatpush1.msra.mxu0 %v4018
    %4020 = vmatprep.subr.mxu0 0.0
    %v4021 = vand.u32 %v2353, 4294901760
    %4022 = vmatpush1.msra.mxu0 %v4021
    %4023 = vmatprep.subr.mxu0 0.0
    %v4024 = vand.u32 %v2356, 4294901760
    %4025 = vmatpush1.msra.mxu0 %v4024
    %4026 = vmatprep.subr.mxu0 0.0
    %v4027 = vand.u32 %v2359, 4294901760
    %4028 = vmatpush1.msra.mxu0 %v4027
    %4029 = vmatprep.subr.mxu0 0.0
    %v4030 = vand.u32 %v2426, 4294901760
    %4031 = vmatpush1.msra.mxu0 %v4030
    %4032 = vmatprep.subr.mxu0 0.0
    %4033 = vmatpush1.msra.mxu0 0.0
    %4034 = vmatprep.subr.mxu0 0.0
    %4035 = vmatpush1.msra.mxu0 0.0
    %4036 = vmatprep.subr.mxu0 0.0
    %4037 = vmatpush1.msra.mxu0 0.0
    %4038 = vmatprep.subr.mxu0 0.0
    %4039 = vmatpush1.msra.mxu0 0.0
    %4040 = vmatprep.subr.mxu0 0.0
    %4041 = vmatpush1.msra.mxu0 0.0
    %4042 = vmatprep.subr.mxu0 0.0
    %4043 = vmatpush1.msra.mxu0 0.0
    %4044 = vmatprep.subr.mxu0 0.0
    %4045 = vmatpush1.msra.mxu0 0.0
    %4046 = vmatprep.subr.mxu0 0.0
    %4047 = vmatpush1.msra.mxu0 0.0
    %4048 = vmatprep.subr.mxu0 0.0
    %4049 = vmatpush1.msra.mxu0 0.0
    %4050 = vmatprep.subr.mxu0 0.0
    %4051 = vmatpush1.msra.mxu0 0.0
    %4052 = vmatprep.subr.mxu0 0.0
    %4053 = vmatpush1.msra.mxu0 0.0
    %4054 = vmatprep.subr.mxu0 0.0
    %4055 = vmatpush1.msra.mxu0 0.0
    %4056 = vmatprep.subr.mxu0 0.0
    %4057 = vmatpush1.msra.mxu0 0.0
    %4058 = vmatprep.subr.mxu0 0.0
    %4059 = vmatpush1.msra.mxu0 0.0
    %4060 = vmatprep.subr.mxu0 0.0
    %4061 = vmatpush1.msra.mxu0 0.0
    %4062 = vmatprep.subr.mxu0 0.0
    %4063 = vmatpush1.msra.mxu0 0.0
    %4064 = vmatprep.subr.mxu0 0.0
    %4065 = vmatpush1.msra.mxu0 0.0
    %4066 = vmatprep.subr.mxu0 0.0
    %4067 = vmatpush1.msra.mxu0 0.0
    %4068 = vmatprep.subr.mxu0 0.0
    %4069 = vmatpush1.msra.mxu0 0.0
    %4070 = vmatprep.subr.mxu0 0.0
    %4071 = vmatpush1.msra.mxu0 0.0
    %4072 = vmatprep.subr.mxu0 0.0
    %4073 = vmatpush1.msra.mxu0 0.0
    %4074 = vmatprep.subr.mxu0 0.0
    %4075 = vmatpush1.msra.mxu0 0.0
    %4076 = vmatprep.subr.mxu0 0.0
    %4077 = vmatpush1.msra.mxu0 0.0
    %4078 = vmatprep.subr.mxu0 0.0
    %4079 = vmatpush1.msra.mxu0 0.0
    %4080 = vmatprep.subr.mxu0 0.0
    %4081 = vmatpush1.msra.mxu0 0.0
    %4082 = vmatprep.mubr.f32.mxu0 0.0
    %v4083 = vand.u32 %v2399, 4294901760
    %4084 = vmatmul.mubr.f32.gmra.mrb[0].mxu0 %v4083
    %v4085 = vpop.f32.mrb[0].mxu0
    %v4086 = vadd.f32 %v3972, %v4085
    %v4087 = vpop.f32.mrb[0].mxu0
    %4088 = vmatprep.mubr.f32.mxu0 0.0
    %v4089 = vand.u32 %v2402, 4294901760
    %4090 = vmatmul.mubr.f32.gmra.mrb[0].mxu0 %v4089
    %v4091 = vpop.f32.mrb[0].mxu0
    %v4092 = vadd.f32 %v3978, %v4091
    %v4093 = vpop.f32.mrb[0].mxu0
    %4094 = vmatprep.mubr.f32.mxu0 0.0
    %v4095 = vand.u32 %v2405, 4294901760
    %4096 = vmatmul.mubr.f32.gmra.mrb[0].mxu0 %v4095
    %v4097 = vpop.f32.mrb[0].mxu0
    %v4098 = vadd.f32 %v3984, %v4097
    %v4099 = vpop.f32.mrb[0].mxu0
    %4100 = vmatprep.mubr.f32.mxu0 0.0
    %v4101 = vand.u32 %v2408, 4294901760
    %4102 = vmatmul.mubr.f32.gmra.mrb[0].mxu0 %v4101
    %v4103 = vpop.f32.mrb[0].mxu0
    %v4104 = vadd.f32 %v3990, %v4103
    %v4105 = vpop.f32.mrb[0].mxu0
    %4106 = vmatprep.mubr.f32.mxu0 0.0
    %v4107 = vand.u32 %v2411, 4294901760
    %4108 = vmatmul.mubr.f32.gmra.mrb[0].mxu0 %v4107
    %v4109 = vpop.f32.mrb[0].mxu0
    %v4110 = vadd.f32 %v3996, %v4109
    %v4111 = vpop.f32.mrb[0].mxu0
    %4112 = vmatprep.mubr.f32.mxu0 0.0
    %v4113 = vand.u32 %v2414, 4294901760
    %4114 = vmatmul.mubr.f32.gmra.mrb[0].mxu0 %v4113
    %v4115 = vpop.f32.mrb[0].mxu0
    %v4116 = vadd.f32 %v4002, %v4115
    %v4117 = vpop.f32.mrb[0].mxu0
    %4118 = vmatprep.mubr.f32.mxu0 0.0
    %v4119 = vand.u32 %v2417, 4294901760
    %4120 = vmatmul.mubr.f32.gmra.mrb[0].mxu0 %v4119
    %v4121 = vpop.f32.mrb[0].mxu0
    %v4122 = vadd.f32 %v4008, %v4121
    %v4123 = vpop.f32.mrb[0].mxu0
    %4124 = vdwg.mxu0
    %v4125 = vtanh.pop %v3297
    %v4126 = vtanh.pop %v3299
    %v4127 = vtanh.pop %v4086
    %v4128 = vtanh.pop %v3304
    %v4129 = vtanh.pop %v3306
    %v4130 = vtanh.pop %v4092
    %v4131 = vtanh.pop %v3311
    %v4132 = vtanh.pop %v3313
    %v4133 = vtanh.pop %v4098
    %v4134 = vtanh.pop %v3318
    %v4135 = vtanh.pop %v3320
    %v4136 = vtanh.pop %v4104
    %v4137 = vtanh.pop %v3325
    %v4138 = vtanh.pop %v3327
    %v4139 = vtanh.pop %v4110
    %v4140 = vtanh.pop %v3332
    %v4141 = vtanh.pop %v3334
    %v4142 = vtanh.pop %v4116
    %v4143 = vtanh.pop %v3339
    %v4144 = vtanh.pop %v3341
    %v4145 = vtanh.pop %v4122
    %4146 = vset.pattern.permute.xlu0 5
    %4147 = vperm.xlu0 %4146, %v24
    %v4148 = vpop.permute.xlu0 %4147
    %4150 = vset.pattern.permute.xlu0 5
    %4151 = vperm.xlu0 %4150, %v25
    %v4152 = vpop.permute.xlu0 %4151
    %4154 = vset.pattern.permute.xlu0 5
    %4155 = vperm.xlu0 %4154, %v26
    %v4156 = vpop.permute.xlu0 %4155
    %4158 = vset.pattern.permute.xlu0 5
    %4159 = vperm.xlu0 %4158, %v27
    %v4160 = vpop.permute.xlu0 %4159
    %4162 = vset.pattern.permute.xlu0 5
    %4163 = vperm.xlu0 %4162, %v28
    %v4164 = vpop.permute.xlu0 %4163
    %4166 = vset.pattern.permute.xlu0 5
    %4167 = vperm.xlu0 %4166, %v29
    %v4168 = vpop.permute.xlu0 %4167
    %4170 = vset.pattern.permute.xlu0 5
    %4171 = vperm.xlu0 %4170, %v30
    %v4172 = vpop.permute.xlu0 %4171
    %v4174 = vmul.f32 %v4148, %v3297
    %v4175 = vmul.f32 %v4148, %v3299
    %v4176 = vmul.f32 %v4148, %v4086
    %v4177 = vmul.f32 %v4152, %v3304
    %v4178 = vmul.f32 %v4152, %v3306
    %v4179 = vmul.f32 %v4152, %v4092
    %v4180 = vmul.f32 %v4156, %v3311
    %v4181 = vmul.f32 %v4156, %v3313
    %v4182 = vmul.f32 %v4156, %v4098
    %v4183 = vmul.f32 %v4160, %v3318
    %v4184 = vmul.f32 %v4160, %v3320
    %v4185 = vmul.f32 %v4160, %v4104
    %v4186 = vmul.f32 %v4164, %v3325
    %v4187 = vmul.f32 %v4164, %v3327
    %v4188 = vmul.f32 %v4164, %v4110
    %v4189 = vmul.f32 %v4168, %v3332
    %v4190 = vmul.f32 %v4168, %v3334
    %v4191 = vmul.f32 %v4168, %v4116
    %v4192 = vmul.f32 %v4172, %v3339
    %v4193 = vmul.f32 %v4172, %v3341
    %v4194 = vmul.f32 %v4172, %v4122
    %v4195 = vmul.f32 %v4174, %v4125
    %v4196 = vmul.f32 %v4175, %v4126
    %v4197 = vmul.f32 %v4176, %v4127
    %v4198 = vmul.f32 %v4177, %v4128
    %v4199 = vmul.f32 %v4178, %v4129
    %v4200 = vmul.f32 %v4179, %v4130
    %v4201 = vmul.f32 %v4180, %v4131
    %v4202 = vmul.f32 %v4181, %v4132
    %v4203 = vmul.f32 %v4182, %v4133
    %v4204 = vmul.f32 %v4183, %v4134
    %v4205 = vmul.f32 %v4184, %v4135
    %v4206 = vmul.f32 %v4185, %v4136
    %v4207 = vmul.f32 %v4186, %v4137
    %v4208 = vmul.f32 %v4187, %v4138
    %v4209 = vmul.f32 %v4188, %v4139
    %v4210 = vmul.f32 %v4189, %v4140
    %v4211 = vmul.f32 %v4190, %v4141
    %v4212 = vmul.f32 %v4191, %v4142
    %v4213 = vmul.f32 %v4192, %v4143
    %v4214 = vmul.f32 %v4193, %v4144
    %v4215 = vmul.f32 %v4194, %v4145
    %v4216 = vadd.f32 %v4125, %v4195
    %v4217 = vadd.f32 %v4126, %v4196
    %v4218 = vadd.f32 %v4127, %v4197
    %v4219 = vadd.f32 %v4128, %v4198
    %v4220 = vadd.f32 %v4129, %v4199
    %v4221 = vadd.f32 %v4130, %v4200
    %v4222 = vadd.f32 %v4131, %v4201
    %v4223 = vadd.f32 %v4132, %v4202
    %v4224 = vadd.f32 %v4133, %v4203
    %v4225 = vadd.f32 %v4134, %v4204
    %v4226 = vadd.f32 %v4135, %v4205
    %v4227 = vadd.f32 %v4136, %v4206
    %v4228 = vadd.f32 %v4137, %v4207
    %v4229 = vadd.f32 %v4138, %v4208
    %v4230 = vadd.f32 %v4139, %v4209
    %v4231 = vadd.f32 %v4140, %v4210
    %v4232 = vadd.f32 %v4141, %v4211
    %v4233 = vadd.f32 %v4142, %v4212
    %v4234 = vadd.f32 %v4143, %v4213
    %v4235 = vadd.f32 %v4144, %v4214
    %v4236 = vadd.f32 %v4145, %v4215
    %v4237 = vld [vmem:[%s4] sm:$0x7]
    %4238 = vset.pattern.permute.xlu0 6
    %4239 = vperm.xlu0 %4238, %v24
    %v4240 = vpop.permute.xlu0 %4239
    %v4243 = vsel %vm522, %v4237, 0
    %v4246 = vsel %vm544, %v4234, 0
    %v4249 = vsel %vm544, %v4235, 0
    %v4252 = vsel %vm544, %v4236, 0
    %v4254 = vand.u32 %v4217, 4294901760
    %4255 = vmatprep.subr.mxu0 %v4254
    %v4256 = vand.u32 %v4216, 4294901760
    %4257 = vmatpush1.msra.mxu0 %v4256
    %v4258 = vand.u32 %v4220, 4294901760
    %4259 = vmatprep.subr.mxu0 %v4258
    %v4260 = vand.u32 %v4219, 4294901760
    %4261 = vmatpush1.msra.mxu0 %v4260
    %v4262 = vand.u32 %v4223, 4294901760
    %4263 = vmatprep.subr.mxu0 %v4262
    %v4264 = vand.u32 %v4222, 4294901760
    %4265 = vmatpush1.msra.mxu0 %v4264
    %v4266 = vand.u32 %v4226, 4294901760
    %4267 = vmatprep.subr.mxu0 %v4266
    %v4268 = vand.u32 %v4225, 4294901760
    %4269 = vmatpush1.msra.mxu0 %v4268
    %v4270 = vand.u32 %v4229, 4294901760
    %4271 = vmatprep.subr.mxu0 %v4270
    %v4272 = vand.u32 %v4228, 4294901760
    %4273 = vmatpush1.msra.mxu0 %v4272
    %v4274 = vand.u32 %v4232, 4294901760
    %4275 = vmatprep.subr.mxu0 %v4274
    %v4276 = vand.u32 %v4231, 4294901760
    %4277 = vmatpush1.msra.mxu0 %v4276
    %v4278 = vand.u32 %v4249, 4294901760
    %4279 = vmatprep.subr.mxu0 %v4278
    %v4280 = vand.u32 %v4246, 4294901760
    %4281 = vmatpush1.msra.mxu0 %v4280
    %4282 = vmatprep.subr.mxu0 0.0
    %4283 = vmatpush1.msra.mxu0 0.0
    %4284 = vmatprep.subr.mxu0 0.0
    %4285 = vmatpush1.msra.mxu0 0.0
    %4286 = vmatprep.subr.mxu0 0.0
    %4287 = vmatpush1.msra.mxu0 0.0
    %4288 = vmatprep.subr.mxu0 0.0
    %4289 = vmatpush1.msra.mxu0 0.0
    %4290 = vmatprep.subr.mxu0 0.0
    %4291 = vmatpush1.msra.mxu0 0.0
    %4292 = vmatprep.subr.mxu0 0.0
    %4293 = vmatpush1.msra.mxu0 0.0
    %4294 = vmatprep.subr.mxu0 0.0
    %4295 = vmatpush1.msra.mxu0 0.0
    %4296 = vmatprep.subr.mxu0 0.0
    %4297 = vmatpush1.msra.mxu0 0.0
    %4298 = vmatprep.subr.mxu0 0.0
    %4299 = vmatpush1.msra.mxu0 0.0
    %4300 = vmatprep.subr.mxu0 0.0
    %4301 = vmatpush1.msra.mxu0 0.0
    %4302 = vmatprep.subr.mxu0 0.0
    %4303 = vmatpush1.msra.mxu0 0.0
    %4304 = vmatprep.subr.mxu0 0.0
    %4305 = vmatpush1.msra.mxu0 0.0
    %4306 = vmatprep.subr.mxu0 0.0
    %4307 = vmatpush1.msra.mxu0 0.0
    %4308 = vmatprep.subr.mxu0 0.0
    %4309 = vmatpush1.msra.mxu0 0.0
    %4310 = vmatprep.subr.mxu0 0.0
    %4311 = vmatpush1.msra.mxu0 0.0
    %4312 = vmatprep.subr.mxu0 0.0
    %4313 = vmatpush1.msra.mxu0 0.0
    %4314 = vmatprep.subr.mxu0 0.0
    %4315 = vmatpush1.msra.mxu0 0.0
    %4316 = vmatprep.subr.mxu0 0.0
    %4317 = vmatpush1.msra.mxu0 0.0
    %4318 = vmatprep.subr.mxu0 0.0
    %4319 = vmatpush1.msra.mxu0 0.0
    %4320 = vmatprep.subr.mxu0 0.0
    %4321 = vmatpush1.msra.mxu0 0.0
    %4322 = vmatprep.subr.mxu0 0.0
    %4323 = vmatpush1.msra.mxu0 0.0
    %4324 = vmatprep.subr.mxu0 0.0
    %4325 = vmatpush1.msra.mxu0 0.0
    %4326 = vmatprep.subr.mxu0 0.0
    %4327 = vmatpush1.msra.mxu0 0.0
    %4328 = vmatprep.subr.mxu0 0.0
    %4329 = vmatpush1.msra.mxu0 0.0
    %4330 = vmatprep.subr.mxu0 0.0
    %4331 = vmatpush1.msra.mxu0 0.0
    %4332 = vmatprep.mubr.f32.mxu0 0.0
    %v4333 = vand.u32 %v4243, 4294901760
    %v4334 = vsub.f32 %v4243, %v4333
    %v4335 = vand.u32 %v4334, 4294901760
    %v4336 = vsub.f32 %v4334, %v4335
    %v4337 = vand.u32 %v4336, 4294901760
    %4338 = vmatmul.mubr.f32.gmra.mrb[0].mxu0 %v4337
    %v4339 = vpop.f32.mrb[0].mxu0
    %v4340 = vadd.f32 %v4240, %v4339
    %v4341 = vpop.f32.mrb[0].mxu0
    %v4342 = vadd.f32 %v4240, %v4341
    %4343 = vdwg.mxu0
    %v4344 = vand.u32 %v4217, 4294901760
    %v4345 = vsub.f32 %v4217, %v4344
    %v4346 = vand.u32 %v4345, 4294901760
    %v4347 = vsub.f32 %v4345, %v4346
    %v4348 = vand.u32 %v4347, 4294901760
    %4349 = vmatprep.subr.mxu0 %v4348
    %v4350 = vand.u32 %v4216, 4294901760
    %v4351 = vsub.f32 %v4216, %v4350
    %v4352 = vand.u32 %v4351, 4294901760
    %v4353 = vsub.f32 %v4351, %v4352
    %v4354 = vand.u32 %v4353, 4294901760
    %4355 = vmatpush1.msra.mxu0 %v4354
    %v4356 = vand.u32 %v4220, 4294901760
    %v4357 = vsub.f32 %v4220, %v4356
    %v4358 = vand.u32 %v4357, 4294901760
    %v4359 = vsub.f32 %v4357, %v4358
    %v4360 = vand.u32 %v4359, 4294901760
    %4361 = vmatprep.subr.mxu0 %v4360
    %v4362 = vand.u32 %v4219, 4294901760
    %v4363 = vsub.f32 %v4219, %v4362
    %v4364 = vand.u32 %v4363, 4294901760
    %v4365 = vsub.f32 %v4363, %v4364
    %v4366 = vand.u32 %v4365, 4294901760
    %4367 = vmatpush1.msra.mxu0 %v4366
    %v4368 = vand.u32 %v4223, 4294901760
    %v4369 = vsub.f32 %v4223, %v4368
    %v4370 = vand.u32 %v4369, 4294901760
    %v4371 = vsub.f32 %v4369, %v4370
    %v4372 = vand.u32 %v4371, 4294901760
    %4373 = vmatprep.subr.mxu0 %v4372
    %v4374 = vand.u32 %v4222, 4294901760
    %v4375 = vsub.f32 %v4222, %v4374
    %v4376 = vand.u32 %v4375, 4294901760
    %v4377 = vsub.f32 %v4375, %v4376
    %v4378 = vand.u32 %v4377, 4294901760
    %4379 = vmatpush1.msra.mxu0 %v4378
    %v4380 = vand.u32 %v4226, 4294901760
    %v4381 = vsub.f32 %v4226, %v4380
    %v4382 = vand.u32 %v4381, 4294901760
    %v4383 = vsub.f32 %v4381, %v4382
    %v4384 = vand.u32 %v4383, 4294901760
    %4385 = vmatprep.subr.mxu0 %v4384
    %v4386 = vand.u32 %v4225, 4294901760
    %v4387 = vsub.f32 %v4225, %v4386
    %v4388 = vand.u32 %v4387, 4294901760
    %v4389 = vsub.f32 %v4387, %v4388
    %v4390 = vand.u32 %v4389, 4294901760
    %4391 = vmatpush1.msra.mxu0 %v4390
    %v4392 = vand.u32 %v4229, 4294901760
    %v4393 = vsub.f32 %v4229, %v4392
    %v4394 = vand.u32 %v4393, 4294901760
    %v4395 = vsub.f32 %v4393, %v4394
    %v4396 = vand.u32 %v4395, 4294901760
    %4397 = vmatprep.subr.mxu0 %v4396
    %v4398 = vand.u32 %v4228, 4294901760
    %v4399 = vsub.f32 %v4228, %v4398
    %v4400 = vand.u32 %v4399, 4294901760
    %v4401 = vsub.f32 %v4399, %v4400
    %v4402 = vand.u32 %v4401, 4294901760
    %4403 = vmatpush1.msra.mxu0 %v4402
    %v4404 = vand.u32 %v4232, 4294901760
    %v4405 = vsub.f32 %v4232, %v4404
    %v4406 = vand.u32 %v4405, 4294901760
    %v4407 = vsub.f32 %v4405, %v4406
    %v4408 = vand.u32 %v4407, 4294901760
    %4409 = vmatprep.subr.mxu0 %v4408
    %v4410 = vand.u32 %v4231, 4294901760
    %v4411 = vsub.f32 %v4231, %v4410
    %v4412 = vand.u32 %v4411, 4294901760
    %v4413 = vsub.f32 %v4411, %v4412
    %v4414 = vand.u32 %v4413, 4294901760
    %4415 = vmatpush1.msra.mxu0 %v4414
    %v4416 = vand.u32 %v4249, 4294901760
    %v4417 = vsub.f32 %v4249, %v4416
    %v4418 = vand.u32 %v4417, 4294901760
    %v4419 = vsub.f32 %v4417, %v4418
    %v4420 = vand.u32 %v4419, 4294901760
    %4421 = vmatprep.subr.mxu0 %v4420
    %v4422 = vand.u32 %v4246, 4294901760
    %v4423 = vsub.f32 %v4246, %v4422
    %v4424 = vand.u32 %v4423, 4294901760
    %v4425 = vsub.f32 %v4423, %v4424
    %v4426 = vand.u32 %v4425, 4294901760
    %4427 = vmatpush1.msra.mxu0 %v4426
    %4428 = vmatprep.subr.mxu0 0.0
    %4429 = vmatpush1.msra.mxu0 0.0
    %4430 = vmatprep.subr.mxu0 0.0
    %4431 = vmatpush1.msra.mxu0 0.0
    %4432 = vmatprep.subr.mxu0 0.0
    %4433 = vmatpush1.msra.mxu0 0.0
    %4434 = vmatprep.subr.mxu0 0.0
    %4435 = vmatpush1.msra.mxu0 0.0
    %4436 = vmatprep.subr.mxu0 0.0
    %4437 = vmatpush1.msra.mxu0 0.0
    %4438 = vmatprep.subr.mxu0 0.0
    %4439 = vmatpush1.msra.mxu0 0.0
    %4440 = vmatprep.subr.mxu0 0.0
    %4441 = vmatpush1.msra.mxu0 0.0
    %4442 = vmatprep.subr.mxu0 0.0
    %4443 = vmatpush1.msra.mxu0 0.0
    %4444 = vmatprep.subr.mxu0 0.0
    %4445 = vmatpush1.msra.mxu0 0.0
    %4446 = vmatprep.subr.mxu0 0.0
    %4447 = vmatpush1.msra.mxu0 0.0
    %4448 = vmatprep.subr.mxu0 0.0
    %4449 = vmatpush1.msra.mxu0 0.0
    %4450 = vmatprep.subr.mxu0 0.0
    %4451 = vmatpush1.msra.mxu0 0.0
    %4452 = vmatprep.subr.mxu0 0.0
    %4453 = vmatpush1.msra.mxu0 0.0
    %4454 = vmatprep.subr.mxu0 0.0
    %4455 = vmatpush1.msra.mxu0 0.0
    %4456 = vmatprep.subr.mxu0 0.0
    %4457 = vmatpush1.msra.mxu0 0.0
    %4458 = vmatprep.subr.mxu0 0.0
    %4459 = vmatpush1.msra.mxu0 0.0
    %4460 = vmatprep.subr.mxu0 0.0
    %4461 = vmatpush1.msra.mxu0 0.0
    %4462 = vmatprep.subr.mxu0 0.0
    %4463 = vmatpush1.msra.mxu0 0.0
    %4464 = vmatprep.subr.mxu0 0.0
    %4465 = vmatpush1.msra.mxu0 0.0
    %4466 = vmatprep.subr.mxu0 0.0
    %4467 = vmatpush1.msra.mxu0 0.0
    %4468 = vmatprep.subr.mxu0 0.0
    %4469 = vmatpush1.msra.mxu0 0.0
    %4470 = vmatprep.subr.mxu0 0.0
    %4471 = vmatpush1.msra.mxu0 0.0
    %4472 = vmatprep.subr.mxu0 0.0
    %4473 = vmatpush1.msra.mxu0 0.0
    %4474 = vmatprep.subr.mxu0 0.0
    %4475 = vmatpush1.msra.mxu0 0.0
    %4476 = vmatprep.subr.mxu0 0.0
    %4477 = vmatpush1.msra.mxu0 0.0
    %4478 = vmatprep.mubr.f32.mxu0 0.0
    %v4479 = vand.u32 %v4243, 4294901760
    %4480 = vmatmul.mubr.f32.gmra.mrb[0].mxu0 %v4479
    %v4481 = vpop.f32.mrb[0].mxu0
    %v4482 = vadd.f32 %v4340, %v4481
    %v4483 = vpop.f32.mrb[0].mxu0
    %v4484 = vadd.f32 %v4342, %v4483
    %4485 = vdwg.mxu0
    %v4486 = vand.u32 %v4217, 4294901760
    %v4487 = vsub.f32 %v4217, %v4486
    %4488 = vmatprep.subr.mxu0 %v4487
    %v4489 = vand.u32 %v4216, 4294901760
    %v4490 = vsub.f32 %v4216, %v4489
    %4491 = vmatpush1.msra.mxu0 %v4490
    %v4492 = vand.u32 %v4220, 4294901760
    %v4493 = vsub.f32 %v4220, %v4492
    %4494 = vmatprep.subr.mxu0 %v4493
    %v4495 = vand.u32 %v4219, 4294901760
    %v4496 = vsub.f32 %v4219, %v4495
    %4497 = vmatpush1.msra.mxu0 %v4496
    %v4498 = vand.u32 %v4223, 4294901760
    %v4499 = vsub.f32 %v4223, %v4498
    %4500 = vmatprep.subr.mxu0 %v4499
    %v4501 = vand.u32 %v4222, 4294901760
    %v4502 = vsub.f32 %v4222, %v4501
    %4503 = vmatpush1.msra.mxu0 %v4502
    %v4504 = vand.u32 %v4226, 4294901760
    %v4505 = vsub.f32 %v4226, %v4504
    %4506 = vmatprep.subr.mxu0 %v4505
    %v4507 = vand.u32 %v4225, 4294901760
    %v4508 = vsub.f32 %v4225, %v4507
    %4509 = vmatpush1.msra.mxu0 %v4508
    %v4510 = vand.u32 %v4229, 4294901760
    %v4511 = vsub.f32 %v4229, %v4510
    %4512 = vmatprep.subr.mxu0 %v4511
    %v4513 = vand.u32 %v4228, 4294901760
    %v4514 = vsub.f32 %v4228, %v4513
    %4515 = vmatpush1.msra.mxu0 %v4514
    %v4516 = vand.u32 %v4232, 4294901760
    %v4517 = vsub.f32 %v4232, %v4516
    %4518 = vmatprep.subr.mxu0 %v4517
    %v4519 = vand.u32 %v4231, 4294901760
    %v4520 = vsub.f32 %v4231, %v4519
    %4521 = vmatpush1.msra.mxu0 %v4520
    %v4522 = vand.u32 %v4249, 4294901760
    %v4523 = vsub.f32 %v4249, %v4522
    %4524 = vmatprep.subr.mxu0 %v4523
    %v4525 = vand.u32 %v4246, 4294901760
    %v4526 = vsub.f32 %v4246, %v4525
    %4527 = vmatpush1.msra.mxu0 %v4526
    %4528 = vmatprep.subr.mxu0 0.0
    %4529 = vmatpush1.msra.mxu0 0.0
    %4530 = vmatprep.subr.mxu0 0.0
    %4531 = vmatpush1.msra.mxu0 0.0
    %4532 = vmatprep.subr.mxu0 0.0
    %4533 = vmatpush1.msra.mxu0 0.0
    %4534 = vmatprep.subr.mxu0 0.0
    %4535 = vmatpush1.msra.mxu0 0.0
    %4536 = vmatprep.subr.mxu0 0.0
    %4537 = vmatpush1.msra.mxu0 0.0
    %4538 = vmatprep.subr.mxu0 0.0
    %4539 = vmatpush1.msra.mxu0 0.0
    %4540 = vmatprep.subr.mxu0 0.0
    %4541 = vmatpush1.msra.mxu0 0.0
    %4542 = vmatprep.subr.mxu0 0.0
    %4543 = vmatpush1.msra.mxu0 0.0
    %4544 = vmatprep.subr.mxu0 0.0
    %4545 = vmatpush1.msra.mxu0 0.0
    %4546 = vmatprep.subr.mxu0 0.0
    %4547 = vmatpush1.msra.mxu0 0.0
    %4548 = vmatprep.subr.mxu0 0.0
    %4549 = vmatpush1.msra.mxu0 0.0
    %4550 = vmatprep.subr.mxu0 0.0
    %4551 = vmatpush1.msra.mxu0 0.0
    %4552 = vmatprep.subr.mxu0 0.0
    %4553 = vmatpush1.msra.mxu0 0.0
    %4554 = vmatprep.subr.mxu0 0.0
    %4555 = vmatpush1.msra.mxu0 0.0
    %4556 = vmatprep.subr.mxu0 0.0
    %4557 = vmatpush1.msra.mxu0 0.0
    %4558 = vmatprep.subr.mxu0 0.0
    %4559 = vmatpush1.msra.mxu0 0.0
    %4560 = vmatprep.subr.mxu0 0.0
    %4561 = vmatpush1.msra.mxu0 0.0
    %4562 = vmatprep.subr.mxu0 0.0
    %4563 = vmatpush1.msra.mxu0 0.0
    %4564 = vmatprep.subr.mxu0 0.0
    %4565 = vmatpush1.msra.mxu0 0.0
    %4566 = vmatprep.subr.mxu0 0.0
    %4567 = vmatpush1.msra.mxu0 0.0
    %4568 = vmatprep.subr.mxu0 0.0
    %4569 = vmatpush1.msra.mxu0 0.0
    %4570 = vmatprep.subr.mxu0 0.0
    %4571 = vmatpush1.msra.mxu0 0.0
    %4572 = vmatprep.subr.mxu0 0.0
    %4573 = vmatpush1.msra.mxu0 0.0
    %4574 = vmatprep.subr.mxu0 0.0
    %4575 = vmatpush1.msra.mxu0 0.0
    %4576 = vmatprep.subr.mxu0 0.0
    %4577 = vmatpush1.msra.mxu0 0.0
    %4578 = vmatprep.mubr.f32.mxu0 0.0
    %v4579 = vand.u32 %v4243, 4294901760
    %v4580 = vsub.f32 %v4243, %v4579
    %4581 = vmatmul.mubr.f32.gmra.mrb[0].mxu0 %v4580
    %v4582 = vpop.f32.mrb[0].mxu0
    %v4583 = vadd.f32 %v4482, %v4582
    %v4584 = vpop.f32.mrb[0].mxu0
    %v4585 = vadd.f32 %v4484, %v4584
    %4586 = vdwg.mxu0
    %v4587 = vand.u32 %v4217, 4294901760
    %4588 = vmatprep.subr.mxu0 %v4587
    %v4589 = vand.u32 %v4216, 4294901760
    %4590 = vmatpush1.msra.mxu0 %v4589
    %v4591 = vand.u32 %v4220, 4294901760
    %4592 = vmatprep.subr.mxu0 %v4591
    %v4593 = vand.u32 %v4219, 4294901760
    %4594 = vmatpush1.msra.mxu0 %v4593
    %v4595 = vand.u32 %v4223, 4294901760
    %4596 = vmatprep.subr.mxu0 %v4595
    %v4597 = vand.u32 %v4222, 4294901760
    %4598 = vmatpush1.msra.mxu0 %v4597
    %v4599 = vand.u32 %v4226, 4294901760
    %4600 = vmatprep.subr.mxu0 %v4599
    %v4601 = vand.u32 %v4225, 4294901760
    %4602 = vmatpush1.msra.mxu0 %v4601
    %v4603 = vand.u32 %v4229, 4294901760
    %4604 = vmatprep.subr.mxu0 %v4603
    %v4605 = vand.u32 %v4228, 4294901760
    %4606 = vmatpush1.msra.mxu0 %v4605
    %v4607 = vand.u32 %v4232, 4294901760
    %4608 = vmatprep.subr.mxu0 %v4607
    %v4609 = vand.u32 %v4231, 4294901760
    %4610 = vmatpush1.msra.mxu0 %v4609
    %v4611 = vand.u32 %v4249, 4294901760
    %4612 = vmatprep.subr.mxu0 %v4611
    %v4613 = vand.u32 %v4246, 4294901760
    %4614 = vmatpush1.msra.mxu0 %v4613
    %4615 = vmatprep.subr.mxu0 0.0
    %4616 = vmatpush1.msra.mxu0 0.0
    %4617 = vmatprep.subr.mxu0 0.0
    %4618 = vmatpush1.msra.mxu0 0.0
    %4619 = vmatprep.subr.mxu0 0.0
    %4620 = vmatpush1.msra.mxu0 0.0
    %4621 = vmatprep.subr.mxu0 0.0
    %4622 = vmatpush1.msra.mxu0 0.0
    %4623 = vmatprep.subr.mxu0 0.0
    %4624 = vmatpush1.msra.mxu0 0.0
    %4625 = vmatprep.subr.mxu0 0.0
    %4626 = vmatpush1.msra.mxu0 0.0
    %4627 = vmatprep.subr.mxu0 0.0
    %4628 = vmatpush1.msra.mxu0 0.0
    %4629 = vmatprep.subr.mxu0 0.0
    %4630 = vmatpush1.msra.mxu0 0.0
    %4631 = vmatprep.subr.mxu0 0.0
    %4632 = vmatpush1.msra.mxu0 0.0
    %4633 = vmatprep.subr.mxu0 0.0
    %4634 = vmatpush1.msra.mxu0 0.0
    %4635 = vmatprep.subr.mxu0 0.0
    %4636 = vmatpush1.msra.mxu0 0.0
    %4637 = vmatprep.subr.mxu0 0.0
    %4638 = vmatpush1.msra.mxu0 0.0
    %4639 = vmatprep.subr.mxu0 0.0
    %4640 = vmatpush1.msra.mxu0 0.0
    %4641 = vmatprep.subr.mxu0 0.0
    %4642 = vmatpush1.msra.mxu0 0.0
    %4643 = vmatprep.subr.mxu0 0.0
    %4644 = vmatpush1.msra.mxu0 0.0
    %4645 = vmatprep.subr.mxu0 0.0
    %4646 = vmatpush1.msra.mxu0 0.0
    %4647 = vmatprep.subr.mxu0 0.0
    %4648 = vmatpush1.msra.mxu0 0.0
    %4649 = vmatprep.subr.mxu0 0.0
    %4650 = vmatpush1.msra.mxu0 0.0
    %4651 = vmatprep.subr.mxu0 0.0
    %4652 = vmatpush1.msra.mxu0 0.0
    %4653 = vmatprep.subr.mxu0 0.0
    %4654 = vmatpush1.msra.mxu0 0.0
    %4655 = vmatprep.subr.mxu0 0.0
    %4656 = vmatpush1.msra.mxu0 0.0
    %4657 = vmatprep.subr.mxu0 0.0
    %4658 = vmatpush1.msra.mxu0 0.0
    %4659 = vmatprep.subr.mxu0 0.0
    %4660 = vmatpush1.msra.mxu0 0.0
    %4661 = vmatprep.subr.mxu0 0.0
    %4662 = vmatpush1.msra.mxu0 0.0
    %4663 = vmatprep.subr.mxu0 0.0
    %4664 = vmatpush1.msra.mxu0 0.0
    %4665 = vmatprep.mubr.f32.mxu0 0.0
    %v4666 = vand.u32 %v4243, 4294901760
    %v4667 = vsub.f32 %v4243, %v4666
    %v4668 = vand.u32 %v4667, 4294901760
    %4669 = vmatmul.mubr.f32.gmra.mrb[0].mxu0 %v4668
    %v4670 = vpop.f32.mrb[0].mxu0
    %v4671 = vadd.f32 %v4583, %v4670
    %v4672 = vpop.f32.mrb[0].mxu0
    %v4673 = vadd.f32 %v4585, %v4672
    %4674 = vdwg.mxu0
    %v4675 = vand.u32 %v4217, 4294901760
    %v4676 = vsub.f32 %v4217, %v4675
    %v4677 = vand.u32 %v4676, 4294901760
    %4678 = vmatprep.subr.mxu0 %v4677
    %v4679 = vand.u32 %v4216, 4294901760
    %v4680 = vsub.f32 %v4216, %v4679
    %v4681 = vand.u32 %v4680, 4294901760
    %4682 = vmatpush1.msra.mxu0 %v4681
    %v4683 = vand.u32 %v4220, 4294901760
    %v4684 = vsub.f32 %v4220, %v4683
    %v4685 = vand.u32 %v4684, 4294901760
    %4686 = vmatprep.subr.mxu0 %v4685
    %v4687 = vand.u32 %v4219, 4294901760
    %v4688 = vsub.f32 %v4219, %v4687
    %v4689 = vand.u32 %v4688, 4294901760
    %4690 = vmatpush1.msra.mxu0 %v4689
    %v4691 = vand.u32 %v4223, 4294901760
    %v4692 = vsub.f32 %v4223, %v4691
    %v4693 = vand.u32 %v4692, 4294901760
    %4694 = vmatprep.subr.mxu0 %v4693
    %v4695 = vand.u32 %v4222, 4294901760
    %v4696 = vsub.f32 %v4222, %v4695
    %v4697 = vand.u32 %v4696, 4294901760
    %4698 = vmatpush1.msra.mxu0 %v4697
    %v4699 = vand.u32 %v4226, 4294901760
    %v4700 = vsub.f32 %v4226, %v4699
    %v4701 = vand.u32 %v4700, 4294901760
    %4702 = vmatprep.subr.mxu0 %v4701
    %v4703 = vand.u32 %v4225, 4294901760
    %v4704 = vsub.f32 %v4225, %v4703
    %v4705 = vand.u32 %v4704, 4294901760
    %4706 = vmatpush1.msra.mxu0 %v4705
    %v4707 = vand.u32 %v4229, 4294901760
    %v4708 = vsub.f32 %v4229, %v4707
    %v4709 = vand.u32 %v4708, 4294901760
    %4710 = vmatprep.subr.mxu0 %v4709
    %v4711 = vand.u32 %v4228, 4294901760
    %v4712 = vsub.f32 %v4228, %v4711
    %v4713 = vand.u32 %v4712, 4294901760
    %4714 = vmatpush1.msra.mxu0 %v4713
    %v4715 = vand.u32 %v4232, 4294901760
    %v4716 = vsub.f32 %v4232, %v4715
    %v4717 = vand.u32 %v4716, 4294901760
    %4718 = vmatprep.subr.mxu0 %v4717
    %v4719 = vand.u32 %v4231, 4294901760
    %v4720 = vsub.f32 %v4231, %v4719
    %v4721 = vand.u32 %v4720, 4294901760
    %4722 = vmatpush1.msra.mxu0 %v4721
    %v4723 = vand.u32 %v4249, 4294901760
    %v4724 = vsub.f32 %v4249, %v4723
    %v4725 = vand.u32 %v4724, 4294901760
    %4726 = vmatprep.subr.mxu0 %v4725
    %v4727 = vand.u32 %v4246, 4294901760
    %v4728 = vsub.f32 %v4246, %v4727
    %v4729 = vand.u32 %v4728, 4294901760
    %4730 = vmatpush1.msra.mxu0 %v4729
    %4731 = vmatprep.subr.mxu0 0.0
    %4732 = vmatpush1.msra.mxu0 0.0
    %4733 = vmatprep.subr.mxu0 0.0
    %4734 = vmatpush1.msra.mxu0 0.0
    %4735 = vmatprep.subr.mxu0 0.0
    %4736 = vmatpush1.msra.mxu0 0.0
    %4737 = vmatprep.subr.mxu0 0.0
    %4738 = vmatpush1.msra.mxu0 0.0
    %4739 = vmatprep.subr.mxu0 0.0
    %4740 = vmatpush1.msra.mxu0 0.0
    %4741 = vmatprep.subr.mxu0 0.0
    %4742 = vmatpush1.msra.mxu0 0.0
    %4743 = vmatprep.subr.mxu0 0.0
    %4744 = vmatpush1.msra.mxu0 0.0
    %4745 = vmatprep.subr.mxu0 0.0
    %4746 = vmatpush1.msra.mxu0 0.0
    %4747 = vmatprep.subr.mxu0 0.0
    %4748 = vmatpush1.msra.mxu0 0.0
    %4749 = vmatprep.subr.mxu0 0.0
    %4750 = vmatpush1.msra.mxu0 0.0
    %4751 = vmatprep.subr.mxu0 0.0
    %4752 = vmatpush1.msra.mxu0 0.0
    %4753 = vmatprep.subr.mxu0 0.0
    %4754 = vmatpush1.msra.mxu0 0.0
    %4755 = vmatprep.subr.mxu0 0.0
    %4756 = vmatpush1.msra.mxu0 0.0
    %4757 = vmatprep.subr.mxu0 0.0
    %4758 = vmatpush1.msra.mxu0 0.0
    %4759 = vmatprep.subr.mxu0 0.0
    %4760 = vmatpush1.msra.mxu0 0.0
    %4761 = vmatprep.subr.mxu0 0.0
    %4762 = vmatpush1.msra.mxu0 0.0
    %4763 = vmatprep.subr.mxu0 0.0
    %4764 = vmatpush1.msra.mxu0 0.0
    %4765 = vmatprep.subr.mxu0 0.0
    %4766 = vmatpush1.msra.mxu0 0.0
    %4767 = vmatprep.subr.mxu0 0.0
    %4768 = vmatpush1.msra.mxu0 0.0
    %4769 = vmatprep.subr.mxu0 0.0
    %4770 = vmatpush1.msra.mxu0 0.0
    %4771 = vmatprep.subr.mxu0 0.0
    %4772 = vmatpush1.msra.mxu0 0.0
    %4773 = vmatprep.subr.mxu0 0.0
    %4774 = vmatpush1.msra.mxu0 0.0
    %4775 = vmatprep.subr.mxu0 0.0
    %4776 = vmatpush1.msra.mxu0 0.0
    %4777 = vmatprep.subr.mxu0 0.0
    %4778 = vmatpush1.msra.mxu0 0.0
    %4779 = vmatprep.subr.mxu0 0.0
    %4780 = vmatpush1.msra.mxu0 0.0
    %4781 = vmatprep.mubr.f32.mxu0 0.0
    %v4782 = vand.u32 %v4243, 4294901760
    %4783 = vmatmul.mubr.f32.gmra.mrb[0].mxu0 %v4782
    %v4784 = vpop.f32.mrb[0].mxu0
    %v4785 = vadd.f32 %v4671, %v4784
    %v4786 = vpop.f32.mrb[0].mxu0
    %v4787 = vadd.f32 %v4673, %v4786
    %4788 = vdwg.mxu0
    %v4789 = vand.u32 %v4217, 4294901760
    %4790 = vmatprep.subr.mxu0 %v4789
    %v4791 = vand.u32 %v4216, 4294901760
    %4792 = vmatpush1.msra.mxu0 %v4791
    %v4793 = vand.u32 %v4220, 4294901760
    %4794 = vmatprep.subr.mxu0 %v4793
    %v4795 = vand.u32 %v4219, 4294901760
    %4796 = vmatpush1.msra.mxu0 %v4795
    %v4797 = vand.u32 %v4223, 4294901760
    %4798 = vmatprep.subr.mxu0 %v4797
    %v4799 = vand.u32 %v4222, 4294901760
    %4800 = vmatpush1.msra.mxu0 %v4799
    %v4801 = vand.u32 %v4226, 4294901760
    %4802 = vmatprep.subr.mxu0 %v4801
    %v4803 = vand.u32 %v4225, 4294901760
    %4804 = vmatpush1.msra.mxu0 %v4803
    %v4805 = vand.u32 %v4229, 4294901760
    %4806 = vmatprep.subr.mxu0 %v4805
    %v4807 = vand.u32 %v4228, 4294901760
    %4808 = vmatpush1.msra.mxu0 %v4807
    %v4809 = vand.u32 %v4232, 4294901760
    %4810 = vmatprep.subr.mxu0 %v4809
    %v4811 = vand.u32 %v4231, 4294901760
    %4812 = vmatpush1.msra.mxu0 %v4811
    %v4813 = vand.u32 %v4249, 4294901760
    %4814 = vmatprep.subr.mxu0 %v4813
    %v4815 = vand.u32 %v4246, 4294901760
    %4816 = vmatpush1.msra.mxu0 %v4815
    %4817 = vmatprep.subr.mxu0 0.0
    %4818 = vmatpush1.msra.mxu0 0.0
    %4819 = vmatprep.subr.mxu0 0.0
    %4820 = vmatpush1.msra.mxu0 0.0
    %4821 = vmatprep.subr.mxu0 0.0
    %4822 = vmatpush1.msra.mxu0 0.0
    %4823 = vmatprep.subr.mxu0 0.0
    %4824 = vmatpush1.msra.mxu0 0.0
    %4825 = vmatprep.subr.mxu0 0.0
    %4826 = vmatpush1.msra.mxu0 0.0
    %4827 = vmatprep.subr.mxu0 0.0
    %4828 = vmatpush1.msra.mxu0 0.0
    %4829 = vmatprep.subr.mxu0 0.0
    %4830 = vmatpush1.msra.mxu0 0.0
    %4831 = vmatprep.subr.mxu0 0.0
    %4832 = vmatpush1.msra.mxu0 0.0
    %4833 = vmatprep.subr.mxu0 0.0
    %4834 = vmatpush1.msra.mxu0 0.0
    %4835 = vmatprep.subr.mxu0 0.0
    %4836 = vmatpush1.msra.mxu0 0.0
    %4837 = vmatprep.subr.mxu0 0.0
    %4838 = vmatpush1.msra.mxu0 0.0
    %4839 = vmatprep.subr.mxu0 0.0
    %4840 = vmatpush1.msra.mxu0 0.0
    %4841 = vmatprep.subr.mxu0 0.0
    %4842 = vmatpush1.msra.mxu0 0.0
    %4843 = vmatprep.subr.mxu0 0.0
    %4844 = vmatpush1.msra.mxu0 0.0
    %4845 = vmatprep.subr.mxu0 0.0
    %4846 = vmatpush1.msra.mxu0 0.0
    %4847 = vmatprep.subr.mxu0 0.0
    %4848 = vmatpush1.msra.mxu0 0.0
    %4849 = vmatprep.subr.mxu0 0.0
    %4850 = vmatpush1.msra.mxu0 0.0
    %4851 = vmatprep.subr.mxu0 0.0
    %4852 = vmatpush1.msra.mxu0 0.0
    %4853 = vmatprep.subr.mxu0 0.0
    %4854 = vmatpush1.msra.mxu0 0.0
    %4855 = vmatprep.subr.mxu0 0.0
    %4856 = vmatpush1.msra.mxu0 0.0
    %4857 = vmatprep.subr.mxu0 0.0
    %4858 = vmatpush1.msra.mxu0 0.0
    %4859 = vmatprep.subr.mxu0 0.0
    %4860 = vmatpush1.msra.mxu0 0.0
    %4861 = vmatprep.subr.mxu0 0.0
    %4862 = vmatpush1.msra.mxu0 0.0
    %4863 = vmatprep.subr.mxu0 0.0
    %4864 = vmatpush1.msra.mxu0 0.0
    %4865 = vmatprep.subr.mxu0 0.0
    %4866 = vmatpush1.msra.mxu0 0.0
    %4867 = vmatprep.mubr.f32.mxu0 0.0
    %v4868 = vand.u32 %v4243, 4294901760
    %4869 = vmatmul.mubr.f32.gmra.mrb[0].mxu0 %v4868
    %v4870 = vpop.f32.mrb[0].mxu0
    %v4871 = vadd.f32 %v4785, %v4870
    %v4872 = vpop.f32.mrb[0].mxu0
    %v4873 = vadd.f32 %v4787, %v4872
    %4874 = vdwg.mxu0
    %4875 = vmatprep.subr.mxu0 0.0
    %v4876 = vand.u32 %v4218, 4294901760
    %4877 = vmatpush1.msra.mxu0 %v4876
    %4878 = vmatprep.subr.mxu0 0.0
    %v4879 = vand.u32 %v4221, 4294901760
    %4880 = vmatpush1.msra.mxu0 %v4879
    %4881 = vmatprep.subr.mxu0 0.0
    %v4882 = vand.u32 %v4224, 4294901760
    %4883 = vmatpush1.msra.mxu0 %v4882
    %4884 = vmatprep.subr.mxu0 0.0
    %v4885 = vand.u32 %v4227, 4294901760
    %4886 = vmatpush1.msra.mxu0 %v4885
    %4887 = vmatprep.subr.mxu0 0.0
    %v4888 = vand.u32 %v4230, 4294901760
    %4889 = vmatpush1.msra.mxu0 %v4888
    %4890 = vmatprep.subr.mxu0 0.0
    %v4891 = vand.u32 %v4233, 4294901760
    %4892 = vmatpush1.msra.mxu0 %v4891
    %4893 = vmatprep.subr.mxu0 0.0
    %v4894 = vand.u32 %v4252, 4294901760
    %4895 = vmatpush1.msra.mxu0 %v4894
    %4896 = vmatprep.subr.mxu0 0.0
    %4897 = vmatpush1.msra.mxu0 0.0
    %4898 = vmatprep.subr.mxu0 0.0
    %4899 = vmatpush1.msra.mxu0 0.0
    %4900 = vmatprep.subr.mxu0 0.0
    %4901 = vmatpush1.msra.mxu0 0.0
    %4902 = vmatprep.subr.mxu0 0.0
    %4903 = vmatpush1.msra.mxu0 0.0
    %4904 = vmatprep.subr.mxu0 0.0
    %4905 = vmatpush1.msra.mxu0 0.0
    %4906 = vmatprep.subr.mxu0 0.0
    %4907 = vmatpush1.msra.mxu0 0.0
    %4908 = vmatprep.subr.mxu0 0.0
    %4909 = vmatpush1.msra.mxu0 0.0
    %4910 = vmatprep.subr.mxu0 0.0
    %4911 = vmatpush1.msra.mxu0 0.0
    %4912 = vmatprep.subr.mxu0 0.0
    %4913 = vmatpush1.msra.mxu0 0.0
    %4914 = vmatprep.subr.mxu0 0.0
    %4915 = vmatpush1.msra.mxu0 0.0
    %4916 = vmatprep.subr.mxu0 0.0
    %4917 = vmatpush1.msra.mxu0 0.0
    %4918 = vmatprep.subr.mxu0 0.0
    %4919 = vmatpush1.msra.mxu0 0.0
    %4920 = vmatprep.subr.mxu0 0.0
    %4921 = vmatpush1.msra.mxu0 0.0
    %4922 = vmatprep.subr.mxu0 0.0
    %4923 = vmatpush1.msra.mxu0 0.0
    %4924 = vmatprep.subr.mxu0 0.0
    %4925 = vmatpush1.msra.mxu0 0.0
    %4926 = vmatprep.subr.mxu0 0.0
    %4927 = vmatpush1.msra.mxu0 0.0
    %4928 = vmatprep.subr.mxu0 0.0
    %4929 = vmatpush1.msra.mxu0 0.0
    %4930 = vmatprep.subr.mxu0 0.0
    %4931 = vmatpush1.msra.mxu0 0.0
    %4932 = vmatprep.subr.mxu0 0.0
    %4933 = vmatpush1.msra.mxu0 0.0
    %4934 = vmatprep.subr.mxu0 0.0
    %4935 = vmatpush1.msra.mxu0 0.0
    %4936 = vmatprep.subr.mxu0 0.0
    %4937 = vmatpush1.msra.mxu0 0.0
    %4938 = vmatprep.subr.mxu0 0.0
    %4939 = vmatpush1.msra.mxu0 0.0
    %4940 = vmatprep.subr.mxu0 0.0
    %4941 = vmatpush1.msra.mxu0 0.0
    %4942 = vmatprep.subr.mxu0 0.0
    %4943 = vmatpush1.msra.mxu0 0.0
    %4944 = vmatprep.subr.mxu0 0.0
    %4945 = vmatpush1.msra.mxu0 0.0
    %4946 = vmatprep.mubr.f32.mxu0 0.0
    %v4947 = vand.u32 %v4243, 4294901760
    %v4948 = vsub.f32 %v4243, %v4947
    %v4949 = vand.u32 %v4948, 4294901760
    %v4950 = vsub.f32 %v4948, %v4949
    %v4951 = vand.u32 %v4950, 4294901760
    %4952 = vmatmul.mubr.f32.gmra.mrb[0].mxu0 %v4951
    %v4953 = vpop.f32.mrb[0].mxu0
    %v4954 = vadd.f32 %v4240, %v4953
    %v4955 = vpop.f32.mrb[0].mxu0
    %4956 = vdwg.mxu0
    %4957 = vmatprep.subr.mxu0 0.0
    %v4958 = vand.u32 %v4218, 4294901760
    %v4959 = vsub.f32 %v4218, %v4958
    %v4960 = vand.u32 %v4959, 4294901760
    %v4961 = vsub.f32 %v4959, %v4960
    %v4962 = vand.u32 %v4961, 4294901760
    %4963 = vmatpush1.msra.mxu0 %v4962
    %4964 = vmatprep.subr.mxu0 0.0
    %v4965 = vand.u32 %v4221, 4294901760
    %v4966 = vsub.f32 %v4221, %v4965
    %v4967 = vand.u32 %v4966, 4294901760
    %v4968 = vsub.f32 %v4966, %v4967
    %v4969 = vand.u32 %v4968, 4294901760
    %4970 = vmatpush1.msra.mxu0 %v4969
    %4971 = vmatprep.subr.mxu0 0.0
    %v4972 = vand.u32 %v4224, 4294901760
    %v4973 = vsub.f32 %v4224, %v4972
    %v4974 = vand.u32 %v4973, 4294901760
    %v4975 = vsub.f32 %v4973, %v4974
    %v4976 = vand.u32 %v4975, 4294901760
    %4977 = vmatpush1.msra.mxu0 %v4976
    %4978 = vmatprep.subr.mxu0 0.0
    %v4979 = vand.u32 %v4227, 4294901760
    %v4980 = vsub.f32 %v4227, %v4979
    %v4981 = vand.u32 %v4980, 4294901760
    %v4982 = vsub.f32 %v4980, %v4981
    %v4983 = vand.u32 %v4982, 4294901760
    %4984 = vmatpush1.msra.mxu0 %v4983
    %4985 = vmatprep.subr.mxu0 0.0
    %v4986 = vand.u32 %v4230, 4294901760
    %v4987 = vsub.f32 %v4230, %v4986
    %v4988 = vand.u32 %v4987, 4294901760
    %v4989 = vsub.f32 %v4987, %v4988
    %v4990 = vand.u32 %v4989, 4294901760
    %4991 = vmatpush1.msra.mxu0 %v4990
    %4992 = vmatprep.subr.mxu0 0.0
    %v4993 = vand.u32 %v4233, 4294901760
    %v4994 = vsub.f32 %v4233, %v4993
    %v4995 = vand.u32 %v4994, 4294901760
    %v4996 = vsub.f32 %v4994, %v4995
    %v4997 = vand.u32 %v4996, 4294901760
    %4998 = vmatpush1.msra.mxu0 %v4997
    %4999 = vmatprep.subr.mxu0 0.0
    %v5000 = vand.u32 %v4252, 4294901760
    %v5001 = vsub.f32 %v4252, %v5000
    %v5002 = vand.u32 %v5001, 4294901760
    %v5003 = vsub.f32 %v5001, %v5002
    %v5004 = vand.u32 %v5003, 4294901760
    %5005 = vmatpush1.msra.mxu0 %v5004
    %5006 = vmatprep.subr.mxu0 0.0
    %5007 = vmatpush1.msra.mxu0 0.0
    %5008 = vmatprep.subr.mxu0 0.0
    %5009 = vmatpush1.msra.mxu0 0.0
    %5010 = vmatprep.subr.mxu0 0.0
    %5011 = vmatpush1.msra.mxu0 0.0
    %5012 = vmatprep.subr.mxu0 0.0
    %5013 = vmatpush1.msra.mxu0 0.0
    %5014 = vmatprep.subr.mxu0 0.0
    %5015 = vmatpush1.msra.mxu0 0.0
    %5016 = vmatprep.subr.mxu0 0.0
    %5017 = vmatpush1.msra.mxu0 0.0
    %5018 = vmatprep.subr.mxu0 0.0
    %5019 = vmatpush1.msra.mxu0 0.0
    %5020 = vmatprep.subr.mxu0 0.0
    %5021 = vmatpush1.msra.mxu0 0.0
    %5022 = vmatprep.subr.mxu0 0.0
    %5023 = vmatpush1.msra.mxu0 0.0
    %5024 = vmatprep.subr.mxu0 0.0
    %5025 = vmatpush1.msra.mxu0 0.0
    %5026 = vmatprep.subr.mxu0 0.0
    %5027 = vmatpush1.msra.mxu0 0.0
    %5028 = vmatprep.subr.mxu0 0.0
    %5029 = vmatpush1.msra.mxu0 0.0
    %5030 = vmatprep.subr.mxu0 0.0
    %5031 = vmatpush1.msra.mxu0 0.0
    %5032 = vmatprep.subr.mxu0 0.0
    %5033 = vmatpush1.msra.mxu0 0.0
    %5034 = vmatprep.subr.mxu0 0.0
    %5035 = vmatpush1.msra.mxu0 0.0
    %5036 = vmatprep.subr.mxu0 0.0
    %5037 = vmatpush1.msra.mxu0 0.0
    %5038 = vmatprep.subr.mxu0 0.0
    %5039 = vmatpush1.msra.mxu0 0.0
    %5040 = vmatprep.subr.mxu0 0.0
    %5041 = vmatpush1.msra.mxu0 0.0
    %5042 = vmatprep.subr.mxu0 0.0
    %5043 = vmatpush1.msra.mxu0 0.0
    %5044 = vmatprep.subr.mxu0 0.0
    %5045 = vmatpush1.msra.mxu0 0.0
    %5046 = vmatprep.subr.mxu0 0.0
    %5047 = vmatpush1.msra.mxu0 0.0
    %5048 = vmatprep.subr.mxu0 0.0
    %5049 = vmatpush1.msra.mxu0 0.0
    %5050 = vmatprep.subr.mxu0 0.0
    %5051 = vmatpush1.msra.mxu0 0.0
    %5052 = vmatprep.subr.mxu0 0.0
    %5053 = vmatpush1.msra.mxu0 0.0
    %5054 = vmatprep.subr.mxu0 0.0
    %5055 = vmatpush1.msra.mxu0 0.0
    %5056 = vmatprep.mubr.f32.mxu0 0.0
    %v5057 = vand.u32 %v4243, 4294901760
    %5058 = vmatmul.mubr.f32.gmra.mrb[0].mxu0 %v5057
    %v5059 = vpop.f32.mrb[0].mxu0
    %v5060 = vadd.f32 %v4954, %v5059
    %v5061 = vpop.f32.mrb[0].mxu0
    %5062 = vdwg.mxu0
    %5063 = vmatprep.subr.mxu0 0.0
    %v5064 = vand.u32 %v4218, 4294901760
    %v5065 = vsub.f32 %v4218, %v5064
    %5066 = vmatpush1.msra.mxu0 %v5065
    %5067 = vmatprep.subr.mxu0 0.0
    %v5068 = vand.u32 %v4221, 4294901760
    %v5069 = vsub.f32 %v4221, %v5068
    %5070 = vmatpush1.msra.mxu0 %v5069
    %5071 = vmatprep.subr.mxu0 0.0
    %v5072 = vand.u32 %v4224, 4294901760
    %v5073 = vsub.f32 %v4224, %v5072
    %5074 = vmatpush1.msra.mxu0 %v5073
    %5075 = vmatprep.subr.mxu0 0.0
    %v5076 = vand.u32 %v4227, 4294901760
    %v5077 = vsub.f32 %v4227, %v5076
    %5078 = vmatpush1.msra.mxu0 %v5077
    %5079 = vmatprep.subr.mxu0 0.0
    %v5080 = vand.u32 %v4230, 4294901760
    %v5081 = vsub.f32 %v4230, %v5080
    %5082 = vmatpush1.msra.mxu0 %v5081
    %5083 = vmatprep.subr.mxu0 0.0
    %v5084 = vand.u32 %v4233, 4294901760
    %v5085 = vsub.f32 %v4233, %v5084
    %5086 = vmatpush1.msra.mxu0 %v5085
    %5087 = vmatprep.subr.mxu0 0.0
    %v5088 = vand.u32 %v4252, 4294901760
    %v5089 = vsub.f32 %v4252, %v5088
    %5090 = vmatpush1.msra.mxu0 %v5089
    %5091 = vmatprep.subr.mxu0 0.0
    %5092 = vmatpush1.msra.mxu0 0.0
    %5093 = vmatprep.subr.mxu0 0.0
    %5094 = vmatpush1.msra.mxu0 0.0
    %5095 = vmatprep.subr.mxu0 0.0
    %5096 = vmatpush1.msra.mxu0 0.0
    %5097 = vmatprep.subr.mxu0 0.0
    %5098 = vmatpush1.msra.mxu0 0.0
    %5099 = vmatprep.subr.mxu0 0.0
    %5100 = vmatpush1.msra.mxu0 0.0
    %5101 = vmatprep.subr.mxu0 0.0
    %5102 = vmatpush1.msra.mxu0 0.0
    %5103 = vmatprep.subr.mxu0 0.0
    %5104 = vmatpush1.msra.mxu0 0.0
    %5105 = vmatprep.subr.mxu0 0.0
    %5106 = vmatpush1.msra.mxu0 0.0
    %5107 = vmatprep.subr.mxu0 0.0
    %5108 = vmatpush1.msra.mxu0 0.0
    %5109 = vmatprep.subr.mxu0 0.0
    %5110 = vmatpush1.msra.mxu0 0.0
    %5111 = vmatprep.subr.mxu0 0.0
    %5112 = vmatpush1.msra.mxu0 0.0
    %5113 = vmatprep.subr.mxu0 0.0
    %5114 = vmatpush1.msra.mxu0 0.0
    %5115 = vmatprep.subr.mxu0 0.0
    %5116 = vmatpush1.msra.mxu0 0.0
    %5117 = vmatprep.subr.mxu0 0.0
    %5118 = vmatpush1.msra.mxu0 0.0
    %5119 = vmatprep.subr.mxu0 0.0
    %5120 = vmatpush1.msra.mxu0 0.0
    %5121 = vmatprep.subr.mxu0 0.0
    %5122 = vmatpush1.msra.mxu0 0.0
    %5123 = vmatprep.subr.mxu0 0.0
    %5124 = vmatpush1.msra.mxu0 0.0
    %5125 = vmatprep.subr.mxu0 0.0
    %5126 = vmatpush1.msra.mxu0 0.0
    %5127 = vmatprep.subr.mxu0 0.0
    %5128 = vmatpush1.msra.mxu0 0.0
    %5129 = vmatprep.subr.mxu0 0.0
    %5130 = vmatpush1.msra.mxu0 0.0
    %5131 = vmatprep.subr.mxu0 0.0
    %5132 = vmatpush1.msra.mxu0 0.0
    %5133 = vmatprep.subr.mxu0 0.0
    %5134 = vmatpush1.msra.mxu0 0.0
    %5135 = vmatprep.subr.mxu0 0.0
    %5136 = vmatpush1.msra.mxu0 0.0
    %5137 = vmatprep.subr.mxu0 0.0
    %5138 = vmatpush1.msra.mxu0 0.0
    %5139 = vmatprep.subr.mxu0 0.0
    %5140 = vmatpush1.msra.mxu0 0.0
    %5141 = vmatprep.mubr.f32.mxu0 0.0
    %v5142 = vand.u32 %v4243, 4294901760
    %v5143 = vsub.f32 %v4243, %v5142
    %5144 = vmatmul.mubr.f32.gmra.mrb[0].mxu0 %v5143
    %v5145 = vpop.f32.mrb[0].mxu0
    %v5146 = vadd.f32 %v5060, %v5145
    %v5147 = vpop.f32.mrb[0].mxu0
    %5148 = vdwg.mxu0
    %5149 = vmatprep.subr.mxu0 0.0
    %v5150 = vand.u32 %v4218, 4294901760
    %5151 = vmatpush1.msra.mxu0 %v5150
    %5152 = vmatprep.subr.mxu0 0.0
    %v5153 = vand.u32 %v4221, 4294901760
    %5154 = vmatpush1.msra.mxu0 %v5153
    %5155 = vmatprep.subr.mxu0 0.0
    %v5156 = vand.u32 %v4224, 4294901760
    %5157 = vmatpush1.msra.mxu0 %v5156
    %5158 = vmatprep.subr.mxu0 0.0
    %v5159 = vand.u32 %v4227, 4294901760
    %5160 = vmatpush1.msra.mxu0 %v5159
    %5161 = vmatprep.subr.mxu0 0.0
    %v5162 = vand.u32 %v4230, 4294901760
    %5163 = vmatpush1.msra.mxu0 %v5162
    %5164 = vmatprep.subr.mxu0 0.0
    %v5165 = vand.u32 %v4233, 4294901760
    %5166 = vmatpush1.msra.mxu0 %v5165
    %5167 = vmatprep.subr.mxu0 0.0
    %v5168 = vand.u32 %v4252, 4294901760
    %5169 = vmatpush1.msra.mxu0 %v5168
    %5170 = vmatprep.subr.mxu0 0.0
    %5171 = vmatpush1.msra.mxu0 0.0
    %5172 = vmatprep.subr.mxu0 0.0
    %5173 = vmatpush1.msra.mxu0 0.0
    %5174 = vmatprep.subr.mxu0 0.0
    %5175 = vmatpush1.msra.mxu0 0.0
    %5176 = vmatprep.subr.mxu0 0.0
    %5177 = vmatpush1.msra.mxu0 0.0
    %5178 = vmatprep.subr.mxu0 0.0
    %5179 = vmatpush1.msra.mxu0 0.0
    %5180 = vmatprep.subr.mxu0 0.0
    %5181 = vmatpush1.msra.mxu0 0.0
    %5182 = vmatprep.subr.mxu0 0.0
    %5183 = vmatpush1.msra.mxu0 0.0
    %5184 = vmatprep.subr.mxu0 0.0
    %5185 = vmatpush1.msra.mxu0 0.0
    %5186 = vmatprep.subr.mxu0 0.0
    %5187 = vmatpush1.msra.mxu0 0.0
    %5188 = vmatprep.subr.mxu0 0.0
    %5189 = vmatpush1.msra.mxu0 0.0
    %5190 = vmatprep.subr.mxu0 0.0
    %5191 = vmatpush1.msra.mxu0 0.0
    %5192 = vmatprep.subr.mxu0 0.0
    %5193 = vmatpush1.msra.mxu0 0.0
    %5194 = vmatprep.subr.mxu0 0.0
    %5195 = vmatpush1.msra.mxu0 0.0
    %5196 = vmatprep.subr.mxu0 0.0
    %5197 = vmatpush1.msra.mxu0 0.0
    %5198 = vmatprep.subr.mxu0 0.0
    %5199 = vmatpush1.msra.mxu0 0.0
    %5200 = vmatprep.subr.mxu0 0.0
    %5201 = vmatpush1.msra.mxu0 0.0
    %5202 = vmatprep.subr.mxu0 0.0
    %5203 = vmatpush1.msra.mxu0 0.0
    %5204 = vmatprep.subr.mxu0 0.0
    %5205 = vmatpush1.msra.mxu0 0.0
    %5206 = vmatprep.subr.mxu0 0.0
    %5207 = vmatpush1.msra.mxu0 0.0
    %5208 = vmatprep.subr.mxu0 0.0
    %5209 = vmatpush1.msra.mxu0 0.0
    %5210 = vmatprep.subr.mxu0 0.0
    %5211 = vmatpush1.msra.mxu0 0.0
    %5212 = vmatprep.subr.mxu0 0.0
    %5213 = vmatpush1.msra.mxu0 0.0
    %5214 = vmatprep.subr.mxu0 0.0
    %5215 = vmatpush1.msra.mxu0 0.0
    %5216 = vmatprep.subr.mxu0 0.0
    %5217 = vmatpush1.msra.mxu0 0.0
    %5218 = vmatprep.subr.mxu0 0.0
    %5219 = vmatpush1.msra.mxu0 0.0
    %5220 = vmatprep.mubr.f32.mxu0 0.0
    %v5221 = vand.u32 %v4243, 4294901760
    %v5222 = vsub.f32 %v4243, %v5221
    %v5223 = vand.u32 %v5222, 4294901760
    %5224 = vmatmul.mubr.f32.gmra.mrb[0].mxu0 %v5223
    %v5225 = vpop.f32.mrb[0].mxu0
    %v5226 = vadd.f32 %v5146, %v5225
    %v5227 = vpop.f32.mrb[0].mxu0
    %5228 = vdwg.mxu0
    %5229 = vmatprep.subr.mxu0 0.0
    %v5230 = vand.u32 %v4218, 4294901760
    %v5231 = vsub.f32 %v4218, %v5230
    %v5232 = vand.u32 %v5231, 4294901760
    %5233 = vmatpush1.msra.mxu0 %v5232
    %5234 = vmatprep.subr.mxu0 0.0
    %v5235 = vand.u32 %v4221, 4294901760
    %v5236 = vsub.f32 %v4221, %v5235
    %v5237 = vand.u32 %v5236, 4294901760
    %5238 = vmatpush1.msra.mxu0 %v5237
    %5239 = vmatprep.subr.mxu0 0.0
    %v5240 = vand.u32 %v4224, 4294901760
    %v5241 = vsub.f32 %v4224, %v5240
    %v5242 = vand.u32 %v5241, 4294901760
    %5243 = vmatpush1.msra.mxu0 %v5242
    %5244 = vmatprep.subr.mxu0 0.0
    %v5245 = vand.u32 %v4227, 4294901760
    %v5246 = vsub.f32 %v4227, %v5245
    %v5247 = vand.u32 %v5246, 4294901760
    %5248 = vmatpush1.msra.mxu0 %v5247
    %5249 = vmatprep.subr.mxu0 0.0
    %v5250 = vand.u32 %v4230, 4294901760
    %v5251 = vsub.f32 %v4230, %v5250
    %v5252 = vand.u32 %v5251, 4294901760
    %5253 = vmatpush1.msra.mxu0 %v5252
    %5254 = vmatprep.subr.mxu0 0.0
    %v5255 = vand.u32 %v4233, 4294901760
    %v5256 = vsub.f32 %v4233, %v5255
    %v5257 = vand.u32 %v5256, 4294901760
    %5258 = vmatpush1.msra.mxu0 %v5257
    %5259 = vmatprep.subr.mxu0 0.0
    %v5260 = vand.u32 %v4252, 4294901760
    %v5261 = vsub.f32 %v4252, %v5260
    %v5262 = vand.u32 %v5261, 4294901760
    %5263 = vmatpush1.msra.mxu0 %v5262
    %5264 = vmatprep.subr.mxu0 0.0
    %5265 = vmatpush1.msra.mxu0 0.0
    %5266 = vmatprep.subr.mxu0 0.0
    %5267 = vmatpush1.msra.mxu0 0.0
    %5268 = vmatprep.subr.mxu0 0.0
    %5269 = vmatpush1.msra.mxu0 0.0
    %5270 = vmatprep.subr.mxu0 0.0
    %5271 = vmatpush1.msra.mxu0 0.0
    %5272 = vmatprep.subr.mxu0 0.0
    %5273 = vmatpush1.msra.mxu0 0.0
    %5274 = vmatprep.subr.mxu0 0.0
    %5275 = vmatpush1.msra.mxu0 0.0
    %5276 = vmatprep.subr.mxu0 0.0
    %5277 = vmatpush1.msra.mxu0 0.0
    %5278 = vmatprep.subr.mxu0 0.0
    %5279 = vmatpush1.msra.mxu0 0.0
    %5280 = vmatprep.subr.mxu0 0.0
    %5281 = vmatpush1.msra.mxu0 0.0
    %5282 = vmatprep.subr.mxu0 0.0
    %5283 = vmatpush1.msra.mxu0 0.0
    %5284 = vmatprep.subr.mxu0 0.0
    %5285 = vmatpush1.msra.mxu0 0.0
    %5286 = vmatprep.subr.mxu0 0.0
    %5287 = vmatpush1.msra.mxu0 0.0
    %5288 = vmatprep.subr.mxu0 0.0
    %5289 = vmatpush1.msra.mxu0 0.0
    %5290 = vmatprep.subr.mxu0 0.0
    %5291 = vmatpush1.msra.mxu0 0.0
    %5292 = vmatprep.subr.mxu0 0.0
    %5293 = vmatpush1.msra.mxu0 0.0
    %5294 = vmatprep.subr.mxu0 0.0
    %5295 = vmatpush1.msra.mxu0 0.0
    %5296 = vmatprep.subr.mxu0 0.0
    %5297 = vmatpush1.msra.mxu0 0.0
    %5298 = vmatprep.subr.mxu0 0.0
    %5299 = vmatpush1.msra.mxu0 0.0
    %5300 = vmatprep.subr.mxu0 0.0
    %5301 = vmatpush1.msra.mxu0 0.0
    %5302 = vmatprep.subr.mxu0 0.0
    %5303 = vmatpush1.msra.mxu0 0.0
    %5304 = vmatprep.subr.mxu0 0.0
    %5305 = vmatpush1.msra.mxu0 0.0
    %5306 = vmatprep.subr.mxu0 0.0
    %5307 = vmatpush1.msra.mxu0 0.0
    %5308 = vmatprep.subr.mxu0 0.0
    %5309 = vmatpush1.msra.mxu0 0.0
    %5310 = vmatprep.subr.mxu0 0.0
    %5311 = vmatpush1.msra.mxu0 0.0
    %5312 = vmatprep.subr.mxu0 0.0
    %5313 = vmatpush1.msra.mxu0 0.0
    %5314 = vmatprep.mubr.f32.mxu0 0.0
    %v5315 = vand.u32 %v4243, 4294901760
    %5316 = vmatmul.mubr.f32.gmra.mrb[0].mxu0 %v5315
    %v5317 = vpop.f32.mrb[0].mxu0
    %v5318 = vadd.f32 %v5226, %v5317
    %v5319 = vpop.f32.mrb[0].mxu0
    %5320 = vdwg.mxu0
    %5321 = vmatprep.subr.mxu0 0.0
    %v5322 = vand.u32 %v4218, 4294901760
    %5323 = vmatpush1.msra.mxu0 %v5322
    %5324 = vmatprep.subr.mxu0 0.0
    %v5325 = vand.u32 %v4221, 4294901760
    %5326 = vmatpush1.msra.mxu0 %v5325
    %5327 = vmatprep.subr.mxu0 0.0
    %v5328 = vand.u32 %v4224, 4294901760
    %5329 = vmatpush1.msra.mxu0 %v5328
    %5330 = vmatprep.subr.mxu0 0.0
    %v5331 = vand.u32 %v4227, 4294901760
    %5332 = vmatpush1.msra.mxu0 %v5331
    %5333 = vmatprep.subr.mxu0 0.0
    %v5334 = vand.u32 %v4230, 4294901760
    %5335 = vmatpush1.msra.mxu0 %v5334
    %5336 = vmatprep.subr.mxu0 0.0
    %v5337 = vand.u32 %v4233, 4294901760
    %5338 = vmatpush1.msra.mxu0 %v5337
    %5339 = vmatprep.subr.mxu0 0.0
    %v5340 = vand.u32 %v4252, 4294901760
    %5341 = vmatpush1.msra.mxu0 %v5340
    %5342 = vmatprep.subr.mxu0 0.0
    %5343 = vmatpush1.msra.mxu0 0.0
    %5344 = vmatprep.subr.mxu0 0.0
    %5345 = vmatpush1.msra.mxu0 0.0
    %5346 = vmatprep.subr.mxu0 0.0
    %5347 = vmatpush1.msra.mxu0 0.0
    %5348 = vmatprep.subr.mxu0 0.0
    %5349 = vmatpush1.msra.mxu0 0.0
    %5350 = vmatprep.subr.mxu0 0.0
    %5351 = vmatpush1.msra.mxu0 0.0
    %5352 = vmatprep.subr.mxu0 0.0
    %5353 = vmatpush1.msra.mxu0 0.0
    %5354 = vmatprep.subr.mxu0 0.0
    %5355 = vmatpush1.msra.mxu0 0.0
    %5356 = vmatprep.subr.mxu0 0.0
    %5357 = vmatpush1.msra.mxu0 0.0
    %5358 = vmatprep.subr.mxu0 0.0
    %5359 = vmatpush1.msra.mxu0 0.0
    %5360 = vmatprep.subr.mxu0 0.0
    %5361 = vmatpush1.msra.mxu0 0.0
    %5362 = vmatprep.subr.mxu0 0.0
    %5363 = vmatpush1.msra.mxu0 0.0
    %5364 = vmatprep.subr.mxu0 0.0
    %5365 = vmatpush1.msra.mxu0 0.0
    %5366 = vmatprep.subr.mxu0 0.0
    %5367 = vmatpush1.msra.mxu0 0.0
    %5368 = vmatprep.subr.mxu0 0.0
    %5369 = vmatpush1.msra.mxu0 0.0
    %5370 = vmatprep.subr.mxu0 0.0
    %5371 = vmatpush1.msra.mxu0 0.0
    %5372 = vmatprep.subr.mxu0 0.0
    %5373 = vmatpush1.msra.mxu0 0.0
    %5374 = vmatprep.subr.mxu0 0.0
    %5375 = vmatpush1.msra.mxu0 0.0
    %5376 = vmatprep.subr.mxu0 0.0
    %5377 = vmatpush1.msra.mxu0 0.0
    %5378 = vmatprep.subr.mxu0 0.0
    %5379 = vmatpush1.msra.mxu0 0.0
    %5380 = vmatprep.subr.mxu0 0.0
    %5381 = vmatpush1.msra.mxu0 0.0
    %5382 = vmatprep.subr.mxu0 0.0
    %5383 = vmatpush1.msra.mxu0 0.0
    %5384 = vmatprep.subr.mxu0 0.0
    %5385 = vmatpush1.msra.mxu0 0.0
    %5386 = vmatprep.subr.mxu0 0.0
    %5387 = vmatpush1.msra.mxu0 0.0
    %5388 = vmatprep.subr.mxu0 0.0
    %5389 = vmatpush1.msra.mxu0 0.0
    %5390 = vmatprep.subr.mxu0 0.0
    %5391 = vmatpush1.msra.mxu0 0.0
    %5392 = vmatprep.mubr.f32.mxu0 0.0
    %v5393 = vand.u32 %v4243, 4294901760
    %5394 = vmatmul.mubr.f32.gmra.mrb[0].mxu0 %v5393
    %v5395 = vpop.f32.mrb[0].mxu0
    %v5396 = vadd.f32 %v5318, %v5395
    %v5397 = vpop.f32.mrb[0].mxu0
    %5398 = vdwg.mxu0
    %v5401 = vcombine.low %v4871, %v4873
    %5403 = vst [vmem:[#allocation2] sm:$0x77] %v5401
    %5404 = vst [vmem:[#allocation2 + $0x8] sm:$0x7] %v5396
    // Predicated region
    $region26: #{tpu_custom_call.1} parent=1 // pred_check
      _
    $region27: #{tpu_custom_call.1} parent=1 // pred_check_branch
      %5406 = sbr.rel (0) target = $region29
    $region28: #{tpu_custom_call.1} parent=1 // pred_region
      %s5408 = ssub.s32 192, 192
      %5409 = vsyncadd [#allocation3], %s5408
      %s5411 = sshll.u32 [#allocation2], 4
      %s5412 = int_to_ptr.vmem [resolvable:$true] %s5411
      %5414 = dma.vmem_to_hbm [thread:$0]  %s5412, 192, %s6, [#allocation3]
    $region29: #{tpu_custom_call.1} parent=1 // pred_fallthru
      _
    // Predicated region
    $region30: #{tpu_custom_call.1} parent=1 // pred_check
      _
    $region31: #{tpu_custom_call.1} parent=1 // pred_check_branch
      %5416 = sbr.rel (0) target = $region33
    $region32: #{tpu_custom_call.1} parent=1 // pred_region
      %5417 = dma.done [#allocation3], 192
    $region33: #{tpu_custom_call.1} parent=1 // pred_fallthru
      _
    %5418 = vsyncpa [#allocation3], 1

</llo_original>
